<compile_context>
chip_gen: v5e
topology: v5e:2x2
jax: 0.10.0
libtpu: 0.0.40
codegen_flags: <defaults>
</compile_context>

<pallas_src>
import jax
import jax.numpy as jnp
from jax import lax
from jax.experimental import pallas as pl
from jax.experimental.pallas import tpu as pltpu

V_SMPL   = 128    # synthetic SMPL vertex count (real SMPL = 6890)
J_SMPL   = 24     # SMPL joints
N_SHAPE  = 10     # shape (beta) dim
HIDDEN   = 128    # SDF decoder hidden width
N_POINTS = 1024   # query points per garment (stand-in for the resolution=21 grid)

SMPL_PARENTS = [-1, 0, 0, 0, 1, 2, 3, 4, 5, 6, 7, 8, 9, 9, 9, 12, 13, 14,
                16, 17, 18, 19, 20, 21]

CLOTH_LATENTS = {          # (n_z_cut, n_z_style) per garment family
    'upperbody': (6, 12),
    'pants':     (6, 12),
    'skirts':    (6, 12),
    'hair':      (6, 6),
    'shoes':     (4, 4),
}


# ----------------------------------------------------------------------------
# Pallas kernel 1: implicit SDF decoder MLP (Model.decode hot path)
#   point axis on lanes, feature axis on sublanes -> lane-dense (1, N) output
#   whole batch carried in-block, unrolled (B is small & static)
# ----------------------------------------------------------------------------
def _sdf_decoder_kernel(pts_ref, zproj_ref, w1pt_ref, w2t_ref, b2_ref,
                        w3_ref, b3_ref, o_ref):
    B = pts_ref.shape[0]
    w1  = w1pt_ref[...]                                  # (H, 3)
    w2t = w2t_ref[...]                                   # (H, H) bf16
    b2  = b2_ref[...]                                    # (H, 1)
    w3  = w3_ref[...]                                    # (H, 1)
    b3  = b3_ref[...]                                    # (1, 1)
    for b in range(B):                                   # static unroll
        p = pts_ref[b]                                   # (3, N)  xyz rows
        # Layer 1: K=3 -> 3 VPU broadcast-FMAs (keeps MXU free).
        h = (w1[:, 0:1] * p[0:1, :] + w1[:, 1:2] * p[1:2, :]
             + w1[:, 2:3] * p[2:3, :] + zproj_ref[b])    # (H, N)
        h = jnp.maximum(h, 0.0)
        # Layer 2: the only real matmul; bf16 operands, f32 accumulation.
        h2 = jnp.dot(w2t, h.astype(jnp.bfloat16),
                     preferred_element_type=jnp.float32) + b2
        h2 = jnp.maximum(h2, 0.0)                        # (H, N)
        # Layer 3: N_out=1 -> VPU multiply + sublane reduce -> lane-dense (1,N).
        o_ref[b] = jnp.sum(h2 * w3, axis=0, keepdims=True) + b3


def sdf_decoder(points, z_proj, w1p, w2, b2, w3, b3):
    """points (G,B,N,3), z_proj (G,B,H), w1p (G,3,H), w2 (G,H,H),
       b2 (G,H), w3 (G,H,1), b3 (G,1,1)  ->  sdf (G,B,N)."""
    G, B, N, _ = points.shape
    H = w2.shape[-1]
    pts_t = jnp.transpose(points, (0, 1, 3, 2)).astype(jnp.float32)   # (G,B,3,N)
    zp    = z_proj.astype(jnp.float32)[..., None]                     # (G,B,H,1)
    w1p_t = jnp.transpose(w1p, (0, 2, 1)).astype(jnp.float32)         # (G,H,3)
    w2_t  = jnp.transpose(w2, (0, 2, 1)).astype(jnp.bfloat16)         # (G,H,H)
    b2c   = b2.astype(jnp.float32)[..., None]                         # (G,H,1)
    w3c   = w3.astype(jnp.float32)                                    # (G,H,1)
    b3c   = b3.astype(jnp.float32)                                    # (G,1,1)
    out = pl.pallas_call(
        _sdf_decoder_kernel,
        out_shape=jax.ShapeDtypeStruct((G, B, 1, N), jnp.float32),
        grid=(G,),
        in_specs=[
            pl.BlockSpec((None, B, 3, N), lambda g: (g, 0, 0, 0)),
            pl.BlockSpec((None, B, H, 1), lambda g: (g, 0, 0, 0)),
            pl.BlockSpec((None, H, 3), lambda g: (g, 0, 0)),
            pl.BlockSpec((None, H, H), lambda g: (g, 0, 0)),
            pl.BlockSpec((None, H, 1), lambda g: (g, 0, 0)),
            pl.BlockSpec((None, H, 1), lambda g: (g, 0, 0)),
            pl.BlockSpec((None, 1, 1), lambda g: (g, 0, 0)),
        ],
        out_specs=pl.BlockSpec((None, B, 1, N), lambda g: (g, 0, 0, 0)),
        compiler_params=pltpu.CompilerParams(
            dimension_semantics=("parallel",)),
    )(pts_t, zp, w1p_t, w2_t, b2c, w3c, b3c)
    return out[:, :, 0, :]                                            # (G,B,N)


# ----------------------------------------------------------------------------
# Pallas kernel 2: nearest-SMPL-vertex + affine skinning
#   (SMPL_Layer.deform_clothed_smpl / unpose_and_deform_cloth hot path)
#   points on lanes, SMPL verts on sublanes -> lane-dense (3, N) output
# ----------------------------------------------------------------------------
def _nn_skin_kernel(pts_ref, verts_ref, t12_ref, o_ref):
    B = pts_ref.shape[0]
    for b in range(B):                                   # static unroll
        p   = pts_ref[b]                                 # (3, N)
        v   = verts_ref[b]                               # (V, 3)
        t12 = t12_ref[b]                                 # (12, V)
        px, py, pz = p[0:1, :], p[1:2, :], p[2:3, :]
        # Exact squared distances (avoids cancellation of the expanded form).
        dx = v[:, 0:1] - px
        dy = v[:, 1:2] - py
        dz = v[:, 2:3] - pz
        d2 = dx * dx + dy * dy + dz * dz                 # (V, N)
        V = d2.shape[0]
        dmin = jnp.min(d2, axis=0, keepdims=True)        # sublane reduce #1
        iota = lax.broadcasted_iota(jnp.int32, d2.shape, 0).astype(jnp.float32)
        # first-match argmin (matches torch nearest-neighbour tie-breaking)
        idx = jnp.min(jnp.where(d2 <= dmin, iota, float(V)),
                      axis=0, keepdims=True)             # sublane reduce #2
        onehot = (iota == idx).astype(jnp.float32)       # (V, N)
        # Gather the per-point 3x4 affine via one MXU matmul: (12,V)@(V,N).
        Tg = jnp.dot(t12, onehot, preferred_element_type=jnp.float32)   # (12, N)
        ox = Tg[0:1] * px + Tg[1:2] * py + Tg[2:3]  * pz + Tg[3:4]
        oy = Tg[4:5] * px + Tg[5:6] * py + Tg[6:7]  * pz + Tg[7:8]
        oz = Tg[8:9] * px + Tg[9:10] * py + Tg[10:11] * pz + Tg[11:12]
        o_ref[b] = jnp.concatenate([ox, oy, oz], axis=0)  # (3, N)


def nn_skin(points, ref_verts, T12):
    """points (S,B,N,3), ref_verts (S,B,V,3), T12 (S,B,V,12) -> posed (S,B,N,3)."""
    S, B, N, _ = points.shape
    V = ref_verts.shape[2]
    pts_t = jnp.transpose(points, (0, 1, 3, 2)).astype(jnp.float32)   # (S,B,3,N)
    t12_t = jnp.transpose(T12, (0, 1, 3, 2)).astype(jnp.float32)      # (S,B,12,V)
    verts = ref_verts.astype(jnp.float32)                             # (S,B,V,3)
    out = pl.pallas_call(
        _nn_skin_kernel,
        out_shape=jax.ShapeDtypeStruct((S, B, 3, N), jnp.float32),
        grid=(S,),
        in_specs=[
            pl.BlockSpec((None, B, 3, N), lambda s: (s, 0, 0, 0)),
            pl.BlockSpec((None, B, V, 3), lambda s: (s, 0, 0, 0)),
            pl.BlockSpec((None, B, 12, V), lambda s: (s, 0, 0, 0)),
        ],
        out_specs=pl.BlockSpec((None, B, 3, N), lambda s: (s, 0, 0, 0)),
        compiler_params=pltpu.CompilerParams(
            dimension_semantics=("parallel",)),
    )(pts_t, verts, t12_t)
    return jnp.transpose(out, (0, 1, 3, 2))                           # (S,B,N,3)


# ----------------------------------------------------------------------------
# SMPL glue (small parameter math, deterministic synthetic parameters)
# ----------------------------------------------------------------------------
def make_smpl_params(key):
    k1, k2, k3, k4 = jax.random.split(key, 4)
    return dict(
        v_template=jax.random.normal(k1, (V_SMPL, 3)) * 0.3,
        shapedirs=jax.random.normal(k2, (V_SMPL, 3, N_SHAPE)) * 0.01,
        J_regressor=jax.nn.softmax(jax.random.normal(k3, (J_SMPL, V_SMPL)), axis=1),
        weights=jax.nn.softmax(jax.random.normal(k4, (V_SMPL, J_SMPL)) * 2.0, axis=1),
    )


def smpl_skeleton(params, beta):
    """SMPL.skeleton(beta, require_body=True) -> (joints (1,J,3), verts (1,V,3))"""
    v_shaped = params['v_template'][None] + jnp.einsum('vds,bs->bvd',
                                                       params['shapedirs'], beta)
    joints = jnp.einsum('jv,bvd->bjd', params['J_regressor'], v_shaped)
    return joints, v_shaped


def rodrigues(r):
    theta = jnp.sqrt(jnp.sum(r * r, axis=-1, keepdims=True) + 1e-12)
    k = r / theta
    kx, ky, kz = k[..., 0], k[..., 1], k[..., 2]
    zero = jnp.zeros_like(kx)
    K = jnp.stack([
        jnp.stack([zero, -kz, ky], axis=-1),
        jnp.stack([kz, zero, -kx], axis=-1),
        jnp.stack([-ky, kx, zero], axis=-1)], axis=-2)
    c = jnp.cos(theta)[..., None]
    s = jnp.sin(theta)[..., None]
    outer = k[..., :, None] * k[..., None, :]
    return c * jnp.eye(3, dtype=r.dtype) + s * K + (1.0 - c) * outer


def global_rigid_transform(Rs, Js):
    B = Js.shape[0]

    def make_A(R, t):
        top = jnp.concatenate([R, t[:, :, None]], axis=2)
        bot = jnp.tile(jnp.array([[[0., 0., 0., 1.]]], jnp.float32), (B, 1, 1))
        return jnp.concatenate([top, bot], axis=1)

    results = [make_A(Rs[:, 0], Js[:, 0])]
    for j in range(1, J_SMPL):
        p = SMPL_PARENTS[j]
        results.append(jnp.matmul(results[p], make_A(Rs[:, j], Js[:, j] - Js[:, p])))
    G = jnp.stack(results, axis=1)                                     # (B,J,4,4)
    posed_joints = G[:, :, :3, 3]
    Jh = jnp.concatenate([Js, jnp.zeros((B, J_SMPL, 1))], axis=2)[..., None]
    corr = jnp.matmul(G, Jh)                                           # (B,J,4,1)
    A = G - jnp.concatenate([jnp.zeros((B, J_SMPL, 4, 3)), corr], axis=3)
    return posed_joints, A


def vertex_transforms(params, A):
    return jnp.einsum('vj,bjkl->bvkl', params['weights'], A)           # (B,V,4,4)


def pose_transforms(params, pose, joints):
    """Per-vertex 4x4 skinning transforms for a given axis-angle pose."""
    Rs = rodrigues(pose.reshape(-1, J_SMPL, 3))
    _, A = global_rigid_transform(Rs, joints)
    return vertex_transforms(params, A)                                # (B,V,4,4)


def smpl_forward(params, beta, theta):
    """SMPL.forward(beta, theta, get_skin=True) -> (verts, joints, Rs)"""
    joints, v_shaped = smpl_skeleton(params, beta)
    Rs = rodrigues(theta.reshape(-1, J_SMPL, 3))
    _, A = global_rigid_transform(Rs, joints)
    T = vertex_transforms(params, A)
    verts = jnp.einsum('bvij,bvj->bvi', T[..., :3, :3], v_shaped) + T[..., :3, 3]
    posed_J = jnp.einsum('jv,bvd->bjd', params['J_regressor'], verts)
    return verts, posed_J, Rs


# ----------------------------------------------------------------------------
# Garment implicit model (Model.decode, point-cloud path)
# ----------------------------------------------------------------------------
def make_cloth_model(key, cloth_key):
    zc, zs = CLOTH_LATENTS[cloth_key]
    zdim = zc + zs
    k = jax.random.split(key, 8)
    scale = 1.0 / jnp.sqrt(HIDDEN)
    return dict(n_z_cut=zc, n_z_style=zs,
                w1p=jax.random.normal(k[0], (3, HIDDEN)) * 0.5,
                w1z=jax.random.normal(k[1], (zdim, HIDDEN)) * scale,
                b1=jax.random.normal(k[2], (1, HIDDEN)) * 0.01,
                w2=jax.random.normal(k[3], (HIDDEN, HIDDEN)) * scale,
                b2=jax.random.normal(k[4], (1, HIDDEN)) * 0.01,
                w3=jax.random.normal(k[5], (HIDDEN, 1)) * scale,
                b3=jax.random.normal(k[6], (1, 1)) * 0.01,
                offsets=jax.random.normal(k[7], (N_POINTS, 3)) * 0.05)


def sample_query_points(model, smpl_mesh, is_coat):
    # TODO(synk): the original Model.decode builds a resolution^3 query grid per
    # SMPL cluster and optionally runs marching cubes / trimesh smoothing; here
    # query points are generated deterministically around the SMPL surface and
    # only the do_marching_cube=False (point-cloud) path is implemented.
    V = smpl_mesh.shape[1]
    base_idx = jnp.arange(N_POINTS) % V          # robust for any vertex count
    pts = jnp.take(smpl_mesh, base_idx, axis=1) + model['offsets'][None]
    if is_coat:
        pts = pts * 1.05
    return pts                                    # (B, N_POINTS, 3)


# ----------------------------------------------------------------------------
# SMPLicit (forward pass semantics, do_marching_cube=False path)
# ----------------------------------------------------------------------------
class SMPLicitJax:
    def __init__(self, cloth_types, key):
        self.cloth_types = list(cloth_types)
        self.models = []
        for i, ct in enumerate(self.cloth_types):
            family = 'upperbody' if ct in ('uppercloth', 'coat') else ct
            self.models.append(make_cloth_model(jax.random.fold_in(key, 1000 + i),
                                                family))
        # 3 SMPL layers: NEUTRAL / MALE / FEMALE
        self.smpl_params = [make_smpl_params(jax.random.fold_in(key, 2000 + g))
                            for g in range(3)]
        astar = jnp.zeros((1, 72), jnp.float32)
        self.Astar_pose = astar.at[0, 5].set(0.04).at[0, 8].set(-0.04)
        self.step = 1000  # reference chunking; superseded by kernel grid tiling

    def forward(self, z_cuts, z_styles, pose, shape, gender=(0,), valid=None):
        batch_size = pose.shape[0]
        if valid is None:
            valid = [True] * len(self.cloth_types)

        # Per-sample SMPL skeletons / A* body (per-sample gender, as in torch).
        uj, um, aj, am = [], [], [], []
        for i in range(batch_size):
            params = self.smpl_params[gender[i]]
            j_i, m_i = smpl_skeleton(params, shape[None, i])
            a_m, a_j, _ = smpl_forward(params, shape[None, i], self.Astar_pose)
            uj.append(j_i); um.append(m_i); am.append(a_m); aj.append(a_j)
        unposed_smpl_joint = jnp.concatenate(uj, axis=0)
        unposed_smpl_mesh = jnp.concatenate(um, axis=0)
        Astar_smpl_mesh = jnp.concatenate(am, axis=0)
        Astar_smpl_joint = jnp.concatenate(aj, axis=0)
        del Astar_smpl_joint  # (matches reference: joints for lower body decode only)
        # NOTE: mirrors the original quirk — one SMPL layer (gender[0]) poses
        # every sample even though skeletons above are per-sample gender.
        layer_params = self.smpl_params[gender[0]]

        # Shared skinning transforms (identical for all garments -> compute once).
        T_pose = pose_transforms(layer_params, pose, unposed_smpl_joint)     # (B,V,4,4)
        T12_pose = T_pose[..., :3, :].reshape(batch_size, V_SMPL, 12)
        astar_b = jnp.broadcast_to(self.Astar_pose, (batch_size, 72))
        T_astar = pose_transforms(layer_params, astar_b, unposed_smpl_joint)
        M = jnp.matmul(T_pose, jnp.linalg.inv(T_astar))                      # un-A* then pose
        M12 = M[..., :3, :].reshape(batch_size, V_SMPL, 12)
        astar_verts = jnp.einsum('bvij,bvj->bvi', T_astar[..., :3, :3],
                                 unposed_smpl_mesh) + T_astar[..., :3, 3]

        # ----- batched SDF decode over all valid garments (1 pallas_call) -----
        valid_idx = [i for i in range(len(self.cloth_types)) if valid[i]]
        pts_l, zp_l, w1p_l, w2_l, b2_l, w3_l, b3_l = [], [], [], [], [], [], []
        for i in valid_idx:
            ct = self.cloth_types[i]
            model = self.models[i]
            is_coat = (ct == 'coat')
            ref_mesh = Astar_smpl_mesh if ct in ('pants', 'skirts') else unposed_smpl_mesh
            pts_l.append(sample_query_points(model, ref_mesh, is_coat))      # (B,N,3)
            z = jnp.concatenate([z_cuts[i], z_styles[i]], axis=1)
            zp_l.append(z @ model['w1z'] + model['b1'])                      # (B,H)
            w1p_l.append(model['w1p']); w2_l.append(model['w2'])
            b2_l.append(model['b2'][0]); w3_l.append(model['w3'])
            b3_l.append(model['b3'])
        pts_g = jnp.stack(pts_l)                          # (G,B,N,3)
        sdf_g = sdf_decoder(pts_g, jnp.stack(zp_l), jnp.stack(w1p_l),
                            jnp.stack(w2_l), jnp.stack(b2_l),
                            jnp.stack(w3_l), jnp.stack(b3_l))                # (G,B,N)

        # ----- batched NN skinning (1 pallas_call; right shoe = extra slot) -----
        slot_pts, slot_verts, slot_T, slot_of = [], [], [], {}
        for gi, i in enumerate(valid_idx):
            ct = self.cloth_types[i]
            unposed = pts_g[gi]
            if ct in ('pants', 'skirts'):
                rv, t12 = astar_verts, M12
            else:
                rv, t12 = unposed_smpl_mesh, T12_pose
            slot_of[i] = len(slot_pts)
            slot_pts.append(unposed); slot_verts.append(rv); slot_T.append(t12)
            if ct == 'shoes':                      # mirrored right shoe, same T/ref
                rshoe = jnp.stack([-unposed[:, :, 0], unposed[:, :, 1],
                                   unposed[:, :, 2]], axis=2)
                slot_pts.append(rshoe); slot_verts.append(rv); slot_T.append(t12)
        posed_slots = nn_skin(jnp.stack(slot_pts), jnp.stack(slot_verts),
                              jnp.stack(slot_T))                             # (S,B,N,3)

        # ----- unpack to the original per-garment outputs -----
        out_sdfs, out_meshes, out_meshes_unposed = [], [], []
        gi = 0
        for i, ct in enumerate(self.cloth_types):
            if not valid[i]:
                out_sdfs.append([None]); out_meshes.append([None])
                out_meshes_unposed.append([None])
                continue
            s = slot_of[i]
            sdf = sdf_g[gi]                    # (B,N)
            unposed = pts_g[gi]                # (B,N,3)
            posed = posed_slots[s]             # (B,N,3)
            if ct == 'shoes':                  # get_right_shoe semantics
                sdf = jnp.concatenate([sdf, sdf], axis=1)
                rshoe = jnp.stack([-unposed[:, :, 0], unposed[:, :, 1],
                                   unposed[:, :, 2]], axis=2)
                unposed = jnp.concatenate([unposed, rshoe], axis=1)
                posed = jnp.concatenate([posed, posed_slots[s + 1]], axis=1)
            out_sdfs.append(sdf)
            out_meshes.append(posed)
            out_meshes_unposed.append(unposed)
            gi += 1
        return out_sdfs, out_meshes, out_meshes_unposed


if __name__ == "__main__":
    key = jax.random.PRNGKey(0)
    cloth_types = ['uppercloth', 'pants', 'shoes']
    smplicit = SMPLicitJax(cloth_types, key)

    B = 2
    kk = jax.random.split(jax.random.PRNGKey(0), 4)
    pose = jax.random.normal(kk[0], (B, 72)) * 0.2
    shape = jax.random.normal(kk[1], (B, N_SHAPE)) * 0.5
    gender = [0, 1]
    valid = [True, True, True]

    z_cuts, z_styles = [], []
    for i in range(len(cloth_types)):
        zc = smplicit.models[i]['n_z_cut']
        zs = smplicit.models[i]['n_z_style']
        z_cuts.append(jax.random.normal(jax.random.fold_in(kk[2], i), (B, zc)) * 0.1)
        z_styles.append(jax.random.normal(jax.random.fold_in(kk[3], i), (B, zs)) * 0.1)

    out_sdfs, out_meshes, out_unposed = smplicit.forward(
        z_cuts, z_styles, pose, shape, gender, valid)

    for group in (out_sdfs, out_meshes, out_unposed):
        for x in group:
            if isinstance(x, jax.Array):
                jax.block_until_ready(x)

    print("KERNEL_OK")
</pallas_src>

<mosaic_0001>
module attributes {stable_mosaic.version = 11 : i64} {
  func.func @_sdf_decoder_kernel(%arg0: i32, %arg1: memref<1x2x3x1024xf32, #tpu.memory_space<vmem>>, %arg2: memref<1x2x128x1xf32, #tpu.memory_space<vmem>>, %arg3: memref<1x128x3xf32, #tpu.memory_space<vmem>>, %arg4: memref<1x128x128xbf16, #tpu.memory_space<vmem>>, %arg5: memref<1x128x1xf32, #tpu.memory_space<vmem>>, %arg6: memref<1x128x1xf32, #tpu.memory_space<vmem>>, %arg7: memref<1x1x1xf32, #tpu.memory_space<vmem>>, %arg8: memref<1x2x1x1024xf32, #tpu.memory_space<vmem>>) attributes {dimension_semantics = [#tpu.dimension_semantics<parallel>], iteration_bounds = array<i64: 3>, scalar_prefetch = 0 : i64, scratch_operands = 0 : i64, tpu.core_type = #tpu.core_type<tc>, window_params = [{transform_indices = @transform_0, window_bounds = array<i64: 1, 2, 3, 1024>}, {transform_indices = @transform_1, window_bounds = array<i64: 1, 2, 128, 1>}, {transform_indices = @transform_2, window_bounds = array<i64: 1, 128, 3>}, {transform_indices = @transform_3, window_bounds = array<i64: 1, 128, 128>}, {transform_indices = @transform_4, window_bounds = array<i64: 1, 128, 1>}, {transform_indices = @transform_5, window_bounds = array<i64: 1, 128, 1>}, {transform_indices = @transform_6, window_bounds = array<i64: 1, 1, 1>}, {transform_indices = @transform_7, window_bounds = array<i64: 1, 2, 1, 1024>}]} {
    %c0 = arith.constant 0 : index
    %c0_0 = arith.constant 0 : index
    %c0_1 = arith.constant 0 : index
    %0 = vector.load %arg3[%c0, %c0_0, %c0_1] : memref<1x128x3xf32, #tpu.memory_space<vmem>>, vector<1x128x3xf32>
    %1 = vector.shape_cast %0 : vector<1x128x3xf32> to vector<128x3xf32>
    %c0_2 = arith.constant 0 : index
    %c0_3 = arith.constant 0 : index
    %c0_4 = arith.constant 0 : index
    %2 = vector.load %arg4[%c0_2, %c0_3, %c0_4] : memref<1x128x128xbf16, #tpu.memory_space<vmem>>, vector<1x128x128xbf16>
    %3 = vector.shape_cast %2 : vector<1x128x128xbf16> to vector<128x128xbf16>
    %c0_5 = arith.constant 0 : index
    %c0_6 = arith.constant 0 : index
    %c0_7 = arith.constant 0 : index
    %4 = vector.load %arg5[%c0_5, %c0_6, %c0_7] : memref<1x128x1xf32, #tpu.memory_space<vmem>>, vector<1x128x1xf32>
    %5 = vector.shape_cast %4 : vector<1x128x1xf32> to vector<128x1xf32>
    %c0_8 = arith.constant 0 : index
    %c0_9 = arith.constant 0 : index
    %c0_10 = arith.constant 0 : index
    %6 = vector.load %arg6[%c0_8, %c0_9, %c0_10] : memref<1x128x1xf32, #tpu.memory_space<vmem>>, vector<1x128x1xf32>
    %7 = vector.shape_cast %6 : vector<1x128x1xf32> to vector<128x1xf32>
    %c0_11 = arith.constant 0 : index
    %c0_12 = arith.constant 0 : index
    %c0_13 = arith.constant 0 : index
    %8 = vector.load %arg7[%c0_11, %c0_12, %c0_13] : memref<1x1x1xf32, #tpu.memory_space<vmem>>, vector<1x1x1xf32>
    %9 = vector.shape_cast %8 : vector<1x1x1xf32> to vector<1x1xf32>
    %c0_14 = arith.constant 0 : index
    %c0_15 = arith.constant 0 : index
    %c0_16 = arith.constant 0 : index
    %c0_17 = arith.constant 0 : index
    %10 = vector.load %arg1[%c0_14, %c0_15, %c0_16, %c0_17] : memref<1x2x3x1024xf32, #tpu.memory_space<vmem>>, vector<1x1x3x1024xf32>
    %11 = vector.shape_cast %10 : vector<1x1x3x1024xf32> to vector<3x1024xf32>
    %12 = vector.extract_strided_slice %1 {offsets = [0, 0], sizes = [128, 1], strides = [1, 1]} : vector<128x3xf32> to vector<128x1xf32>
    %13 = vector.extract_strided_slice %11 {offsets = [0, 0], sizes = [1, 1024], strides = [1, 1]} : vector<3x1024xf32> to vector<1x1024xf32>
    %14 = vector.broadcast %12 : vector<128x1xf32> to vector<128x1024xf32>
    %15 = vector.broadcast %13 : vector<1x1024xf32> to vector<128x1024xf32>
    %16 = arith.mulf %14, %15 : vector<128x1024xf32>
    %17 = vector.extract_strided_slice %1 {offsets = [0, 1], sizes = [128, 1], strides = [1, 1]} : vector<128x3xf32> to vector<128x1xf32>
    %18 = vector.extract_strided_slice %11 {offsets = [1, 0], sizes = [1, 1024], strides = [1, 1]} : vector<3x1024xf32> to vector<1x1024xf32>
    %19 = vector.broadcast %17 : vector<128x1xf32> to vector<128x1024xf32>
    %20 = vector.broadcast %18 : vector<1x1024xf32> to vector<128x1024xf32>
    %21 = arith.mulf %19, %20 : vector<128x1024xf32>
    %22 = arith.addf %16, %21 : vector<128x1024xf32>
    %23 = vector.extract_strided_slice %1 {offsets = [0, 2], sizes = [128, 1], strides = [1, 1]} : vector<128x3xf32> to vector<128x1xf32>
    %24 = vector.extract_strided_slice %11 {offsets = [2, 0], sizes = [1, 1024], strides = [1, 1]} : vector<3x1024xf32> to vector<1x1024xf32>
    %25 = vector.broadcast %23 : vector<128x1xf32> to vector<128x1024xf32>
    %26 = vector.broadcast %24 : vector<1x1024xf32> to vector<128x1024xf32>
    %27 = arith.mulf %25, %26 : vector<128x1024xf32>
    %28 = arith.addf %22, %27 : vector<128x1024xf32>
    %c0_18 = arith.constant 0 : index
    %c0_19 = arith.constant 0 : index
    %c0_20 = arith.constant 0 : index
    %c0_21 = arith.constant 0 : index
    %29 = vector.load %arg2[%c0_18, %c0_19, %c0_20, %c0_21] : memref<1x2x128x1xf32, #tpu.memory_space<vmem>>, vector<1x1x128x1xf32>
    %30 = vector.shape_cast %29 : vector<1x1x128x1xf32> to vector<128x1xf32>
    %31 = vector.broadcast %30 : vector<128x1xf32> to vector<128x1024xf32>
    %32 = arith.addf %28, %31 : vector<128x1024xf32>
    %cst = arith.constant 0.000000e+00 : f32
    %33 = vector.broadcast %cst : f32 to vector<128x1024xf32>
    %34 = arith.maximumf %32, %33 : vector<128x1024xf32>
    %35 = arith.truncf %34 : vector<128x1024xf32> to vector<128x1024xbf16>
    %cst_22 = arith.constant dense<0.000000e+00> : vector<128x1024xf32>
    %36 = tpu.matmul %3, %35, %cst_22 {dimension_numbers = #tpu.dot_dimension_numbers<[1], [0], [0], [1], [0, 0, 1, 1], [], []>} : vector<128x128xbf16>, vector<128x1024xbf16>, vector<128x1024xf32> -> vector<128x1024xf32>
    %37 = vector.broadcast %5 : vector<128x1xf32> to vector<128x1024xf32>
    %38 = arith.addf %36, %37 : vector<128x1024xf32>
    %cst_23 = arith.constant 0.000000e+00 : f32
    %39 = vector.broadcast %cst_23 : f32 to vector<128x1024xf32>
    %40 = arith.maximumf %38, %39 : vector<128x1024xf32>
    %41 = vector.broadcast %7 : vector<128x1xf32> to vector<128x1024xf32>
    %42 = arith.mulf %40, %41 : vector<128x1024xf32>
    %cst_24 = arith.constant dense<0.000000e+00> : vector<1024xf32>
    %43 = vector.multi_reduction <add>, %42, %cst_24 [0] : vector<128x1024xf32> to vector<1024xf32>
    %44 = vector.shape_cast %43 : vector<1024xf32> to vector<1x1024xf32>
    %45 = vector.broadcast %9 : vector<1x1xf32> to vector<1x1024xf32>
    %46 = arith.addf %44, %45 : vector<1x1024xf32>
    %c0_25 = arith.constant 0 : index
    %c0_26 = arith.constant 0 : index
    %c0_27 = arith.constant 0 : index
    %c0_28 = arith.constant 0 : index
    %47 = vector.load %arg8[%c0_25, %c0_26, %c0_27, %c0_28] : memref<1x2x1x1024xf32, #tpu.memory_space<vmem>>, vector<1x1x1x1024xf32>
    %48 = vector.shape_cast %47 : vector<1x1x1x1024xf32> to vector<1x1024xf32>
    %49 = vector.shape_cast %46 : vector<1x1024xf32> to vector<1x1x1x1024xf32>
    tpu.vector_store %arg8[%c0_25, %c0_26, %c0_27, %c0_28], %49 {strides = array<i32>} : memref<1x2x1x1024xf32, #tpu.memory_space<vmem>>, vector<1x1x1x1024xf32>,
    %c0_29 = arith.constant 0 : index
    %c1 = arith.constant 1 : index
    %c0_30 = arith.constant 0 : index
    %c0_31 = arith.constant 0 : index
    %50 = vector.load %arg1[%c0_29, %c1, %c0_30, %c0_31] : memref<1x2x3x1024xf32, #tpu.memory_space<vmem>>, vector<1x1x3x1024xf32>
    %51 = vector.shape_cast %50 : vector<1x1x3x1024xf32> to vector<3x1024xf32>
    %52 = vector.extract_strided_slice %1 {offsets = [0, 0], sizes = [128, 1], strides = [1, 1]} : vector<128x3xf32> to vector<128x1xf32>
    %53 = vector.extract_strided_slice %51 {offsets = [0, 0], sizes = [1, 1024], strides = [1, 1]} : vector<3x1024xf32> to vector<1x1024xf32>
    %54 = vector.broadcast %52 : vector<128x1xf32> to vector<128x1024xf32>
    %55 = vector.broadcast %53 : vector<1x1024xf32> to vector<128x1024xf32>
    %56 = arith.mulf %54, %55 : vector<128x1024xf32>
    %57 = vector.extract_strided_slice %1 {offsets = [0, 1], sizes = [128, 1], strides = [1, 1]} : vector<128x3xf32> to vector<128x1xf32>
    %58 = vector.extract_strided_slice %51 {offsets = [1, 0], sizes = [1, 1024], strides = [1, 1]} : vector<3x1024xf32> to vector<1x1024xf32>
    %59 = vector.broadcast %57 : vector<128x1xf32> to vector<128x1024xf32>
    %60 = vector.broadcast %58 : vector<1x1024xf32> to vector<128x1024xf32>
    %61 = arith.mulf %59, %60 : vector<128x1024xf32>
    %62 = arith.addf %56, %61 : vector<128x1024xf32>
    %63 = vector.extract_strided_slice %1 {offsets = [0, 2], sizes = [128, 1], strides = [1, 1]} : vector<128x3xf32> to vector<128x1xf32>
    %64 = vector.extract_strided_slice %51 {offsets = [2, 0], sizes = [1, 1024], strides = [1, 1]} : vector<3x1024xf32> to vector<1x1024xf32>
    %65 = vector.broadcast %63 : vector<128x1xf32> to vector<128x1024xf32>
    %66 = vector.broadcast %64 : vector<1x1024xf32> to vector<128x1024xf32>
    %67 = arith.mulf %65, %66 : vector<128x1024xf32>
    %68 = arith.addf %62, %67 : vector<128x1024xf32>
    %c0_32 = arith.constant 0 : index
    %c1_33 = arith.constant 1 : index
    %c0_34 = arith.constant 0 : index
    %c0_35 = arith.constant 0 : index
    %69 = vector.load %arg2[%c0_32, %c1_33, %c0_34, %c0_35] : memref<1x2x128x1xf32, #tpu.memory_space<vmem>>, vector<1x1x128x1xf32>
    %70 = vector.shape_cast %69 : vector<1x1x128x1xf32> to vector<128x1xf32>
    %71 = vector.broadcast %70 : vector<128x1xf32> to vector<128x1024xf32>
    %72 = arith.addf %68, %71 : vector<128x1024xf32>
    %cst_36 = arith.constant 0.000000e+00 : f32
    %73 = vector.broadcast %cst_36 : f32 to vector<128x1024xf32>
    %74 = arith.maximumf %72, %73 : vector<128x1024xf32>
    %75 = arith.truncf %74 : vector<128x1024xf32> to vector<128x1024xbf16>
    %cst_37 = arith.constant dense<0.000000e+00> : vector<128x1024xf32>
    %76 = tpu.matmul %3, %75, %cst_37 {dimension_numbers = #tpu.dot_dimension_numbers<[1], [0], [0], [1], [0, 0, 1, 1], [], []>} : vector<128x128xbf16>, vector<128x1024xbf16>, vector<128x1024xf32> -> vector<128x1024xf32>
    %77 = vector.broadcast %5 : vector<128x1xf32> to vector<128x1024xf32>
    %78 = arith.addf %76, %77 : vector<128x1024xf32>
    %cst_38 = arith.constant 0.000000e+00 : f32
    %79 = vector.broadcast %cst_38 : f32 to vector<128x1024xf32>
    %80 = arith.maximumf %78, %79 : vector<128x1024xf32>
    %81 = vector.broadcast %7 : vector<128x1xf32> to vector<128x1024xf32>
    %82 = arith.mulf %80, %81 : vector<128x1024xf32>
    %cst_39 = arith.constant dense<0.000000e+00> : vector<1024xf32>
    %83 = vector.multi_reduction <add>, %82, %cst_39 [0] : vector<128x1024xf32> to vector<1024xf32>
    %84 = vector.shape_cast %83 : vector<1024xf32> to vector<1x1024xf32>
    %85 = vector.broadcast %9 : vector<1x1xf32> to vector<1x1024xf32>
    %86 = arith.addf %84, %85 : vector<1x1024xf32>
    %c0_40 = arith.constant 0 : index
    %c1_41 = arith.constant 1 : index
    %c0_42 = arith.constant 0 : index
    %c0_43 = arith.constant 0 : index
    %87 = vector.load %arg8[%c0_40, %c1_41, %c0_42, %c0_43] : memref<1x2x1x1024xf32, #tpu.memory_space<vmem>>, vector<1x1x1x1024xf32>
    %88 = vector.shape_cast %87 : vector<1x1x1x1024xf32> to vector<1x1024xf32>
    %89 = vector.shape_cast %86 : vector<1x1024xf32> to vector<1x1x1x1024xf32>
    tpu.vector_store %arg8[%c0_40, %c1_41, %c0_42, %c0_43], %89 {strides = array<i32>} : memref<1x2x1x1024xf32, #tpu.memory_space<vmem>>, vector<1x1x1x1024xf32>,
    return
  }
  func.func @transform_0(%arg0: i32) -> (i32, i32, i32, i32) {
    %c0_i32 = arith.constant 0 : i32
    %c0_i32_0 = arith.constant 0 : i32
    %c0_i32_1 = arith.constant 0 : i32
    %c0_i32_2 = arith.constant 0 : i32
    return %arg0, %c0_i32, %c0_i32_0, %c0_i32_1 : i32, i32, i32, i32
  }
  func.func @transform_1(%arg0: i32) -> (i32, i32, i32, i32) {
    %c0_i32 = arith.constant 0 : i32
    %c0_i32_0 = arith.constant 0 : i32
    %c0_i32_1 = arith.constant 0 : i32
    %c0_i32_2 = arith.constant 0 : i32
    return %arg0, %c0_i32, %c0_i32_0, %c0_i32_1 : i32, i32, i32, i32
  }
  func.func @transform_2(%arg0: i32) -> (i32, i32, i32) {
    %c0_i32 = arith.constant 0 : i32
    %c0_i32_0 = arith.constant 0 : i32
    %c0_i32_1 = arith.constant 0 : i32
    return %arg0, %c0_i32, %c0_i32_0 : i32, i32, i32
  }
  func.func @transform_3(%arg0: i32) -> (i32, i32, i32) {
    %c0_i32 = arith.constant 0 : i32
    %c0_i32_0 = arith.constant 0 : i32
    %c0_i32_1 = arith.constant 0 : i32
    return %arg0, %c0_i32, %c0_i32_0 : i32, i32, i32
  }
  func.func @transform_4(%arg0: i32) -> (i32, i32, i32) {
    %c0_i32 = arith.constant 0 : i32
    %c0_i32_0 = arith.constant 0 : i32
    %c0_i32_1 = arith.constant 0 : i32
    return %arg0, %c0_i32, %c0_i32_0 : i32, i32, i32
  }
  func.func @transform_5(%arg0: i32) -> (i32, i32, i32) {
    %c0_i32 = arith.constant 0 : i32
    %c0_i32_0 = arith.constant 0 : i32
    %c0_i32_1 = arith.constant 0 : i32
    return %arg0, %c0_i32, %c0_i32_0 : i32, i32, i32
  }
  func.func @transform_6(%arg0: i32) -> (i32, i32, i32) {
    %c0_i32 = arith.constant 0 : i32
    %c0_i32_0 = arith.constant 0 : i32
    %c0_i32_1 = arith.constant 0 : i32
    return %arg0, %c0_i32, %c0_i32_0 : i32, i32, i32
  }
  func.func @transform_7(%arg0: i32) -> (i32, i32, i32, i32) {
    %c0_i32 = arith.constant 0 : i32
    %c0_i32_0 = arith.constant 0 : i32
    %c0_i32_1 = arith.constant 0 : i32
    %c0_i32_2 = arith.constant 0 : i32
    return %arg0, %c0_i32, %c0_i32_0, %c0_i32_1 : i32, i32, i32, i32
  }
}

</mosaic_0001>

<llo_original>
// kernel: tpu_custom_call.1
$region0: #{tpu_custom_call.1}
  #allocation0 [shape = 'u32[]', space=smem, size = 0x4, offset = 0x4, fixed_abs, tag = 'smem constant byte address 0x4 - core index']
  #allocation1 [shape = 'u32[72,128]{1,0:T(1,128)}', space=vmem, size = 0x9000, scoped, tag = 'internal scratch']
  %s0 = inlined_call_operand.vmem [shape: f32[3,2,3,1024], index: 0, kind: input, shape index: {}]
  %s1 = inlined_call_operand.vmem [shape: f32[3,2,128,1], index: 1, kind: input, shape index: {}]
  %s2 = inlined_call_operand.vmem [shape: f32[3,128,3], index: 2, kind: input, shape index: {}]
  %s3 = inlined_call_operand.vmem [shape: bf16[3,128,128], index: 3, kind: input, shape index: {}]
  %s4 = inlined_call_operand.vmem [shape: f32[3,128,1], index: 4, kind: input, shape index: {}]
  %s5 = inlined_call_operand.vmem [shape: f32[3,128,1], index: 5, kind: input, shape index: {}]
  %s6 = inlined_call_operand.vmem [shape: f32[3,1,1], index: 6, kind: input, shape index: {}]
  %s7 = inlined_call_operand.hbm [shape: f32[3,2,1,1024], index: 7, kind: output, shape index: {}]
  %s8 = sld [smem:[#allocation0]]
  $region61: #{tpu_custom_call.1} parent=0
    _
  %s10 = ssub.s32 1, %s8
  %s11 = scalar_select 0, %s10, %s8
  $region1: #{tpu_custom_call.1} parent=0
    #allocation2 [shape = 'u8[16384]{0}', space=vmem, size = 0x4000, scoped, tag = 'output window, operand 0']
    #allocation3 [shape = 's32[2]{0}', space=sflag, size = 0x8, scoped, tag = 'scoped memory for tpu_custom_call.1']
    %12 = vsyncpa [#allocation3], 0
    %s13 = scalar_lea.sflag [#allocation3], 1
    %14 = vsyncpa %s13, 0
    loop: start=0, step=1, limit=5
    $region2: #{tpu_custom_call.1} parent=1 // loop_pre_header
      _
    $region3: #{tpu_custom_call.1} parent=1 // loop_header
      %s16 = sphi 0, %s20
      %p17 = scmp.ge.s32.totalorder %s16, 5
      %s26 = sphi 0, %s28
      %s29 = sphi 0, %s26
      %s30 = sphi 0, %s29
      %s46 = sphi 0, %s30
      %s52 = sphi 0, %s54
      %s55 = sphi 0, %s52
      %s56 = sphi 0, %s55
      %s72 = sphi 0, %s56
      %s78 = sphi 0, %s80
      %s81 = sphi 0, %s78
      %s82 = sphi 0, %s81
      %s98 = sphi 0, %s82
      %s104 = sphi 0, %s106
      %s107 = sphi 0, %s104
      %s108 = sphi 0, %s107
      %s124 = sphi 0, %s108
      %s130 = sphi 0, %s132
      %s133 = sphi 0, %s130
      %s134 = sphi 0, %s133
      %s150 = sphi 0, %s134
      %s156 = sphi 0, %s158
      %s159 = sphi 0, %s156
      %s160 = sphi 0, %s159
      %s176 = sphi 0, %s160
      %s182 = sphi 0, %s184
      %s185 = sphi 0, %s182
      %s186 = sphi 0, %s185
      %s202 = sphi 0, %s186
      %s208 = sphi 0, %s210
      %s211 = sphi 0, %s208
      %s212 = sphi 0, %s211
      %s228 = sphi 0, %s212
    $region4: #{tpu_custom_call.1} parent=1 // loop_header_branch
      %19 = sbr.rel (%p17) target = $region8
    $region5: #{tpu_custom_call.1} parent=1 // loop_body
      %s21 = ssub.s32 %s16, 1
      %s22 = ssub.s32 %s16, 2
      %s23 = sadd.s32 %s16, 1
      %s24 = ssub.s32 %s16, %s23
      %p25 = scmp.eq.s32.totalorder %s24, 0
      %s27 = sadd.s32 %s26, 1
      %s28 = scalar_select %p25, %s26, %s27
      %p31 = pneg %p25
      %p32 = scmp.eq.s32.totalorder %s16, 2
      %p33 = por %p31, %p32
      %p34 = scmp.ne.s32.totalorder %s26, %s29
      %p35 = scmp.eq.s32.totalorder %s16, 0
      %p36 = por %p34, %p35
      %p37 = scmp.ne.s32.totalorder %s26, %s29
      %p38 = scmp.eq.s32.totalorder %s21, 2
      %p39 = por %p37, %p38
      %p40 = scmp.ne.s32.totalorder %s29, %s30
      %p41 = scmp.eq.s32.totalorder %s21, 0
      %p42 = por %p40, %p41
      %p43 = scmp.ne.s32.totalorder %s29, %s30
      %p44 = scmp.eq.s32.totalorder %s22, 2
      %p45 = por %p43, %p44
      %p47 = scmp.ne.s32.totalorder %s30, %s46
      %p48 = scmp.eq.s32.totalorder %s22, 0
      %p49 = por %p47, %p48
      %s50 = ssub.s32 %s16, %s23
      %p51 = scmp.eq.s32.totalorder %s50, 0
      %s53 = sadd.s32 %s52, 1
      %s54 = scalar_select %p51, %s52, %s53
      %p57 = pneg %p51
      %p58 = scmp.eq.s32.totalorder %s16, 2
      %p59 = por %p57, %p58
      %p60 = scmp.ne.s32.totalorder %s52, %s55
      %p61 = scmp.eq.s32.totalorder %s16, 0
      %p62 = por %p60, %p61
      %p63 = scmp.ne.s32.totalorder %s52, %s55
      %p64 = scmp.eq.s32.totalorder %s21, 2
      %p65 = por %p63, %p64
      %p66 = scmp.ne.s32.totalorder %s55, %s56
      %p67 = scmp.eq.s32.totalorder %s21, 0
      %p68 = por %p66, %p67
      %p69 = scmp.ne.s32.totalorder %s55, %s56
      %p70 = scmp.eq.s32.totalorder %s22, 2
      %p71 = por %p69, %p70
      %p73 = scmp.ne.s32.totalorder %s56, %s72
      %p74 = scmp.eq.s32.totalorder %s22, 0
      %p75 = por %p73, %p74
      %s76 = ssub.s32 %s16, %s23
      %p77 = scmp.eq.s32.totalorder %s76, 0
      %s79 = sadd.s32 %s78, 1
      %s80 = scalar_select %p77, %s78, %s79
      %p83 = pneg %p77
      %p84 = scmp.eq.s32.totalorder %s16, 2
      %p85 = por %p83, %p84
      %p86 = scmp.ne.s32.totalorder %s78, %s81
      %p87 = scmp.eq.s32.totalorder %s16, 0
      %p88 = por %p86, %p87
      %p89 = scmp.ne.s32.totalorder %s78, %s81
      %p90 = scmp.eq.s32.totalorder %s21, 2
      %p91 = por %p89, %p90
      %p92 = scmp.ne.s32.totalorder %s81, %s82
      %p93 = scmp.eq.s32.totalorder %s21, 0
      %p94 = por %p92, %p93
      %p95 = scmp.ne.s32.totalorder %s81, %s82
      %p96 = scmp.eq.s32.totalorder %s22, 2
      %p97 = por %p95, %p96
      %p99 = scmp.ne.s32.totalorder %s82, %s98
      %p100 = scmp.eq.s32.totalorder %s22, 0
      %p101 = por %p99, %p100
      %s102 = ssub.s32 %s16, %s23
      %p103 = scmp.eq.s32.totalorder %s102, 0
      %s105 = sadd.s32 %s104, 1
      %s106 = scalar_select %p103, %s104, %s105
      %p109 = pneg %p103
      %p110 = scmp.eq.s32.totalorder %s16, 2
      %p111 = por %p109, %p110
      %p112 = scmp.ne.s32.totalorder %s104, %s107
      %p113 = scmp.eq.s32.totalorder %s16, 0
      %p114 = por %p112, %p113
      %p115 = scmp.ne.s32.totalorder %s104, %s107
      %p116 = scmp.eq.s32.totalorder %s21, 2
      %p117 = por %p115, %p116
      %p118 = scmp.ne.s32.totalorder %s107, %s108
      %p119 = scmp.eq.s32.totalorder %s21, 0
      %p120 = por %p118, %p119
      %p121 = scmp.ne.s32.totalorder %s107, %s108
      %p122 = scmp.eq.s32.totalorder %s22, 2
      %p123 = por %p121, %p122
      %p125 = scmp.ne.s32.totalorder %s108, %s124
      %p126 = scmp.eq.s32.totalorder %s22, 0
      %p127 = por %p125, %p126
      %s128 = ssub.s32 %s16, %s23
      %p129 = scmp.eq.s32.totalorder %s128, 0
      %s131 = sadd.s32 %s130, 1
      %s132 = scalar_select %p129, %s130, %s131
      %p135 = pneg %p129
      %p136 = scmp.eq.s32.totalorder %s16, 2
      %p137 = por %p135, %p136
      %p138 = scmp.ne.s32.totalorder %s130, %s133
      %p139 = scmp.eq.s32.totalorder %s16, 0
      %p140 = por %p138, %p139
      %p141 = scmp.ne.s32.totalorder %s130, %s133
      %p142 = scmp.eq.s32.totalorder %s21, 2
      %p143 = por %p141, %p142
      %p144 = scmp.ne.s32.totalorder %s133, %s134
      %p145 = scmp.eq.s32.totalorder %s21, 0
      %p146 = por %p144, %p145
      %p147 = scmp.ne.s32.totalorder %s133, %s134
      %p148 = scmp.eq.s32.totalorder %s22, 2
      %p149 = por %p147, %p148
      %p151 = scmp.ne.s32.totalorder %s134, %s150
      %p152 = scmp.eq.s32.totalorder %s22, 0
      %p153 = por %p151, %p152
      %s154 = ssub.s32 %s16, %s23
      %p155 = scmp.eq.s32.totalorder %s154, 0
      %s157 = sadd.s32 %s156, 1
      %s158 = scalar_select %p155, %s156, %s157
      %p161 = pneg %p155
      %p162 = scmp.eq.s32.totalorder %s16, 2
      %p163 = por %p161, %p162
      %p164 = scmp.ne.s32.totalorder %s156, %s159
      %p165 = scmp.eq.s32.totalorder %s16, 0
      %p166 = por %p164, %p165
      %p167 = scmp.ne.s32.totalorder %s156, %s159
      %p168 = scmp.eq.s32.totalorder %s21, 2
      %p169 = por %p167, %p168
      %p170 = scmp.ne.s32.totalorder %s159, %s160
      %p171 = scmp.eq.s32.totalorder %s21, 0
      %p172 = por %p170, %p171
      %p173 = scmp.ne.s32.totalorder %s159, %s160
      %p174 = scmp.eq.s32.totalorder %s22, 2
      %p175 = por %p173, %p174
      %p177 = scmp.ne.s32.totalorder %s160, %s176
      %p178 = scmp.eq.s32.totalorder %s22, 0
      %p179 = por %p177, %p178
      %s180 = ssub.s32 %s16, %s23
      %p181 = scmp.eq.s32.totalorder %s180, 0
      %s183 = sadd.s32 %s182, 1
      %s184 = scalar_select %p181, %s182, %s183
      %p187 = pneg %p181
      %p188 = scmp.eq.s32.totalorder %s16, 2
      %p189 = por %p187, %p188
      %p190 = scmp.ne.s32.totalorder %s182, %s185
      %p191 = scmp.eq.s32.totalorder %s16, 0
      %p192 = por %p190, %p191
      %p193 = scmp.ne.s32.totalorder %s182, %s185
      %p194 = scmp.eq.s32.totalorder %s21, 2
      %p195 = por %p193, %p194
      %p196 = scmp.ne.s32.totalorder %s185, %s186
      %p197 = scmp.eq.s32.totalorder %s21, 0
      %p198 = por %p196, %p197
      %p199 = scmp.ne.s32.totalorder %s185, %s186
      %p200 = scmp.eq.s32.totalorder %s22, 2
      %p201 = por %p199, %p200
      %p203 = scmp.ne.s32.totalorder %s186, %s202
      %p204 = scmp.eq.s32.totalorder %s22, 0
      %p205 = por %p203, %p204
      %s206 = ssub.s32 %s16, %s23
      %p207 = scmp.eq.s32.totalorder %s206, 0
      %s209 = sadd.s32 %s208, 1
      %s210 = scalar_select %p207, %s208, %s209
      %p213 = pneg %p207
      %p214 = scmp.eq.s32.totalorder %s16, 2
      %p215 = por %p213, %p214
      %p216 = scmp.ne.s32.totalorder %s208, %s211
      %p217 = scmp.eq.s32.totalorder %s16, 0
      %p218 = por %p216, %p217
      %p219 = scmp.ne.s32.totalorder %s208, %s211
      %p220 = scmp.eq.s32.totalorder %s21, 2
      %p221 = por %p219, %p220
      %p222 = scmp.ne.s32.totalorder %s211, %s212
      %p223 = scmp.eq.s32.totalorder %s21, 0
      %p224 = por %p222, %p223
      %p225 = scmp.ne.s32.totalorder %s211, %s212
      %p226 = scmp.eq.s32.totalorder %s22, 2
      %p227 = por %p225, %p226
      %p229 = scmp.ne.s32.totalorder %s212, %s228
      %p230 = scmp.eq.s32.totalorder %s22, 0
      %p231 = por %p229, %p230
      %p232 = scmp.le.s32.totalorder 1, %s16
      %p233 = scmp.lt.s32.totalorder %s16, 4
      %p234 = pnand %p232, %p233
      %p235 = pneg %p234
      // Predicated region
      $region9: #{tpu_custom_call.1} parent=5 // pred_check
        _
      $region10: #{tpu_custom_call.1} parent=5 // pred_check_branch
        %237 = sbr.rel (%p234) target = $region12
      $region11: #{tpu_custom_call.1} parent=5 // pred_region
        %s238 = ssub.s32 %s16, 1
      $region12: #{tpu_custom_call.1} parent=5 // pred_fallthru
        _
      %p239 = scmp.lt.s32.totalorder %s16, 3
      // Predicated region
      $region13: #{tpu_custom_call.1} parent=5 // pred_check
        %p240 = pneg %p239
      $region14: #{tpu_custom_call.1} parent=5 // pred_check_branch
        %242 = sbr.rel (%p240) target = $region16
      $region15: #{tpu_custom_call.1} parent=5 // pred_region
        // Predicated region
        $region17: #{tpu_custom_call.1} parent=15 // pred_check
          %p243 = pneg %p36
        $region18: #{tpu_custom_call.1} parent=15 // pred_check_branch
          %245 = sbr.rel (%p243) target = $region20
        $region19: #{tpu_custom_call.1} parent=15 // pred_region
          %p246 = scmp.lt.s32.totalorder %s16, 2
          %s247 = scalar_select %p246, %s16, 2
          %s248 = smul.addr %s247, 16
          %s249 = smul.addr %s248, 4
          %s250 = scalar_lea.vmem %s0, %s249
        $region20: #{tpu_custom_call.1} parent=15 // pred_fallthru
          _
        // Predicated region
        $region21: #{tpu_custom_call.1} parent=15 // pred_check
          %p251 = pneg %p62
        $region22: #{tpu_custom_call.1} parent=15 // pred_check_branch
          %253 = sbr.rel (%p251) target = $region24
        $region23: #{tpu_custom_call.1} parent=15 // pred_region
          %p254 = scmp.lt.s32.totalorder %s16, 2
          %s255 = scalar_select %p254, %s16, 2
          %s256 = smul.addr %s255, 32
          %s257 = smul.addr %s256, 8
          %s258 = scalar_lea.vmem %s1, %s257
        $region24: #{tpu_custom_call.1} parent=15 // pred_fallthru
          _
        // Predicated region
        $region25: #{tpu_custom_call.1} parent=15 // pred_check
          %p259 = pneg %p88
        $region26: #{tpu_custom_call.1} parent=15 // pred_check_branch
          %261 = sbr.rel (%p259) target = $region28
        $region27: #{tpu_custom_call.1} parent=15 // pred_region
          %p262 = scmp.lt.s32.totalorder %s16, 2
          %s263 = scalar_select %p262, %s16, 2
          %s264 = smul.addr %s263, 16
          %s265 = smul.addr %s264, 8
          %s266 = scalar_lea.vmem %s2, %s265
        $region28: #{tpu_custom_call.1} parent=15 // pred_fallthru
          _
        // Predicated region
        $region29: #{tpu_custom_call.1} parent=15 // pred_check
          %p267 = pneg %p114
        $region30: #{tpu_custom_call.1} parent=15 // pred_check_branch
          %269 = sbr.rel (%p267) target = $region32
        $region31: #{tpu_custom_call.1} parent=15 // pred_region
          %p270 = scmp.lt.s32.totalorder %s16, 2
          %s271 = scalar_select %p270, %s16, 2
          %s272 = smul.addr %s271, 16
          %s273 = smul.addr %s272, 4
          %s274 = scalar_lea.vmem %s3, %s273
        $region32: #{tpu_custom_call.1} parent=15 // pred_fallthru
          _
        // Predicated region
        $region33: #{tpu_custom_call.1} parent=15 // pred_check
          %p275 = pneg %p140
        $region34: #{tpu_custom_call.1} parent=15 // pred_check_branch
          %277 = sbr.rel (%p275) target = $region36
        $region35: #{tpu_custom_call.1} parent=15 // pred_region
          %p278 = scmp.lt.s32.totalorder %s16, 2
          %s279 = scalar_select %p278, %s16, 2
          %s280 = smul.addr %s279, 16
          %s281 = smul.addr %s280, 8
          %s282 = scalar_lea.vmem %s4, %s281
        $region36: #{tpu_custom_call.1} parent=15 // pred_fallthru
          _
        // Predicated region
        $region37: #{tpu_custom_call.1} parent=15 // pred_check
          %p283 = pneg %p166
        $region38: #{tpu_custom_call.1} parent=15 // pred_check_branch
          %285 = sbr.rel (%p283) target = $region40
        $region39: #{tpu_custom_call.1} parent=15 // pred_region
          %p286 = scmp.lt.s32.totalorder %s16, 2
          %s287 = scalar_select %p286, %s16, 2
          %s288 = smul.addr %s287, 16
          %s289 = smul.addr %s288, 8
          %s290 = scalar_lea.vmem %s5, %s289
        $region40: #{tpu_custom_call.1} parent=15 // pred_fallthru
          _
        // Predicated region
        $region41: #{tpu_custom_call.1} parent=15 // pred_check
          %p291 = pneg %p192
        $region42: #{tpu_custom_call.1} parent=15 // pred_check_branch
          %293 = sbr.rel (%p291) target = $region44
        $region43: #{tpu_custom_call.1} parent=15 // pred_region
          %p294 = scmp.lt.s32.totalorder %s16, 2
          %s295 = scalar_select %p294, %s16, 2
          %s296 = scalar_lea.vmem %s6, %s295
        $region44: #{tpu_custom_call.1} parent=15 // pred_fallthru
          _
      $region16: #{tpu_custom_call.1} parent=5 // pred_fallthru
        _
      %p297 = scmp.le.s32.totalorder 1, %s16
      %p298 = scmp.lt.s32.totalorder %s16, 4
      %p299 = pnand %p297, %p298
      %p300 = pneg %p299
      // Predicated region
      $region45: #{tpu_custom_call.1} parent=5 // pred_check
        _
      $region46: #{tpu_custom_call.1} parent=5 // pred_check_branch
        %302 = sbr.rel (%p299) target = $region48
      $region47: #{tpu_custom_call.1} parent=5 // pred_region
        %s303 = ssub.s32 %s16, 1
        %p304 = scmp.lt.s32.totalorder %s21, 2
        %s305 = scalar_select %p304, %s21, 2
        %s306 = smul.addr %s305, 16
        %s307 = smul.addr %s306, 4
        %s308 = scalar_lea.vmem %s0, %s307
        %p309 = pneg %p42
        %p310 = pneg %p39
        %p311 = scmp.lt.s32.totalorder %s21, 2
        %s312 = scalar_select %p311, %s21, 2
        %s313 = smul.addr %s312, 32
        %s314 = smul.addr %s313, 8
        %s315 = scalar_lea.vmem %s1, %s314
        %p316 = pneg %p68
        %p317 = pneg %p65
        %p318 = scmp.lt.s32.totalorder %s21, 2
        %s319 = scalar_select %p318, %s21, 2
        %s320 = smul.addr %s319, 16
        %s321 = smul.addr %s320, 8
        %s322 = scalar_lea.vmem %s2, %s321
        %p323 = pneg %p94
        %p324 = pneg %p91
        %p325 = scmp.lt.s32.totalorder %s21, 2
        %s326 = scalar_select %p325, %s21, 2
        %s327 = smul.addr %s326, 16
        %s328 = smul.addr %s327, 4
        %s329 = scalar_lea.vmem %s3, %s328
        %p330 = pneg %p120
        %p331 = pneg %p117
        %p332 = scmp.lt.s32.totalorder %s21, 2
        %s333 = scalar_select %p332, %s21, 2
        %s334 = smul.addr %s333, 16
        %s335 = smul.addr %s334, 8
        %s336 = scalar_lea.vmem %s4, %s335
        %p337 = pneg %p146
        %p338 = pneg %p143
        %p339 = scmp.lt.s32.totalorder %s21, 2
        %s340 = scalar_select %p339, %s21, 2
        %s341 = smul.addr %s340, 16
        %s342 = smul.addr %s341, 8
        %s343 = scalar_lea.vmem %s5, %s342
        %p344 = pneg %p172
        %p345 = pneg %p169
        %p346 = scmp.lt.s32.totalorder %s21, 2
        %s347 = scalar_select %p346, %s21, 2
        %s348 = scalar_lea.vmem %s6, %s347
        %p349 = pneg %p198
        %p350 = pneg %p195
        %p351 = pneg %p224
        %p352 = pneg %p221
        %s353 = sand.u32 %s211, 1
        %s354 = scalar_lea.sflag [#allocation3], %s353
        %s355 = sand.u32 %s211, 1
        %s356 = smul.addr %s355, 16
        %s357 = scalar_lea.vmem [#allocation2], %s356
        %p358 = scmp.lt.s32.totalorder %s21, 2
        %s359 = scalar_select %p358, %s21, 2
        %s360 = smul.addr %s359, 16
        %s361 = smul.addr %s360, 4
        %s362 = scalar_lea.vmem %s0, %s361
        %p363 = scmp.lt.s32.totalorder %s21, 2
        %s364 = scalar_select %p363, %s21, 2
        %s365 = smul.addr %s364, 32
        %s366 = smul.addr %s365, 8
        %s367 = scalar_lea.vmem %s1, %s366
        %p368 = scmp.lt.s32.totalorder %s21, 2
        %s369 = scalar_select %p368, %s21, 2
        %s370 = smul.addr %s369, 16
        %s371 = smul.addr %s370, 8
        %s372 = scalar_lea.vmem %s2, %s371
        %p373 = scmp.lt.s32.totalorder %s21, 2
        %s374 = scalar_select %p373, %s21, 2
        %s375 = smul.addr %s374, 16
        %s376 = smul.addr %s375, 4
        %s377 = scalar_lea.vmem %s3, %s376
        %p378 = scmp.lt.s32.totalorder %s21, 2
        %s379 = scalar_select %p378, %s21, 2
        %s380 = smul.addr %s379, 16
        %s381 = smul.addr %s380, 8
        %s382 = scalar_lea.vmem %s4, %s381
        %p383 = scmp.lt.s32.totalorder %s21, 2
        %s384 = scalar_select %p383, %s21, 2
        %s385 = smul.addr %s384, 16
        %s386 = smul.addr %s385, 8
        %s387 = scalar_lea.vmem %s5, %s386
        %p388 = scmp.lt.s32.totalorder %s21, 2
        %s389 = scalar_select %p388, %s21, 2
        %s390 = scalar_lea.vmem %s6, %s389
        %v391 = vld [vmem:[%s372] sm:$0xff]
        %v392 = vld [vmem:[%s372 + $0x8] sm:$0xff]
        %v393 = vld [vmem:[%s372 + $0x10] sm:$0xff]
        %v394 = vld [vmem:[%s372 + $0x18] sm:$0xff]
        %v395 = vld [vmem:[%s372 + $0x20] sm:$0xff]
        %v396 = vld [vmem:[%s372 + $0x28] sm:$0xff]
        %v397 = vld [vmem:[%s372 + $0x30] sm:$0xff]
        %v398 = vld [vmem:[%s372 + $0x38] sm:$0xff]
        %v399 = vld [vmem:[%s372 + $0x40] sm:$0xff]
        %v400 = vld [vmem:[%s372 + $0x48] sm:$0xff]
        %v401 = vld [vmem:[%s372 + $0x50] sm:$0xff]
        %v402 = vld [vmem:[%s372 + $0x58] sm:$0xff]
        %v403 = vld [vmem:[%s372 + $0x60] sm:$0xff]
        %v404 = vld [vmem:[%s372 + $0x68] sm:$0xff]
        %v405 = vld [vmem:[%s372 + $0x70] sm:$0xff]
        %v406 = vld [vmem:[%s372 + $0x78] sm:$0xff]
        %v407 = vld [vmem:[%s377] sm:$0xf]
        %v408 = vld [vmem:[%s377 + $0x4] sm:$0xf]
        %v409 = vld [vmem:[%s377 + $0x8] sm:$0xf]
        %v410 = vld [vmem:[%s377 + $0xc] sm:$0xf]
        %v411 = vld [vmem:[%s377 + $0x10] sm:$0xf]
        %v412 = vld [vmem:[%s377 + $0x14] sm:$0xf]
        %v413 = vld [vmem:[%s377 + $0x18] sm:$0xf]
        %v414 = vld [vmem:[%s377 + $0x1c] sm:$0xf]
        %v415 = vld [vmem:[%s377 + $0x20] sm:$0xf]
        %v416 = vld [vmem:[%s377 + $0x24] sm:$0xf]
        %v417 = vld [vmem:[%s377 + $0x28] sm:$0xf]
        %v418 = vld [vmem:[%s377 + $0x2c] sm:$0xf]
        %v419 = vld [vmem:[%s377 + $0x30] sm:$0xf]
        %v420 = vld [vmem:[%s377 + $0x34] sm:$0xf]
        %v421 = vld [vmem:[%s377 + $0x38] sm:$0xf]
        %v422 = vld [vmem:[%s377 + $0x3c] sm:$0xf]
        %v423 = vld [vmem:[%s382] sm:$0xff]
        %v424 = vld [vmem:[%s382 + $0x8] sm:$0xff]
        %v425 = vld [vmem:[%s382 + $0x10] sm:$0xff]
        %v426 = vld [vmem:[%s382 + $0x18] sm:$0xff]
        %v427 = vld [vmem:[%s382 + $0x20] sm:$0xff]
        %v428 = vld [vmem:[%s382 + $0x28] sm:$0xff]
        %v429 = vld [vmem:[%s382 + $0x30] sm:$0xff]
        %v430 = vld [vmem:[%s382 + $0x38] sm:$0xff]
        %v431 = vld [vmem:[%s382 + $0x40] sm:$0xff]
        %v432 = vld [vmem:[%s382 + $0x48] sm:$0xff]
        %v433 = vld [vmem:[%s382 + $0x50] sm:$0xff]
        %v434 = vld [vmem:[%s382 + $0x58] sm:$0xff]
        %v435 = vld [vmem:[%s382 + $0x60] sm:$0xff]
        %v436 = vld [vmem:[%s382 + $0x68] sm:$0xff]
        %v437 = vld [vmem:[%s382 + $0x70] sm:$0xff]
        %v438 = vld [vmem:[%s382 + $0x78] sm:$0xff]
        %v439 = vld [vmem:[%s387] sm:$0xff]
        %v440 = vld [vmem:[%s387 + $0x8] sm:$0xff]
        %v441 = vld [vmem:[%s387 + $0x10] sm:$0xff]
        %v442 = vld [vmem:[%s387 + $0x18] sm:$0xff]
        %v443 = vld [vmem:[%s387 + $0x20] sm:$0xff]
        %v444 = vld [vmem:[%s387 + $0x28] sm:$0xff]
        %v445 = vld [vmem:[%s387 + $0x30] sm:$0xff]
        %v446 = vld [vmem:[%s387 + $0x38] sm:$0xff]
        %v447 = vld [vmem:[%s387 + $0x40] sm:$0xff]
        %v448 = vld [vmem:[%s387 + $0x48] sm:$0xff]
        %v449 = vld [vmem:[%s387 + $0x50] sm:$0xff]
        %v450 = vld [vmem:[%s387 + $0x58] sm:$0xff]
        %v451 = vld [vmem:[%s387 + $0x60] sm:$0xff]
        %v452 = vld [vmem:[%s387 + $0x68] sm:$0xff]
        %v453 = vld [vmem:[%s387 + $0x70] sm:$0xff]
        %v454 = vld [vmem:[%s387 + $0x78] sm:$0xff]
        %v455 = vld [vmem:[%s390] sm:$0x1]
        %v456 = vld [vmem:[%s362] sm:$0x77]
        %v457 = vld [vmem:[%s362 + $0x8] sm:$0x77]
        %v458 = vld [vmem:[%s362 + $0x10] sm:$0x77]
        %v459 = vld [vmem:[%s362 + $0x18] sm:$0x77]
        %461 = vset.pattern.permute.xlu0 0
        %462 = vperm.xlu0 %461, %v391
        %v463 = vpop.permute.xlu0 %462
        %466 = vset.pattern.permute.xlu0 0
        %467 = vperm.xlu0 %466, %v392
        %v468 = vpop.permute.xlu0 %467
        %471 = vset.pattern.permute.xlu0 0
        %472 = vperm.xlu0 %471, %v393
        %v473 = vpop.permute.xlu0 %472
        %476 = vset.pattern.permute.xlu0 0
        %477 = vperm.xlu0 %476, %v394
        %v478 = vpop.permute.xlu0 %477
        %481 = vset.pattern.permute.xlu0 0
        %482 = vperm.xlu0 %481, %v395
        %v483 = vpop.permute.xlu0 %482
        %486 = vset.pattern.permute.xlu0 0
        %487 = vperm.xlu0 %486, %v396
        %v488 = vpop.permute.xlu0 %487
        %491 = vset.pattern.permute.xlu0 0
        %492 = vperm.xlu0 %491, %v397
        %v493 = vpop.permute.xlu0 %492
        %496 = vset.pattern.permute.xlu0 0
        %497 = vperm.xlu0 %496, %v398
        %v498 = vpop.permute.xlu0 %497
        %501 = vset.pattern.permute.xlu0 0
        %502 = vperm.xlu0 %501, %v399
        %v503 = vpop.permute.xlu0 %502
        %506 = vset.pattern.permute.xlu0 0
        %507 = vperm.xlu0 %506, %v400
        %v508 = vpop.permute.xlu0 %507
        %511 = vset.pattern.permute.xlu0 0
        %512 = vperm.xlu0 %511, %v401
        %v513 = vpop.permute.xlu0 %512
        %516 = vset.pattern.permute.xlu0 0
        %517 = vperm.xlu0 %516, %v402
        %v518 = vpop.permute.xlu0 %517
        %521 = vset.pattern.permute.xlu0 0
        %522 = vperm.xlu0 %521, %v403
        %v523 = vpop.permute.xlu0 %522
        %526 = vset.pattern.permute.xlu0 0
        %527 = vperm.xlu0 %526, %v404
        %v528 = vpop.permute.xlu0 %527
        %531 = vset.pattern.permute.xlu0 0
        %532 = vperm.xlu0 %531, %v405
        %v533 = vpop.permute.xlu0 %532
        %536 = vset.pattern.permute.xlu0 0
        %537 = vperm.xlu0 %536, %v406
        %v538 = vpop.permute.xlu0 %537
        %v544 = vperm.slane %v456, 0
        %v545 = vperm.slane %v456, 4
        %v546 = vperm.slane %v457, 0
        %v547 = vperm.slane %v457, 4
        %v548 = vperm.slane %v458, 0
        %v549 = vperm.slane %v458, 4
        %v550 = vperm.slane %v459, 0
        %v551 = vperm.slane %v459, 4
        %v560 = vperm.slane %v544, 0
        %v561 = vperm.slane %v545, 0
        %v562 = vperm.slane %v546, 0
        %v563 = vperm.slane %v547, 0
        %v564 = vperm.slane %v548, 0
        %v565 = vperm.slane %v549, 0
        %v566 = vperm.slane %v550, 0
        %v567 = vperm.slane %v551, 0
        %v568 = vmul.f32 %v463, %v560
        %v569 = vmul.f32 %v463, %v561
        %v570 = vmul.f32 %v463, %v562
        %v571 = vmul.f32 %v463, %v563
        %v572 = vmul.f32 %v463, %v564
        %v573 = vmul.f32 %v463, %v565
        %v574 = vmul.f32 %v463, %v566
        %v575 = vmul.f32 %v463, %v567
        %v576 = vmul.f32 %v468, %v560
        %v577 = vmul.f32 %v468, %v561
        %v578 = vmul.f32 %v468, %v562
        %v579 = vmul.f32 %v468, %v563
        %v580 = vmul.f32 %v468, %v564
        %v581 = vmul.f32 %v468, %v565
        %v582 = vmul.f32 %v468, %v566
        %v583 = vmul.f32 %v468, %v567
        %v584 = vmul.f32 %v473, %v560
        %v585 = vmul.f32 %v473, %v561
        %v586 = vmul.f32 %v473, %v562
        %v587 = vmul.f32 %v473, %v563
        %v588 = vmul.f32 %v473, %v564
        %v589 = vmul.f32 %v473, %v565
        %v590 = vmul.f32 %v473, %v566
        %v591 = vmul.f32 %v473, %v567
        %v592 = vmul.f32 %v478, %v560
        %v593 = vmul.f32 %v478, %v561
        %v594 = vmul.f32 %v478, %v562
        %v595 = vmul.f32 %v478, %v563
        %v596 = vmul.f32 %v478, %v564
        %v597 = vmul.f32 %v478, %v565
        %v598 = vmul.f32 %v478, %v566
        %v599 = vmul.f32 %v478, %v567
        %v600 = vmul.f32 %v483, %v560
        %v601 = vmul.f32 %v483, %v561
        %v602 = vmul.f32 %v483, %v562
        %v603 = vmul.f32 %v483, %v563
        %v604 = vmul.f32 %v483, %v564
        %v605 = vmul.f32 %v483, %v565
        %v606 = vmul.f32 %v483, %v566
        %v607 = vmul.f32 %v483, %v567
        %v608 = vmul.f32 %v488, %v560
        %v609 = vmul.f32 %v488, %v561
        %v610 = vmul.f32 %v488, %v562
        %v611 = vmul.f32 %v488, %v563
        %v612 = vmul.f32 %v488, %v564
        %v613 = vmul.f32 %v488, %v565
        %v614 = vmul.f32 %v488, %v566
        %v615 = vmul.f32 %v488, %v567
        %v616 = vmul.f32 %v493, %v560
        %v617 = vmul.f32 %v493, %v561
        %v618 = vmul.f32 %v493, %v562
        %v619 = vmul.f32 %v493, %v563
        %v620 = vmul.f32 %v493, %v564
        %v621 = vmul.f32 %v493, %v565
        %v622 = vmul.f32 %v493, %v566
        %v623 = vmul.f32 %v493, %v567
        %v624 = vmul.f32 %v498, %v560
        %v625 = vmul.f32 %v498, %v561
        %v626 = vmul.f32 %v498, %v562
        %v627 = vmul.f32 %v498, %v563
        %v628 = vmul.f32 %v498, %v564
        %v629 = vmul.f32 %v498, %v565
        %v630 = vmul.f32 %v498, %v566
        %v631 = vmul.f32 %v498, %v567
        %v632 = vmul.f32 %v503, %v560
        %v633 = vmul.f32 %v503, %v561
        %v634 = vmul.f32 %v503, %v562
        %v635 = vmul.f32 %v503, %v563
        %v636 = vmul.f32 %v503, %v564
        %v637 = vmul.f32 %v503, %v565
        %v638 = vmul.f32 %v503, %v566
        %v639 = vmul.f32 %v503, %v567
        %v640 = vmul.f32 %v508, %v560
        %v641 = vmul.f32 %v508, %v561
        %v642 = vmul.f32 %v508, %v562
        %v643 = vmul.f32 %v508, %v563
        %v644 = vmul.f32 %v508, %v564
        %v645 = vmul.f32 %v508, %v565
        %v646 = vmul.f32 %v508, %v566
        %v647 = vmul.f32 %v508, %v567
        %v648 = vmul.f32 %v513, %v560
        %v649 = vmul.f32 %v513, %v561
        %v650 = vmul.f32 %v513, %v562
        %v651 = vmul.f32 %v513, %v563
        %v652 = vmul.f32 %v513, %v564
        %v653 = vmul.f32 %v513, %v565
        %v654 = vmul.f32 %v513, %v566
        %v655 = vmul.f32 %v513, %v567
        %v656 = vmul.f32 %v518, %v560
        %v657 = vmul.f32 %v518, %v561
        %v658 = vmul.f32 %v518, %v562
        %v659 = vmul.f32 %v518, %v563
        %v660 = vmul.f32 %v518, %v564
        %v661 = vmul.f32 %v518, %v565
        %v662 = vmul.f32 %v518, %v566
        %v663 = vmul.f32 %v518, %v567
        %v664 = vmul.f32 %v523, %v560
        %v665 = vmul.f32 %v523, %v561
        %v666 = vmul.f32 %v523, %v562
        %v667 = vmul.f32 %v523, %v563
        %v668 = vmul.f32 %v523, %v564
        %v669 = vmul.f32 %v523, %v565
        %v670 = vmul.f32 %v523, %v566
        %v671 = vmul.f32 %v523, %v567
        %v672 = vmul.f32 %v528, %v560
        %v673 = vmul.f32 %v528, %v561
        %v674 = vmul.f32 %v528, %v562
        %v675 = vmul.f32 %v528, %v563
        %v676 = vmul.f32 %v528, %v564
        %v677 = vmul.f32 %v528, %v565
        %v678 = vmul.f32 %v528, %v566
        %v679 = vmul.f32 %v528, %v567
        %v680 = vmul.f32 %v533, %v560
        %v681 = vmul.f32 %v533, %v561
        %v682 = vmul.f32 %v533, %v562
        %v683 = vmul.f32 %v533, %v563
        %v684 = vmul.f32 %v533, %v564
        %v685 = vmul.f32 %v533, %v565
        %v686 = vmul.f32 %v533, %v566
        %v687 = vmul.f32 %v533, %v567
        %v688 = vmul.f32 %v538, %v560
        %v689 = vmul.f32 %v538, %v561
        %v690 = vmul.f32 %v538, %v562
        %v691 = vmul.f32 %v538, %v563
        %v692 = vmul.f32 %v538, %v564
        %v693 = vmul.f32 %v538, %v565
        %v694 = vmul.f32 %v538, %v566
        %v695 = vmul.f32 %v538, %v567
        %696 = vset.pattern.permute.xlu0 1
        %697 = vperm.xlu0 %696, %v391
        %v698 = vpop.permute.xlu0 %697
        %700 = vset.pattern.permute.xlu0 1
        %701 = vperm.xlu0 %700, %v392
        %v702 = vpop.permute.xlu0 %701
        %704 = vset.pattern.permute.xlu0 1
        %705 = vperm.xlu0 %704, %v393
        %v706 = vpop.permute.xlu0 %705
        %708 = vset.pattern.permute.xlu0 1
        %709 = vperm.xlu0 %708, %v394
        %v710 = vpop.permute.xlu0 %709
        %712 = vset.pattern.permute.xlu0 1
        %713 = vperm.xlu0 %712, %v395
        %v714 = vpop.permute.xlu0 %713
        %716 = vset.pattern.permute.xlu0 1
        %717 = vperm.xlu0 %716, %v396
        %v718 = vpop.permute.xlu0 %717
        %720 = vset.pattern.permute.xlu0 1
        %721 = vperm.xlu0 %720, %v397
        %v722 = vpop.permute.xlu0 %721
        %724 = vset.pattern.permute.xlu0 1
        %725 = vperm.xlu0 %724, %v398
        %v726 = vpop.permute.xlu0 %725
        %728 = vset.pattern.permute.xlu0 1
        %729 = vperm.xlu0 %728, %v399
        %v730 = vpop.permute.xlu0 %729
        %732 = vset.pattern.permute.xlu0 1
        %733 = vperm.xlu0 %732, %v400
        %v734 = vpop.permute.xlu0 %733
        %736 = vset.pattern.permute.xlu0 1
        %737 = vperm.xlu0 %736, %v401
        %v738 = vpop.permute.xlu0 %737
        %740 = vset.pattern.permute.xlu0 1
        %741 = vperm.xlu0 %740, %v402
        %v742 = vpop.permute.xlu0 %741
        %744 = vset.pattern.permute.xlu0 1
        %745 = vperm.xlu0 %744, %v403
        %v746 = vpop.permute.xlu0 %745
        %748 = vset.pattern.permute.xlu0 1
        %749 = vperm.xlu0 %748, %v404
        %v750 = vpop.permute.xlu0 %749
        %752 = vset.pattern.permute.xlu0 1
        %753 = vperm.xlu0 %752, %v405
        %v754 = vpop.permute.xlu0 %753
        %756 = vset.pattern.permute.xlu0 1
        %757 = vperm.xlu0 %756, %v406
        %v758 = vpop.permute.xlu0 %757
        %v760 = vperm.slane %v456, 1
        %v761 = vperm.slane %v456, 5
        %v762 = vperm.slane %v457, 1
        %v763 = vperm.slane %v457, 5
        %v764 = vperm.slane %v458, 1
        %v765 = vperm.slane %v458, 5
        %v766 = vperm.slane %v459, 1
        %v767 = vperm.slane %v459, 5
        %v776 = vperm.slane %v760, 1
        %v777 = vperm.slane %v761, 1
        %v778 = vperm.slane %v762, 1
        %v779 = vperm.slane %v763, 1
        %v780 = vperm.slane %v764, 1
        %v781 = vperm.slane %v765, 1
        %v782 = vperm.slane %v766, 1
        %v783 = vperm.slane %v767, 1
        %v784 = vmul.f32 %v698, %v776
        %v785 = vmul.f32 %v698, %v777
        %v786 = vmul.f32 %v698, %v778
        %v787 = vmul.f32 %v698, %v779
        %v788 = vmul.f32 %v698, %v780
        %v789 = vmul.f32 %v698, %v781
        %v790 = vmul.f32 %v698, %v782
        %v791 = vmul.f32 %v698, %v783
        %v792 = vmul.f32 %v702, %v776
        %v793 = vmul.f32 %v702, %v777
        %v794 = vmul.f32 %v702, %v778
        %v795 = vmul.f32 %v702, %v779
        %v796 = vmul.f32 %v702, %v780
        %v797 = vmul.f32 %v702, %v781
        %v798 = vmul.f32 %v702, %v782
        %v799 = vmul.f32 %v702, %v783
        %v800 = vmul.f32 %v706, %v776
        %v801 = vmul.f32 %v706, %v777
        %v802 = vmul.f32 %v706, %v778
        %v803 = vmul.f32 %v706, %v779
        %v804 = vmul.f32 %v706, %v780
        %v805 = vmul.f32 %v706, %v781
        %v806 = vmul.f32 %v706, %v782
        %v807 = vmul.f32 %v706, %v783
        %v808 = vmul.f32 %v710, %v776
        %v809 = vmul.f32 %v710, %v777
        %v810 = vmul.f32 %v710, %v778
        %v811 = vmul.f32 %v710, %v779
        %v812 = vmul.f32 %v710, %v780
        %v813 = vmul.f32 %v710, %v781
        %v814 = vmul.f32 %v710, %v782
        %v815 = vmul.f32 %v710, %v783
        %v816 = vmul.f32 %v714, %v776
        %v817 = vmul.f32 %v714, %v777
        %v818 = vmul.f32 %v714, %v778
        %v819 = vmul.f32 %v714, %v779
        %v820 = vmul.f32 %v714, %v780
        %v821 = vmul.f32 %v714, %v781
        %v822 = vmul.f32 %v714, %v782
        %v823 = vmul.f32 %v714, %v783
        %v824 = vmul.f32 %v718, %v776
        %v825 = vmul.f32 %v718, %v777
        %v826 = vmul.f32 %v718, %v778
        %v827 = vmul.f32 %v718, %v779
        %v828 = vmul.f32 %v718, %v780
        %v829 = vmul.f32 %v718, %v781
        %v830 = vmul.f32 %v718, %v782
        %v831 = vmul.f32 %v718, %v783
        %v832 = vmul.f32 %v722, %v776
        %v833 = vmul.f32 %v722, %v777
        %v834 = vmul.f32 %v722, %v778
        %v835 = vmul.f32 %v722, %v779
        %v836 = vmul.f32 %v722, %v780
        %v837 = vmul.f32 %v722, %v781
        %v838 = vmul.f32 %v722, %v782
        %v839 = vmul.f32 %v722, %v783
        %v840 = vmul.f32 %v726, %v776
        %v841 = vmul.f32 %v726, %v777
        %v842 = vmul.f32 %v726, %v778
        %v843 = vmul.f32 %v726, %v779
        %v844 = vmul.f32 %v726, %v780
        %v845 = vmul.f32 %v726, %v781
        %v846 = vmul.f32 %v726, %v782
        %v847 = vmul.f32 %v726, %v783
        %v848 = vmul.f32 %v730, %v776
        %v849 = vmul.f32 %v730, %v777
        %v850 = vmul.f32 %v730, %v778
        %v851 = vmul.f32 %v730, %v779
        %v852 = vmul.f32 %v730, %v780
        %v853 = vmul.f32 %v730, %v781
        %v854 = vmul.f32 %v730, %v782
        %v855 = vmul.f32 %v730, %v783
        %v856 = vmul.f32 %v734, %v776
        %v857 = vmul.f32 %v734, %v777
        %v858 = vmul.f32 %v734, %v778
        %v859 = vmul.f32 %v734, %v779
        %v860 = vmul.f32 %v734, %v780
        %v861 = vmul.f32 %v734, %v781
        %v862 = vmul.f32 %v734, %v782
        %v863 = vmul.f32 %v734, %v783
        %v864 = vmul.f32 %v738, %v776
        %v865 = vmul.f32 %v738, %v777
        %v866 = vmul.f32 %v738, %v778
        %v867 = vmul.f32 %v738, %v779
        %v868 = vmul.f32 %v738, %v780
        %v869 = vmul.f32 %v738, %v781
        %v870 = vmul.f32 %v738, %v782
        %v871 = vmul.f32 %v738, %v783
        %v872 = vmul.f32 %v742, %v776
        %v873 = vmul.f32 %v742, %v777
        %v874 = vmul.f32 %v742, %v778
        %v875 = vmul.f32 %v742, %v779
        %v876 = vmul.f32 %v742, %v780
        %v877 = vmul.f32 %v742, %v781
        %v878 = vmul.f32 %v742, %v782
        %v879 = vmul.f32 %v742, %v783
        %v880 = vmul.f32 %v746, %v776
        %v881 = vmul.f32 %v746, %v777
        %v882 = vmul.f32 %v746, %v778
        %v883 = vmul.f32 %v746, %v779
        %v884 = vmul.f32 %v746, %v780
        %v885 = vmul.f32 %v746, %v781
        %v886 = vmul.f32 %v746, %v782
        %v887 = vmul.f32 %v746, %v783
        %v888 = vmul.f32 %v750, %v776
        %v889 = vmul.f32 %v750, %v777
        %v890 = vmul.f32 %v750, %v778
        %v891 = vmul.f32 %v750, %v779
        %v892 = vmul.f32 %v750, %v780
        %v893 = vmul.f32 %v750, %v781
        %v894 = vmul.f32 %v750, %v782
        %v895 = vmul.f32 %v750, %v783
        %v896 = vmul.f32 %v754, %v776
        %v897 = vmul.f32 %v754, %v777
        %v898 = vmul.f32 %v754, %v778
        %v899 = vmul.f32 %v754, %v779
        %v900 = vmul.f32 %v754, %v780
        %v901 = vmul.f32 %v754, %v781
        %v902 = vmul.f32 %v754, %v782
        %v903 = vmul.f32 %v754, %v783
        %v904 = vmul.f32 %v758, %v776
        %v905 = vmul.f32 %v758, %v777
        %v906 = vmul.f32 %v758, %v778
        %v907 = vmul.f32 %v758, %v779
        %v908 = vmul.f32 %v758, %v780
        %v909 = vmul.f32 %v758, %v781
        %v910 = vmul.f32 %v758, %v782
        %v911 = vmul.f32 %v758, %v783
        %v912 = vadd.f32 %v568, %v784
        %v913 = vadd.f32 %v569, %v785
        %v914 = vadd.f32 %v570, %v786
        %v915 = vadd.f32 %v571, %v787
        %v916 = vadd.f32 %v572, %v788
        %v917 = vadd.f32 %v573, %v789
        %v918 = vadd.f32 %v574, %v790
        %v919 = vadd.f32 %v575, %v791
        %v920 = vadd.f32 %v576, %v792
        %v921 = vadd.f32 %v577, %v793
        %v922 = vadd.f32 %v578, %v794
        %v923 = vadd.f32 %v579, %v795
        %v924 = vadd.f32 %v580, %v796
        %v925 = vadd.f32 %v581, %v797
        %v926 = vadd.f32 %v582, %v798
        %v927 = vadd.f32 %v583, %v799
        %v928 = vadd.f32 %v584, %v800
        %v929 = vadd.f32 %v585, %v801
        %v930 = vadd.f32 %v586, %v802
        %v931 = vadd.f32 %v587, %v803
        %v932 = vadd.f32 %v588, %v804
        %v933 = vadd.f32 %v589, %v805
        %v934 = vadd.f32 %v590, %v806
        %v935 = vadd.f32 %v591, %v807
        %v936 = vadd.f32 %v592, %v808
        %v937 = vadd.f32 %v593, %v809
        %v938 = vadd.f32 %v594, %v810
        %v939 = vadd.f32 %v595, %v811
        %v940 = vadd.f32 %v596, %v812
        %v941 = vadd.f32 %v597, %v813
        %v942 = vadd.f32 %v598, %v814
        %v943 = vadd.f32 %v599, %v815
        %v944 = vadd.f32 %v600, %v816
        %v945 = vadd.f32 %v601, %v817
        %v946 = vadd.f32 %v602, %v818
        %v947 = vadd.f32 %v603, %v819
        %v948 = vadd.f32 %v604, %v820
        %v949 = vadd.f32 %v605, %v821
        %v950 = vadd.f32 %v606, %v822
        %v951 = vadd.f32 %v607, %v823
        %v952 = vadd.f32 %v608, %v824
        %v953 = vadd.f32 %v609, %v825
        %v954 = vadd.f32 %v610, %v826
        %v955 = vadd.f32 %v611, %v827
        %v956 = vadd.f32 %v612, %v828
        %v957 = vadd.f32 %v613, %v829
        %v958 = vadd.f32 %v614, %v830
        %v959 = vadd.f32 %v615, %v831
        %v960 = vadd.f32 %v616, %v832
        %v961 = vadd.f32 %v617, %v833
        %v962 = vadd.f32 %v618, %v834
        %v963 = vadd.f32 %v619, %v835
        %v964 = vadd.f32 %v620, %v836
        %v965 = vadd.f32 %v621, %v837
        %v966 = vadd.f32 %v622, %v838
        %v967 = vadd.f32 %v623, %v839
        %v968 = vadd.f32 %v624, %v840
        %v969 = vadd.f32 %v625, %v841
        %v970 = vadd.f32 %v626, %v842
        %v971 = vadd.f32 %v627, %v843
        %v972 = vadd.f32 %v628, %v844
        %v973 = vadd.f32 %v629, %v845
        %v974 = vadd.f32 %v630, %v846
        %v975 = vadd.f32 %v631, %v847
        %v976 = vadd.f32 %v632, %v848
        %v977 = vadd.f32 %v633, %v849
        %v978 = vadd.f32 %v634, %v850
        %v979 = vadd.f32 %v635, %v851
        %v980 = vadd.f32 %v636, %v852
        %v981 = vadd.f32 %v637, %v853
        %v982 = vadd.f32 %v638, %v854
        %v983 = vadd.f32 %v639, %v855
        %v984 = vadd.f32 %v640, %v856
        %v985 = vadd.f32 %v641, %v857
        %v986 = vadd.f32 %v642, %v858
        %v987 = vadd.f32 %v643, %v859
        %v988 = vadd.f32 %v644, %v860
        %v989 = vadd.f32 %v645, %v861
        %v990 = vadd.f32 %v646, %v862
        %v991 = vadd.f32 %v647, %v863
        %v992 = vadd.f32 %v648, %v864
        %v993 = vadd.f32 %v649, %v865
        %v994 = vadd.f32 %v650, %v866
        %v995 = vadd.f32 %v651, %v867
        %v996 = vadd.f32 %v652, %v868
        %v997 = vadd.f32 %v653, %v869
        %v998 = vadd.f32 %v654, %v870
        %v999 = vadd.f32 %v655, %v871
        %v1000 = vadd.f32 %v656, %v872
        %v1001 = vadd.f32 %v657, %v873
        %v1002 = vadd.f32 %v658, %v874
        %v1003 = vadd.f32 %v659, %v875
        %v1004 = vadd.f32 %v660, %v876
        %v1005 = vadd.f32 %v661, %v877
        %v1006 = vadd.f32 %v662, %v878
        %v1007 = vadd.f32 %v663, %v879
        %v1008 = vadd.f32 %v664, %v880
        %v1009 = vadd.f32 %v665, %v881
        %v1010 = vadd.f32 %v666, %v882
        %v1011 = vadd.f32 %v667, %v883
        %v1012 = vadd.f32 %v668, %v884
        %v1013 = vadd.f32 %v669, %v885
        %v1014 = vadd.f32 %v670, %v886
        %v1015 = vadd.f32 %v671, %v887
        %v1016 = vadd.f32 %v672, %v888
        %v1017 = vadd.f32 %v673, %v889
        %v1018 = vadd.f32 %v674, %v890
        %v1019 = vadd.f32 %v675, %v891
        %v1020 = vadd.f32 %v676, %v892
        %v1021 = vadd.f32 %v677, %v893
        %v1022 = vadd.f32 %v678, %v894
        %v1023 = vadd.f32 %v679, %v895
        %v1024 = vadd.f32 %v680, %v896
        %v1025 = vadd.f32 %v681, %v897
        %v1026 = vadd.f32 %v682, %v898
        %v1027 = vadd.f32 %v683, %v899
        %v1028 = vadd.f32 %v684, %v900
        %v1029 = vadd.f32 %v685, %v901
        %v1030 = vadd.f32 %v686, %v902
        %v1031 = vadd.f32 %v687, %v903
        %v1032 = vadd.f32 %v688, %v904
        %v1033 = vadd.f32 %v689, %v905
        %v1034 = vadd.f32 %v690, %v906
        %v1035 = vadd.f32 %v691, %v907
        %v1036 = vadd.f32 %v692, %v908
        %v1037 = vadd.f32 %v693, %v909
        %v1038 = vadd.f32 %v694, %v910
        %v1039 = vadd.f32 %v695, %v911
        %1040 = vset.pattern.permute.xlu0 2
        %1041 = vperm.xlu0 %1040, %v391
        %v1042 = vpop.permute.xlu0 %1041
        %1044 = vset.pattern.permute.xlu0 2
        %1045 = vperm.xlu0 %1044, %v392
        %v1046 = vpop.permute.xlu0 %1045
        %1048 = vset.pattern.permute.xlu0 2
        %1049 = vperm.xlu0 %1048, %v393
        %v1050 = vpop.permute.xlu0 %1049
        %1052 = vset.pattern.permute.xlu0 2
        %1053 = vperm.xlu0 %1052, %v394
        %v1054 = vpop.permute.xlu0 %1053
        %1056 = vset.pattern.permute.xlu0 2
        %1057 = vperm.xlu0 %1056, %v395
        %v1058 = vpop.permute.xlu0 %1057
        %1060 = vset.pattern.permute.xlu0 2
        %1061 = vperm.xlu0 %1060, %v396
        %v1062 = vpop.permute.xlu0 %1061
        %1064 = vset.pattern.permute.xlu0 2
        %1065 = vperm.xlu0 %1064, %v397
        %v1066 = vpop.permute.xlu0 %1065
        %1068 = vset.pattern.permute.xlu0 2
        %1069 = vperm.xlu0 %1068, %v398
        %v1070 = vpop.permute.xlu0 %1069
        %1072 = vset.pattern.permute.xlu0 2
        %1073 = vperm.xlu0 %1072, %v399
        %v1074 = vpop.permute.xlu0 %1073
        %1076 = vset.pattern.permute.xlu0 2
        %1077 = vperm.xlu0 %1076, %v400
        %v1078 = vpop.permute.xlu0 %1077
        %1080 = vset.pattern.permute.xlu0 2
        %1081 = vperm.xlu0 %1080, %v401
        %v1082 = vpop.permute.xlu0 %1081
        %1084 = vset.pattern.permute.xlu0 2
        %1085 = vperm.xlu0 %1084, %v402
        %v1086 = vpop.permute.xlu0 %1085
        %1088 = vset.pattern.permute.xlu0 2
        %1089 = vperm.xlu0 %1088, %v403
        %v1090 = vpop.permute.xlu0 %1089
        %1092 = vset.pattern.permute.xlu0 2
        %1093 = vperm.xlu0 %1092, %v404
        %v1094 = vpop.permute.xlu0 %1093
        %1096 = vset.pattern.permute.xlu0 2
        %1097 = vperm.xlu0 %1096, %v405
        %v1098 = vpop.permute.xlu0 %1097
        %1100 = vset.pattern.permute.xlu0 2
        %1101 = vperm.xlu0 %1100, %v406
        %v1102 = vpop.permute.xlu0 %1101
        %v1104 = vperm.slane %v456, 2
        %v1105 = vperm.slane %v456, 6
        %v1106 = vperm.slane %v457, 2
        %v1107 = vperm.slane %v457, 6
        %v1108 = vperm.slane %v458, 2
        %v1109 = vperm.slane %v458, 6
        %v1110 = vperm.slane %v459, 2
        %v1111 = vperm.slane %v459, 6
        %v1120 = vperm.slane %v1104, 2
        %v1121 = vperm.slane %v1105, 2
        %v1122 = vperm.slane %v1106, 2
        %v1123 = vperm.slane %v1107, 2
        %v1124 = vperm.slane %v1108, 2
        %v1125 = vperm.slane %v1109, 2
        %v1126 = vperm.slane %v1110, 2
        %v1127 = vperm.slane %v1111, 2
        %v1128 = vmul.f32 %v1042, %v1120
        %v1129 = vmul.f32 %v1042, %v1121
        %v1130 = vmul.f32 %v1042, %v1122
        %v1131 = vmul.f32 %v1042, %v1123
        %v1132 = vmul.f32 %v1042, %v1124
        %v1133 = vmul.f32 %v1042, %v1125
        %v1134 = vmul.f32 %v1042, %v1126
        %v1135 = vmul.f32 %v1042, %v1127
        %v1136 = vmul.f32 %v1046, %v1120
        %v1137 = vmul.f32 %v1046, %v1121
        %v1138 = vmul.f32 %v1046, %v1122
        %v1139 = vmul.f32 %v1046, %v1123
        %v1140 = vmul.f32 %v1046, %v1124
        %v1141 = vmul.f32 %v1046, %v1125
        %v1142 = vmul.f32 %v1046, %v1126
        %v1143 = vmul.f32 %v1046, %v1127
        %v1144 = vmul.f32 %v1050, %v1120
        %v1145 = vmul.f32 %v1050, %v1121
        %v1146 = vmul.f32 %v1050, %v1122
        %v1147 = vmul.f32 %v1050, %v1123
        %v1148 = vmul.f32 %v1050, %v1124
        %v1149 = vmul.f32 %v1050, %v1125
        %v1150 = vmul.f32 %v1050, %v1126
        %v1151 = vmul.f32 %v1050, %v1127
        %v1152 = vmul.f32 %v1054, %v1120
        %v1153 = vmul.f32 %v1054, %v1121
        %v1154 = vmul.f32 %v1054, %v1122
        %v1155 = vmul.f32 %v1054, %v1123
        %v1156 = vmul.f32 %v1054, %v1124
        %v1157 = vmul.f32 %v1054, %v1125
        %v1158 = vmul.f32 %v1054, %v1126
        %v1159 = vmul.f32 %v1054, %v1127
        %v1160 = vmul.f32 %v1058, %v1120
        %v1161 = vmul.f32 %v1058, %v1121
        %v1162 = vmul.f32 %v1058, %v1122
        %v1163 = vmul.f32 %v1058, %v1123
        %v1164 = vmul.f32 %v1058, %v1124
        %v1165 = vmul.f32 %v1058, %v1125
        %v1166 = vmul.f32 %v1058, %v1126
        %v1167 = vmul.f32 %v1058, %v1127
        %v1168 = vmul.f32 %v1062, %v1120
        %v1169 = vmul.f32 %v1062, %v1121
        %v1170 = vmul.f32 %v1062, %v1122
        %v1171 = vmul.f32 %v1062, %v1123
        %v1172 = vmul.f32 %v1062, %v1124
        %v1173 = vmul.f32 %v1062, %v1125
        %v1174 = vmul.f32 %v1062, %v1126
        %v1175 = vmul.f32 %v1062, %v1127
        %v1176 = vmul.f32 %v1066, %v1120
        %v1177 = vmul.f32 %v1066, %v1121
        %v1178 = vmul.f32 %v1066, %v1122
        %v1179 = vmul.f32 %v1066, %v1123
        %v1180 = vmul.f32 %v1066, %v1124
        %v1181 = vmul.f32 %v1066, %v1125
        %v1182 = vmul.f32 %v1066, %v1126
        %v1183 = vmul.f32 %v1066, %v1127
        %v1184 = vmul.f32 %v1070, %v1120
        %v1185 = vmul.f32 %v1070, %v1121
        %v1186 = vmul.f32 %v1070, %v1122
        %v1187 = vmul.f32 %v1070, %v1123
        %v1188 = vmul.f32 %v1070, %v1124
        %v1189 = vmul.f32 %v1070, %v1125
        %v1190 = vmul.f32 %v1070, %v1126
        %v1191 = vmul.f32 %v1070, %v1127
        %v1192 = vmul.f32 %v1074, %v1120
        %v1193 = vmul.f32 %v1074, %v1121
        %v1194 = vmul.f32 %v1074, %v1122
        %v1195 = vmul.f32 %v1074, %v1123
        %v1196 = vmul.f32 %v1074, %v1124
        %v1197 = vmul.f32 %v1074, %v1125
        %v1198 = vmul.f32 %v1074, %v1126
        %v1199 = vmul.f32 %v1074, %v1127
        %v1200 = vmul.f32 %v1078, %v1120
        %v1201 = vmul.f32 %v1078, %v1121
        %v1202 = vmul.f32 %v1078, %v1122
        %v1203 = vmul.f32 %v1078, %v1123
        %v1204 = vmul.f32 %v1078, %v1124
        %v1205 = vmul.f32 %v1078, %v1125
        %v1206 = vmul.f32 %v1078, %v1126
        %v1207 = vmul.f32 %v1078, %v1127
        %v1208 = vmul.f32 %v1082, %v1120
        %v1209 = vmul.f32 %v1082, %v1121
        %v1210 = vmul.f32 %v1082, %v1122
        %v1211 = vmul.f32 %v1082, %v1123
        %v1212 = vmul.f32 %v1082, %v1124
        %v1213 = vmul.f32 %v1082, %v1125
        %v1214 = vmul.f32 %v1082, %v1126
        %v1215 = vmul.f32 %v1082, %v1127
        %v1216 = vmul.f32 %v1086, %v1120
        %v1217 = vmul.f32 %v1086, %v1121
        %v1218 = vmul.f32 %v1086, %v1122
        %v1219 = vmul.f32 %v1086, %v1123
        %v1220 = vmul.f32 %v1086, %v1124
        %v1221 = vmul.f32 %v1086, %v1125
        %v1222 = vmul.f32 %v1086, %v1126
        %v1223 = vmul.f32 %v1086, %v1127
        %v1224 = vmul.f32 %v1090, %v1120
        %v1225 = vmul.f32 %v1090, %v1121
        %v1226 = vmul.f32 %v1090, %v1122
        %v1227 = vmul.f32 %v1090, %v1123
        %v1228 = vmul.f32 %v1090, %v1124
        %v1229 = vmul.f32 %v1090, %v1125
        %v1230 = vmul.f32 %v1090, %v1126
        %v1231 = vmul.f32 %v1090, %v1127
        %v1232 = vmul.f32 %v1094, %v1120
        %v1233 = vmul.f32 %v1094, %v1121
        %v1234 = vmul.f32 %v1094, %v1122
        %v1235 = vmul.f32 %v1094, %v1123
        %v1236 = vmul.f32 %v1094, %v1124
        %v1237 = vmul.f32 %v1094, %v1125
        %v1238 = vmul.f32 %v1094, %v1126
        %v1239 = vmul.f32 %v1094, %v1127
        %v1240 = vmul.f32 %v1098, %v1120
        %v1241 = vmul.f32 %v1098, %v1121
        %v1242 = vmul.f32 %v1098, %v1122
        %v1243 = vmul.f32 %v1098, %v1123
        %v1244 = vmul.f32 %v1098, %v1124
        %v1245 = vmul.f32 %v1098, %v1125
        %v1246 = vmul.f32 %v1098, %v1126
        %v1247 = vmul.f32 %v1098, %v1127
        %v1248 = vmul.f32 %v1102, %v1120
        %v1249 = vmul.f32 %v1102, %v1121
        %v1250 = vmul.f32 %v1102, %v1122
        %v1251 = vmul.f32 %v1102, %v1123
        %v1252 = vmul.f32 %v1102, %v1124
        %v1253 = vmul.f32 %v1102, %v1125
        %v1254 = vmul.f32 %v1102, %v1126
        %v1255 = vmul.f32 %v1102, %v1127
        %v1256 = vadd.f32 %v912, %v1128
        %v1257 = vadd.f32 %v913, %v1129
        %v1258 = vadd.f32 %v914, %v1130
        %v1259 = vadd.f32 %v915, %v1131
        %v1260 = vadd.f32 %v916, %v1132
        %v1261 = vadd.f32 %v917, %v1133
        %v1262 = vadd.f32 %v918, %v1134
        %v1263 = vadd.f32 %v919, %v1135
        %v1264 = vadd.f32 %v920, %v1136
        %v1265 = vadd.f32 %v921, %v1137
        %v1266 = vadd.f32 %v922, %v1138
        %v1267 = vadd.f32 %v923, %v1139
        %v1268 = vadd.f32 %v924, %v1140
        %v1269 = vadd.f32 %v925, %v1141
        %v1270 = vadd.f32 %v926, %v1142
        %v1271 = vadd.f32 %v927, %v1143
        %v1272 = vadd.f32 %v928, %v1144
        %v1273 = vadd.f32 %v929, %v1145
        %v1274 = vadd.f32 %v930, %v1146
        %v1275 = vadd.f32 %v931, %v1147
        %v1276 = vadd.f32 %v932, %v1148
        %v1277 = vadd.f32 %v933, %v1149
        %v1278 = vadd.f32 %v934, %v1150
        %v1279 = vadd.f32 %v935, %v1151
        %v1280 = vadd.f32 %v936, %v1152
        %v1281 = vadd.f32 %v937, %v1153
        %v1282 = vadd.f32 %v938, %v1154
        %v1283 = vadd.f32 %v939, %v1155
        %v1284 = vadd.f32 %v940, %v1156
        %v1285 = vadd.f32 %v941, %v1157
        %v1286 = vadd.f32 %v942, %v1158
        %v1287 = vadd.f32 %v943, %v1159
        %v1288 = vadd.f32 %v944, %v1160
        %v1289 = vadd.f32 %v945, %v1161
        %v1290 = vadd.f32 %v946, %v1162
        %v1291 = vadd.f32 %v947, %v1163
        %v1292 = vadd.f32 %v948, %v1164
        %v1293 = vadd.f32 %v949, %v1165
        %v1294 = vadd.f32 %v950, %v1166
        %v1295 = vadd.f32 %v951, %v1167
        %v1296 = vadd.f32 %v952, %v1168
        %v1297 = vadd.f32 %v953, %v1169
        %v1298 = vadd.f32 %v954, %v1170
        %v1299 = vadd.f32 %v955, %v1171
        %v1300 = vadd.f32 %v956, %v1172
        %v1301 = vadd.f32 %v957, %v1173
        %v1302 = vadd.f32 %v958, %v1174
        %v1303 = vadd.f32 %v959, %v1175
        %v1304 = vadd.f32 %v960, %v1176
        %v1305 = vadd.f32 %v961, %v1177
        %v1306 = vadd.f32 %v962, %v1178
        %v1307 = vadd.f32 %v963, %v1179
        %v1308 = vadd.f32 %v964, %v1180
        %v1309 = vadd.f32 %v965, %v1181
        %v1310 = vadd.f32 %v966, %v1182
        %v1311 = vadd.f32 %v967, %v1183
        %v1312 = vadd.f32 %v968, %v1184
        %v1313 = vadd.f32 %v969, %v1185
        %v1314 = vadd.f32 %v970, %v1186
        %v1315 = vadd.f32 %v971, %v1187
        %v1316 = vadd.f32 %v972, %v1188
        %v1317 = vadd.f32 %v973, %v1189
        %v1318 = vadd.f32 %v974, %v1190
        %v1319 = vadd.f32 %v975, %v1191
        %v1320 = vadd.f32 %v976, %v1192
        %v1321 = vadd.f32 %v977, %v1193
        %v1322 = vadd.f32 %v978, %v1194
        %v1323 = vadd.f32 %v979, %v1195
        %v1324 = vadd.f32 %v980, %v1196
        %v1325 = vadd.f32 %v981, %v1197
        %v1326 = vadd.f32 %v982, %v1198
        %v1327 = vadd.f32 %v983, %v1199
        %v1328 = vadd.f32 %v984, %v1200
        %v1329 = vadd.f32 %v985, %v1201
        %v1330 = vadd.f32 %v986, %v1202
        %v1331 = vadd.f32 %v987, %v1203
        %v1332 = vadd.f32 %v988, %v1204
        %v1333 = vadd.f32 %v989, %v1205
        %v1334 = vadd.f32 %v990, %v1206
        %v1335 = vadd.f32 %v991, %v1207
        %v1336 = vadd.f32 %v992, %v1208
        %v1337 = vadd.f32 %v993, %v1209
        %v1338 = vadd.f32 %v994, %v1210
        %v1339 = vadd.f32 %v995, %v1211
        %v1340 = vadd.f32 %v996, %v1212
        %v1341 = vadd.f32 %v997, %v1213
        %v1342 = vadd.f32 %v998, %v1214
        %v1343 = vadd.f32 %v999, %v1215
        %v1344 = vadd.f32 %v1000, %v1216
        %v1345 = vadd.f32 %v1001, %v1217
        %v1346 = vadd.f32 %v1002, %v1218
        %v1347 = vadd.f32 %v1003, %v1219
        %v1348 = vadd.f32 %v1004, %v1220
        %v1349 = vadd.f32 %v1005, %v1221
        %v1350 = vadd.f32 %v1006, %v1222
        %v1351 = vadd.f32 %v1007, %v1223
        %v1352 = vadd.f32 %v1008, %v1224
        %v1353 = vadd.f32 %v1009, %v1225
        %v1354 = vadd.f32 %v1010, %v1226
        %v1355 = vadd.f32 %v1011, %v1227
        %v1356 = vadd.f32 %v1012, %v1228
        %v1357 = vadd.f32 %v1013, %v1229
        %v1358 = vadd.f32 %v1014, %v1230
        %v1359 = vadd.f32 %v1015, %v1231
        %v1360 = vadd.f32 %v1016, %v1232
        %v1361 = vadd.f32 %v1017, %v1233
        %v1362 = vadd.f32 %v1018, %v1234
        %v1363 = vadd.f32 %v1019, %v1235
        %v1364 = vadd.f32 %v1020, %v1236
        %v1365 = vadd.f32 %v1021, %v1237
        %v1366 = vadd.f32 %v1022, %v1238
        %v1367 = vadd.f32 %v1023, %v1239
        %v1368 = vadd.f32 %v1024, %v1240
        %v1369 = vadd.f32 %v1025, %v1241
        %v1370 = vadd.f32 %v1026, %v1242
        %v1371 = vadd.f32 %v1027, %v1243
        %v1372 = vadd.f32 %v1028, %v1244
        %v1373 = vadd.f32 %v1029, %v1245
        %v1374 = vadd.f32 %v1030, %v1246
        %v1375 = vadd.f32 %v1031, %v1247
        %v1376 = vadd.f32 %v1032, %v1248
        %v1377 = vadd.f32 %v1033, %v1249
        %v1378 = vadd.f32 %v1034, %v1250
        %v1379 = vadd.f32 %v1035, %v1251
        %v1380 = vadd.f32 %v1036, %v1252
        %v1381 = vadd.f32 %v1037, %v1253
        %v1382 = vadd.f32 %v1038, %v1254
        %v1383 = vadd.f32 %v1039, %v1255
        %v1384 = vld [vmem:[%s367] sm:$0xff]
        %v1385 = vld [vmem:[%s367 + $0x8] sm:$0xff]
        %v1386 = vld [vmem:[%s367 + $0x10] sm:$0xff]
        %v1387 = vld [vmem:[%s367 + $0x18] sm:$0xff]
        %v1388 = vld [vmem:[%s367 + $0x20] sm:$0xff]
        %v1389 = vld [vmem:[%s367 + $0x28] sm:$0xff]
        %v1390 = vld [vmem:[%s367 + $0x30] sm:$0xff]
        %v1391 = vld [vmem:[%s367 + $0x38] sm:$0xff]
        %v1392 = vld [vmem:[%s367 + $0x40] sm:$0xff]
        %v1393 = vld [vmem:[%s367 + $0x48] sm:$0xff]
        %v1394 = vld [vmem:[%s367 + $0x50] sm:$0xff]
        %v1395 = vld [vmem:[%s367 + $0x58] sm:$0xff]
        %v1396 = vld [vmem:[%s367 + $0x60] sm:$0xff]
        %v1397 = vld [vmem:[%s367 + $0x68] sm:$0xff]
        %v1398 = vld [vmem:[%s367 + $0x70] sm:$0xff]
        %v1399 = vld [vmem:[%s367 + $0x78] sm:$0xff]
        %1401 = vset.pattern.permute.xlu0 0
        %1402 = vperm.xlu0 %1401, %v1384
        %v1403 = vpop.permute.xlu0 %1402
        %1406 = vset.pattern.permute.xlu0 0
        %1407 = vperm.xlu0 %1406, %v1385
        %v1408 = vpop.permute.xlu0 %1407
        %1411 = vset.pattern.permute.xlu0 0
        %1412 = vperm.xlu0 %1411, %v1386
        %v1413 = vpop.permute.xlu0 %1412
        %1416 = vset.pattern.permute.xlu0 0
        %1417 = vperm.xlu0 %1416, %v1387
        %v1418 = vpop.permute.xlu0 %1417
        %1421 = vset.pattern.permute.xlu0 0
        %1422 = vperm.xlu0 %1421, %v1388
        %v1423 = vpop.permute.xlu0 %1422
        %1426 = vset.pattern.permute.xlu0 0
        %1427 = vperm.xlu0 %1426, %v1389
        %v1428 = vpop.permute.xlu0 %1427
        %1431 = vset.pattern.permute.xlu0 0
        %1432 = vperm.xlu0 %1431, %v1390
        %v1433 = vpop.permute.xlu0 %1432
        %1436 = vset.pattern.permute.xlu0 0
        %1437 = vperm.xlu0 %1436, %v1391
        %v1438 = vpop.permute.xlu0 %1437
        %1441 = vset.pattern.permute.xlu0 0
        %1442 = vperm.xlu0 %1441, %v1392
        %v1443 = vpop.permute.xlu0 %1442
        %1446 = vset.pattern.permute.xlu0 0
        %1447 = vperm.xlu0 %1446, %v1393
        %v1448 = vpop.permute.xlu0 %1447
        %1451 = vset.pattern.permute.xlu0 0
        %1452 = vperm.xlu0 %1451, %v1394
        %v1453 = vpop.permute.xlu0 %1452
        %1456 = vset.pattern.permute.xlu0 0
        %1457 = vperm.xlu0 %1456, %v1395
        %v1458 = vpop.permute.xlu0 %1457
        %1461 = vset.pattern.permute.xlu0 0
        %1462 = vperm.xlu0 %1461, %v1396
        %v1463 = vpop.permute.xlu0 %1462
        %1466 = vset.pattern.permute.xlu0 0
        %1467 = vperm.xlu0 %1466, %v1397
        %v1468 = vpop.permute.xlu0 %1467
        %1471 = vset.pattern.permute.xlu0 0
        %1472 = vperm.xlu0 %1471, %v1398
        %v1473 = vpop.permute.xlu0 %1472
        %1476 = vset.pattern.permute.xlu0 0
        %1477 = vperm.xlu0 %1476, %v1399
        %v1478 = vpop.permute.xlu0 %1477
        %v1480 = vadd.f32 %v1256, %v1403
        %v1481 = vadd.f32 %v1257, %v1403
        %v1482 = vadd.f32 %v1258, %v1403
        %v1483 = vadd.f32 %v1259, %v1403
        %v1484 = vadd.f32 %v1260, %v1403
        %v1485 = vadd.f32 %v1261, %v1403
        %v1486 = vadd.f32 %v1262, %v1403
        %v1487 = vadd.f32 %v1263, %v1403
        %v1488 = vadd.f32 %v1264, %v1408
        %v1489 = vadd.f32 %v1265, %v1408
        %v1490 = vadd.f32 %v1266, %v1408
        %v1491 = vadd.f32 %v1267, %v1408
        %v1492 = vadd.f32 %v1268, %v1408
        %v1493 = vadd.f32 %v1269, %v1408
        %v1494 = vadd.f32 %v1270, %v1408
        %v1495 = vadd.f32 %v1271, %v1408
        %v1496 = vadd.f32 %v1272, %v1413
        %v1497 = vadd.f32 %v1273, %v1413
        %v1498 = vadd.f32 %v1274, %v1413
        %v1499 = vadd.f32 %v1275, %v1413
        %v1500 = vadd.f32 %v1276, %v1413
        %v1501 = vadd.f32 %v1277, %v1413
        %v1502 = vadd.f32 %v1278, %v1413
        %v1503 = vadd.f32 %v1279, %v1413
        %v1504 = vadd.f32 %v1280, %v1418
        %v1505 = vadd.f32 %v1281, %v1418
        %v1506 = vadd.f32 %v1282, %v1418
        %v1507 = vadd.f32 %v1283, %v1418
        %v1508 = vadd.f32 %v1284, %v1418
        %v1509 = vadd.f32 %v1285, %v1418
        %v1510 = vadd.f32 %v1286, %v1418
        %v1511 = vadd.f32 %v1287, %v1418
        %v1512 = vadd.f32 %v1288, %v1423
        %v1513 = vadd.f32 %v1289, %v1423
        %v1514 = vadd.f32 %v1290, %v1423
        %v1515 = vadd.f32 %v1291, %v1423
        %v1516 = vadd.f32 %v1292, %v1423
        %v1517 = vadd.f32 %v1293, %v1423
        %v1518 = vadd.f32 %v1294, %v1423
        %v1519 = vadd.f32 %v1295, %v1423
        %v1520 = vadd.f32 %v1296, %v1428
        %v1521 = vadd.f32 %v1297, %v1428
        %v1522 = vadd.f32 %v1298, %v1428
        %v1523 = vadd.f32 %v1299, %v1428
        %v1524 = vadd.f32 %v1300, %v1428
        %v1525 = vadd.f32 %v1301, %v1428
        %v1526 = vadd.f32 %v1302, %v1428
        %v1527 = vadd.f32 %v1303, %v1428
        %v1528 = vadd.f32 %v1304, %v1433
        %v1529 = vadd.f32 %v1305, %v1433
        %v1530 = vadd.f32 %v1306, %v1433
        %v1531 = vadd.f32 %v1307, %v1433
        %v1532 = vadd.f32 %v1308, %v1433
        %v1533 = vadd.f32 %v1309, %v1433
        %v1534 = vadd.f32 %v1310, %v1433
        %v1535 = vadd.f32 %v1311, %v1433
        %v1536 = vadd.f32 %v1312, %v1438
        %v1537 = vadd.f32 %v1313, %v1438
        %v1538 = vadd.f32 %v1314, %v1438
        %v1539 = vadd.f32 %v1315, %v1438
        %v1540 = vadd.f32 %v1316, %v1438
        %v1541 = vadd.f32 %v1317, %v1438
        %v1542 = vadd.f32 %v1318, %v1438
        %v1543 = vadd.f32 %v1319, %v1438
        %v1544 = vadd.f32 %v1320, %v1443
        %v1545 = vadd.f32 %v1321, %v1443
        %v1546 = vadd.f32 %v1322, %v1443
        %v1547 = vadd.f32 %v1323, %v1443
        %v1548 = vadd.f32 %v1324, %v1443
        %v1549 = vadd.f32 %v1325, %v1443
        %v1550 = vadd.f32 %v1326, %v1443
        %v1551 = vadd.f32 %v1327, %v1443
        %v1552 = vadd.f32 %v1328, %v1448
        %v1553 = vadd.f32 %v1329, %v1448
        %v1554 = vadd.f32 %v1330, %v1448
        %v1555 = vadd.f32 %v1331, %v1448
        %v1556 = vadd.f32 %v1332, %v1448
        %v1557 = vadd.f32 %v1333, %v1448
        %v1558 = vadd.f32 %v1334, %v1448
        %v1559 = vadd.f32 %v1335, %v1448
        %v1560 = vadd.f32 %v1336, %v1453
        %v1561 = vadd.f32 %v1337, %v1453
        %v1562 = vadd.f32 %v1338, %v1453
        %v1563 = vadd.f32 %v1339, %v1453
        %v1564 = vadd.f32 %v1340, %v1453
        %v1565 = vadd.f32 %v1341, %v1453
        %v1566 = vadd.f32 %v1342, %v1453
        %v1567 = vadd.f32 %v1343, %v1453
        %v1568 = vadd.f32 %v1344, %v1458
        %v1569 = vadd.f32 %v1345, %v1458
        %v1570 = vadd.f32 %v1346, %v1458
        %v1571 = vadd.f32 %v1347, %v1458
        %v1572 = vadd.f32 %v1348, %v1458
        %v1573 = vadd.f32 %v1349, %v1458
        %v1574 = vadd.f32 %v1350, %v1458
        %v1575 = vadd.f32 %v1351, %v1458
        %v1576 = vadd.f32 %v1352, %v1463
        %v1577 = vadd.f32 %v1353, %v1463
        %v1578 = vadd.f32 %v1354, %v1463
        %v1579 = vadd.f32 %v1355, %v1463
        %v1580 = vadd.f32 %v1356, %v1463
        %v1581 = vadd.f32 %v1357, %v1463
        %v1582 = vadd.f32 %v1358, %v1463
        %v1583 = vadd.f32 %v1359, %v1463
        %v1584 = vadd.f32 %v1360, %v1468
        %v1585 = vadd.f32 %v1361, %v1468
        %v1586 = vadd.f32 %v1362, %v1468
        %v1587 = vadd.f32 %v1363, %v1468
        %v1588 = vadd.f32 %v1364, %v1468
        %v1589 = vadd.f32 %v1365, %v1468
        %v1590 = vadd.f32 %v1366, %v1468
        %v1591 = vadd.f32 %v1367, %v1468
        %v1592 = vadd.f32 %v1368, %v1473
        %v1593 = vadd.f32 %v1369, %v1473
        %v1594 = vadd.f32 %v1370, %v1473
        %v1595 = vadd.f32 %v1371, %v1473
        %v1596 = vadd.f32 %v1372, %v1473
        %v1597 = vadd.f32 %v1373, %v1473
        %v1598 = vadd.f32 %v1374, %v1473
        %v1599 = vadd.f32 %v1375, %v1473
        %v1600 = vadd.f32 %v1376, %v1478
        %v1601 = vadd.f32 %v1377, %v1478
        %v1602 = vadd.f32 %v1378, %v1478
        %v1603 = vadd.f32 %v1379, %v1478
        %v1604 = vadd.f32 %v1380, %v1478
        %v1605 = vadd.f32 %v1381, %v1478
        %v1606 = vadd.f32 %v1382, %v1478
        %v1607 = vadd.f32 %v1383, %v1478
        %v1608 = vmax.f32 %v1480, 0.0
        %v1609 = vmax.f32 %v1481, 0.0
        %v1610 = vmax.f32 %v1482, 0.0
        %v1611 = vmax.f32 %v1483, 0.0
        %v1612 = vmax.f32 %v1484, 0.0
        %v1613 = vmax.f32 %v1485, 0.0
        %v1614 = vmax.f32 %v1486, 0.0
        %v1615 = vmax.f32 %v1487, 0.0
        %v1616 = vmax.f32 %v1488, 0.0
        %v1617 = vmax.f32 %v1489, 0.0
        %v1618 = vmax.f32 %v1490, 0.0
        %v1619 = vmax.f32 %v1491, 0.0
        %v1620 = vmax.f32 %v1492, 0.0
        %v1621 = vmax.f32 %v1493, 0.0
        %v1622 = vmax.f32 %v1494, 0.0
        %v1623 = vmax.f32 %v1495, 0.0
        %v1624 = vmax.f32 %v1496, 0.0
        %v1625 = vmax.f32 %v1497, 0.0
        %v1626 = vmax.f32 %v1498, 0.0
        %v1627 = vmax.f32 %v1499, 0.0
        %v1628 = vmax.f32 %v1500, 0.0
        %v1629 = vmax.f32 %v1501, 0.0
        %v1630 = vmax.f32 %v1502, 0.0
        %v1631 = vmax.f32 %v1503, 0.0
        %v1632 = vmax.f32 %v1504, 0.0
        %v1633 = vmax.f32 %v1505, 0.0
        %v1634 = vmax.f32 %v1506, 0.0
        %v1635 = vmax.f32 %v1507, 0.0
        %v1636 = vmax.f32 %v1508, 0.0
        %v1637 = vmax.f32 %v1509, 0.0
        %v1638 = vmax.f32 %v1510, 0.0
        %v1639 = vmax.f32 %v1511, 0.0
        %v1640 = vmax.f32 %v1512, 0.0
        %v1641 = vmax.f32 %v1513, 0.0
        %v1642 = vmax.f32 %v1514, 0.0
        %v1643 = vmax.f32 %v1515, 0.0
        %v1644 = vmax.f32 %v1516, 0.0
        %v1645 = vmax.f32 %v1517, 0.0
        %v1646 = vmax.f32 %v1518, 0.0
        %v1647 = vmax.f32 %v1519, 0.0
        %v1648 = vmax.f32 %v1520, 0.0
        %v1649 = vmax.f32 %v1521, 0.0
        %v1650 = vmax.f32 %v1522, 0.0
        %v1651 = vmax.f32 %v1523, 0.0
        %v1652 = vmax.f32 %v1524, 0.0
        %v1653 = vmax.f32 %v1525, 0.0
        %v1654 = vmax.f32 %v1526, 0.0
        %v1655 = vmax.f32 %v1527, 0.0
        %v1656 = vmax.f32 %v1528, 0.0
        %v1657 = vmax.f32 %v1529, 0.0
        %v1658 = vmax.f32 %v1530, 0.0
        %v1659 = vmax.f32 %v1531, 0.0
        %v1660 = vmax.f32 %v1532, 0.0
        %v1661 = vmax.f32 %v1533, 0.0
        %v1662 = vmax.f32 %v1534, 0.0
        %v1663 = vmax.f32 %v1535, 0.0
        %v1664 = vmax.f32 %v1536, 0.0
        %v1665 = vmax.f32 %v1537, 0.0
        %v1666 = vmax.f32 %v1538, 0.0
        %v1667 = vmax.f32 %v1539, 0.0
        %v1668 = vmax.f32 %v1540, 0.0
        %v1669 = vmax.f32 %v1541, 0.0
        %v1670 = vmax.f32 %v1542, 0.0
        %v1671 = vmax.f32 %v1543, 0.0
        %v1672 = vmax.f32 %v1544, 0.0
        %v1673 = vmax.f32 %v1545, 0.0
        %v1674 = vmax.f32 %v1546, 0.0
        %v1675 = vmax.f32 %v1547, 0.0
        %v1676 = vmax.f32 %v1548, 0.0
        %v1677 = vmax.f32 %v1549, 0.0
        %v1678 = vmax.f32 %v1550, 0.0
        %v1679 = vmax.f32 %v1551, 0.0
        %v1680 = vmax.f32 %v1552, 0.0
        %v1681 = vmax.f32 %v1553, 0.0
        %v1682 = vmax.f32 %v1554, 0.0
        %v1683 = vmax.f32 %v1555, 0.0
        %v1684 = vmax.f32 %v1556, 0.0
        %v1685 = vmax.f32 %v1557, 0.0
        %v1686 = vmax.f32 %v1558, 0.0
        %v1687 = vmax.f32 %v1559, 0.0
        %v1688 = vmax.f32 %v1560, 0.0
        %v1689 = vmax.f32 %v1561, 0.0
        %v1690 = vmax.f32 %v1562, 0.0
        %v1691 = vmax.f32 %v1563, 0.0
        %v1692 = vmax.f32 %v1564, 0.0
        %v1693 = vmax.f32 %v1565, 0.0
        %v1694 = vmax.f32 %v1566, 0.0
        %v1695 = vmax.f32 %v1567, 0.0
        %v1696 = vmax.f32 %v1568, 0.0
        %v1697 = vmax.f32 %v1569, 0.0
        %v1698 = vmax.f32 %v1570, 0.0
        %v1699 = vmax.f32 %v1571, 0.0
        %v1700 = vmax.f32 %v1572, 0.0
        %v1701 = vmax.f32 %v1573, 0.0
        %v1702 = vmax.f32 %v1574, 0.0
        %v1703 = vmax.f32 %v1575, 0.0
        %v1704 = vmax.f32 %v1576, 0.0
        %v1705 = vmax.f32 %v1577, 0.0
        %v1706 = vmax.f32 %v1578, 0.0
        %v1707 = vmax.f32 %v1579, 0.0
        %v1708 = vmax.f32 %v1580, 0.0
        %v1709 = vmax.f32 %v1581, 0.0
        %v1710 = vmax.f32 %v1582, 0.0
        %v1711 = vmax.f32 %v1583, 0.0
        %v1712 = vmax.f32 %v1584, 0.0
        %v1713 = vmax.f32 %v1585, 0.0
        %v1714 = vmax.f32 %v1586, 0.0
        %v1715 = vmax.f32 %v1587, 0.0
        %v1716 = vmax.f32 %v1588, 0.0
        %v1717 = vmax.f32 %v1589, 0.0
        %v1718 = vmax.f32 %v1590, 0.0
        %v1719 = vmax.f32 %v1591, 0.0
        %v1720 = vmax.f32 %v1592, 0.0
        %v1721 = vmax.f32 %v1593, 0.0
        %v1722 = vmax.f32 %v1594, 0.0
        %v1723 = vmax.f32 %v1595, 0.0
        %v1724 = vmax.f32 %v1596, 0.0
        %v1725 = vmax.f32 %v1597, 0.0
        %v1726 = vmax.f32 %v1598, 0.0
        %v1727 = vmax.f32 %v1599, 0.0
        %v1728 = vmax.f32 %v1600, 0.0
        %v1729 = vmax.f32 %v1601, 0.0
        %v1730 = vmax.f32 %v1602, 0.0
        %v1731 = vmax.f32 %v1603, 0.0
        %v1732 = vmax.f32 %v1604, 0.0
        %v1733 = vmax.f32 %v1605, 0.0
        %v1734 = vmax.f32 %v1606, 0.0
        %v1735 = vmax.f32 %v1607, 0.0
        %v1736 = vpack.c.bf16 %v1616, %v1608
        %v1737 = vpack.c.bf16 %v1617, %v1609
        %v1738 = vpack.c.bf16 %v1618, %v1610
        %v1739 = vpack.c.bf16 %v1619, %v1611
        %v1740 = vpack.c.bf16 %v1620, %v1612
        %v1741 = vpack.c.bf16 %v1621, %v1613
        %v1742 = vpack.c.bf16 %v1622, %v1614
        %v1743 = vpack.c.bf16 %v1623, %v1615
        %v1744 = vpack.c.bf16 %v1632, %v1624
        %v1745 = vpack.c.bf16 %v1633, %v1625
        %v1746 = vpack.c.bf16 %v1634, %v1626
        %v1747 = vpack.c.bf16 %v1635, %v1627
        %v1748 = vpack.c.bf16 %v1636, %v1628
        %v1749 = vpack.c.bf16 %v1637, %v1629
        %v1750 = vpack.c.bf16 %v1638, %v1630
        %v1751 = vpack.c.bf16 %v1639, %v1631
        %v1752 = vpack.c.bf16 %v1648, %v1640
        %v1753 = vpack.c.bf16 %v1649, %v1641
        %v1754 = vpack.c.bf16 %v1650, %v1642
        %v1755 = vpack.c.bf16 %v1651, %v1643
        %v1756 = vpack.c.bf16 %v1652, %v1644
        %v1757 = vpack.c.bf16 %v1653, %v1645
        %v1758 = vpack.c.bf16 %v1654, %v1646
        %v1759 = vpack.c.bf16 %v1655, %v1647
        %v1760 = vpack.c.bf16 %v1664, %v1656
        %v1761 = vpack.c.bf16 %v1665, %v1657
        %v1762 = vpack.c.bf16 %v1666, %v1658
        %v1763 = vpack.c.bf16 %v1667, %v1659
        %v1764 = vpack.c.bf16 %v1668, %v1660
        %v1765 = vpack.c.bf16 %v1669, %v1661
        %v1766 = vpack.c.bf16 %v1670, %v1662
        %v1767 = vpack.c.bf16 %v1671, %v1663
        %v1768 = vpack.c.bf16 %v1680, %v1672
        %v1769 = vpack.c.bf16 %v1681, %v1673
        %v1770 = vpack.c.bf16 %v1682, %v1674
        %v1771 = vpack.c.bf16 %v1683, %v1675
        %v1772 = vpack.c.bf16 %v1684, %v1676
        %v1773 = vpack.c.bf16 %v1685, %v1677
        %v1774 = vpack.c.bf16 %v1686, %v1678
        %v1775 = vpack.c.bf16 %v1687, %v1679
        %v1776 = vpack.c.bf16 %v1696, %v1688
        %v1777 = vpack.c.bf16 %v1697, %v1689
        %v1778 = vpack.c.bf16 %v1698, %v1690
        %v1779 = vpack.c.bf16 %v1699, %v1691
        %v1780 = vpack.c.bf16 %v1700, %v1692
        %v1781 = vpack.c.bf16 %v1701, %v1693
        %v1782 = vpack.c.bf16 %v1702, %v1694
        %v1783 = vpack.c.bf16 %v1703, %v1695
        %v1784 = vpack.c.bf16 %v1712, %v1704
        %v1785 = vpack.c.bf16 %v1713, %v1705
        %v1786 = vpack.c.bf16 %v1714, %v1706
        %v1787 = vpack.c.bf16 %v1715, %v1707
        %v1788 = vpack.c.bf16 %v1716, %v1708
        %v1789 = vpack.c.bf16 %v1717, %v1709
        %v1790 = vpack.c.bf16 %v1718, %v1710
        %v1791 = vpack.c.bf16 %v1719, %v1711
        %v1792 = vpack.c.bf16 %v1728, %v1720
        %v1793 = vpack.c.bf16 %v1729, %v1721
        %v1794 = vpack.c.bf16 %v1730, %v1722
        %v1795 = vpack.c.bf16 %v1731, %v1723
        %v1796 = vpack.c.bf16 %v1732, %v1724
        %v1797 = vpack.c.bf16 %v1733, %v1725
        %v1798 = vpack.c.bf16 %v1734, %v1726
        %v1799 = vpack.c.bf16 %v1735, %v1727
        %1801 = vset.pattern.permute.xlu0 0
        %1802 = vperm.xlu0 %1801, %v423
        %v1803 = vpop.permute.xlu0 %1802
        %1806 = vset.pattern.permute.xlu0 0
        %1807 = vperm.xlu0 %1806, %v424
        %v1808 = vpop.permute.xlu0 %1807
        %1811 = vset.pattern.permute.xlu0 0
        %1812 = vperm.xlu0 %1811, %v425
        %v1813 = vpop.permute.xlu0 %1812
        %1816 = vset.pattern.permute.xlu0 0
        %1817 = vperm.xlu0 %1816, %v426
        %v1818 = vpop.permute.xlu0 %1817
        %1821 = vset.pattern.permute.xlu0 0
        %1822 = vperm.xlu0 %1821, %v427
        %v1823 = vpop.permute.xlu0 %1822
        %1826 = vset.pattern.permute.xlu0 0
        %1827 = vperm.xlu0 %1826, %v428
        %v1828 = vpop.permute.xlu0 %1827
        %1831 = vset.pattern.permute.xlu0 0
        %1832 = vperm.xlu0 %1831, %v429
        %v1833 = vpop.permute.xlu0 %1832
        %1836 = vset.pattern.permute.xlu0 0
        %1837 = vperm.xlu0 %1836, %v430
        %v1838 = vpop.permute.xlu0 %1837
        %1841 = vset.pattern.permute.xlu0 0
        %1842 = vperm.xlu0 %1841, %v431
        %v1843 = vpop.permute.xlu0 %1842
        %1846 = vset.pattern.permute.xlu0 0
        %1847 = vperm.xlu0 %1846, %v432
        %v1848 = vpop.permute.xlu0 %1847
        %1851 = vset.pattern.permute.xlu0 0
        %1852 = vperm.xlu0 %1851, %v433
        %v1853 = vpop.permute.xlu0 %1852
        %1856 = vset.pattern.permute.xlu0 0
        %1857 = vperm.xlu0 %1856, %v434
        %v1858 = vpop.permute.xlu0 %1857
        %1861 = vset.pattern.permute.xlu0 0
        %1862 = vperm.xlu0 %1861, %v435
        %v1863 = vpop.permute.xlu0 %1862
        %1866 = vset.pattern.permute.xlu0 0
        %1867 = vperm.xlu0 %1866, %v436
        %v1868 = vpop.permute.xlu0 %1867
        %1871 = vset.pattern.permute.xlu0 0
        %1872 = vperm.xlu0 %1871, %v437
        %v1873 = vpop.permute.xlu0 %1872
        %1876 = vset.pattern.permute.xlu0 0
        %1877 = vperm.xlu0 %1876, %v438
        %v1878 = vpop.permute.xlu0 %1877
        %v1896 = vunpack.c.l.b16 %v407
        %v1897 = vunpack.c.l.b16 %v408
        %v1898 = vunpack.c.l.b16 %v409
        %v1899 = vunpack.c.l.b16 %v410
        %v1900 = vunpack.c.l.b16 %v411
        %v1901 = vunpack.c.l.b16 %v412
        %v1902 = vunpack.c.l.b16 %v413
        %v1903 = vunpack.c.l.b16 %v414
        %v1904 = vunpack.c.l.b16 %v415
        %v1905 = vunpack.c.l.b16 %v416
        %v1906 = vunpack.c.l.b16 %v417
        %v1907 = vunpack.c.l.b16 %v418
        %v1908 = vunpack.c.l.b16 %v419
        %v1909 = vunpack.c.l.b16 %v420
        %v1910 = vunpack.c.l.b16 %v421
        %v1911 = vunpack.c.l.b16 %v422
        %v1912 = vpack.c.b16 %v1897, %v1896
        %v1913 = vpack.c.b16 %v1899, %v1898
        %v1914 = vpack.c.b16 %v1901, %v1900
        %v1915 = vpack.c.b16 %v1903, %v1902
        %v1916 = vpack.c.b16 %v1905, %v1904
        %v1917 = vpack.c.b16 %v1907, %v1906
        %v1918 = vpack.c.b16 %v1909, %v1908
        %v1919 = vpack.c.b16 %v1911, %v1910
        %1928 = vmatpush.bf16.msra.mxu0 %v1792
        %1929 = vmatpush.bf16.msra.mxu0 %v1784
        %1930 = vmatpush.bf16.msra.mxu0 %v1776
        %1931 = vmatpush.bf16.msra.mxu0 %v1768
        %1932 = vmatpush.bf16.msra.mxu0 %v1760
        %1933 = vmatpush.bf16.msra.mxu0 %v1752
        %1934 = vmatpush.bf16.msra.mxu0 %v1744
        %1935 = vmatpush.bf16.msra.mxu0 %v1736
        %1936 = vmatmul.bf16.gmra.mxu0 %v1912
        %v1937 = vpop.f32.mrf.mxu0
        %v1938 = vadd.f32 %v1803, %v1937
        %v1939 = vpop.f32.mrf.mxu0
        %v1940 = vadd.f32 %v1808, %v1939
        %1941 = vmatmul.bf16.gmra.mxu0 %v1913
        %v1942 = vpop.f32.mrf.mxu0
        %v1943 = vadd.f32 %v1813, %v1942
        %v1944 = vpop.f32.mrf.mxu0
        %v1945 = vadd.f32 %v1818, %v1944
        %1946 = vmatmul.bf16.gmra.mxu0 %v1914
        %v1947 = vpop.f32.mrf.mxu0
        %v1948 = vadd.f32 %v1823, %v1947
        %v1949 = vpop.f32.mrf.mxu0
        %v1950 = vadd.f32 %v1828, %v1949
        %1951 = vmatmul.bf16.gmra.mxu0 %v1915
        %v1952 = vpop.f32.mrf.mxu0
        %v1953 = vadd.f32 %v1833, %v1952
        %v1954 = vpop.f32.mrf.mxu0
        %v1955 = vadd.f32 %v1838, %v1954
        %1956 = vmatmul.bf16.gmra.mxu0 %v1916
        %v1957 = vpop.f32.mrf.mxu0
        %v1958 = vadd.f32 %v1843, %v1957
        %v1959 = vpop.f32.mrf.mxu0
        %v1960 = vadd.f32 %v1848, %v1959
        %1961 = vmatmul.bf16.gmra.mxu0 %v1917
        %v1962 = vpop.f32.mrf.mxu0
        %v1963 = vadd.f32 %v1853, %v1962
        %v1964 = vpop.f32.mrf.mxu0
        %v1965 = vadd.f32 %v1858, %v1964
        %1966 = vmatmul.bf16.gmra.mxu0 %v1918
        %v1967 = vpop.f32.mrf.mxu0
        %v1968 = vadd.f32 %v1863, %v1967
        %v1969 = vpop.f32.mrf.mxu0
        %v1970 = vadd.f32 %v1868, %v1969
        %1971 = vmatmul.bf16.gmra.mxu0 %v1919
        %v1972 = vpop.f32.mrf.mxu0
        %v1973 = vadd.f32 %v1873, %v1972
        %v1974 = vpop.f32.mrf.mxu0
        %v1975 = vadd.f32 %v1878, %v1974
        %1976 = vdwg.mxu0
        %1977 = vmatpush.bf16.msra.mxu0 %v1793
        %1978 = vmatpush.bf16.msra.mxu0 %v1785
        %1979 = vmatpush.bf16.msra.mxu0 %v1777
        %1980 = vmatpush.bf16.msra.mxu0 %v1769
        %1981 = vmatpush.bf16.msra.mxu0 %v1761
        %1982 = vmatpush.bf16.msra.mxu0 %v1753
        %1983 = vmatpush.bf16.msra.mxu0 %v1745
        %1984 = vmatpush.bf16.msra.mxu0 %v1737
        %1985 = vmatmul.bf16.gmra.mxu0 %v1912
        %v1986 = vpop.f32.mrf.mxu0
        %v1987 = vadd.f32 %v1803, %v1986
        %v1988 = vpop.f32.mrf.mxu0
        %v1989 = vadd.f32 %v1808, %v1988
        %1990 = vmatmul.bf16.gmra.mxu0 %v1913
        %v1991 = vpop.f32.mrf.mxu0
        %v1992 = vadd.f32 %v1813, %v1991
        %v1993 = vpop.f32.mrf.mxu0
        %v1994 = vadd.f32 %v1818, %v1993
        %1995 = vmatmul.bf16.gmra.mxu0 %v1914
        %v1996 = vpop.f32.mrf.mxu0
        %v1997 = vadd.f32 %v1823, %v1996
        %v1998 = vpop.f32.mrf.mxu0
        %v1999 = vadd.f32 %v1828, %v1998
        %2000 = vmatmul.bf16.gmra.mxu0 %v1915
        %v2001 = vpop.f32.mrf.mxu0
        %v2002 = vadd.f32 %v1833, %v2001
        %v2003 = vpop.f32.mrf.mxu0
        %v2004 = vadd.f32 %v1838, %v2003
        %2005 = vmatmul.bf16.gmra.mxu0 %v1916
        %v2006 = vpop.f32.mrf.mxu0
        %v2007 = vadd.f32 %v1843, %v2006
        %v2008 = vpop.f32.mrf.mxu0
        %v2009 = vadd.f32 %v1848, %v2008
        %2010 = vmatmul.bf16.gmra.mxu0 %v1917
        %v2011 = vpop.f32.mrf.mxu0
        %v2012 = vadd.f32 %v1853, %v2011
        %v2013 = vpop.f32.mrf.mxu0
        %v2014 = vadd.f32 %v1858, %v2013
        %2015 = vmatmul.bf16.gmra.mxu0 %v1918
        %v2016 = vpop.f32.mrf.mxu0
        %v2017 = vadd.f32 %v1863, %v2016
        %v2018 = vpop.f32.mrf.mxu0
        %v2019 = vadd.f32 %v1868, %v2018
        %2020 = vmatmul.bf16.gmra.mxu0 %v1919
        %v2021 = vpop.f32.mrf.mxu0
        %v2022 = vadd.f32 %v1873, %v2021
        %v2023 = vpop.f32.mrf.mxu0
        %v2024 = vadd.f32 %v1878, %v2023
        %2025 = vdwg.mxu0
        %2026 = vmatpush.bf16.msra.mxu0 %v1794
        %2027 = vmatpush.bf16.msra.mxu0 %v1786
        %2028 = vmatpush.bf16.msra.mxu0 %v1778
        %2029 = vmatpush.bf16.msra.mxu0 %v1770
        %2030 = vmatpush.bf16.msra.mxu0 %v1762
        %2031 = vmatpush.bf16.msra.mxu0 %v1754
        %2032 = vmatpush.bf16.msra.mxu0 %v1746
        %2033 = vmatpush.bf16.msra.mxu0 %v1738
        %2034 = vmatmul.bf16.gmra.mxu0 %v1912
        %v2035 = vpop.f32.mrf.mxu0
        %v2036 = vadd.f32 %v1803, %v2035
        %v2037 = vpop.f32.mrf.mxu0
        %v2038 = vadd.f32 %v1808, %v2037
        %2039 = vmatmul.bf16.gmra.mxu0 %v1913
        %v2040 = vpop.f32.mrf.mxu0
        %v2041 = vadd.f32 %v1813, %v2040
        %v2042 = vpop.f32.mrf.mxu0
        %v2043 = vadd.f32 %v1818, %v2042
        %2044 = vmatmul.bf16.gmra.mxu0 %v1914
        %v2045 = vpop.f32.mrf.mxu0
        %v2046 = vadd.f32 %v1823, %v2045
        %v2047 = vpop.f32.mrf.mxu0
        %v2048 = vadd.f32 %v1828, %v2047
        %2049 = vmatmul.bf16.gmra.mxu0 %v1915
        %v2050 = vpop.f32.mrf.mxu0
        %v2051 = vadd.f32 %v1833, %v2050
        %v2052 = vpop.f32.mrf.mxu0
        %v2053 = vadd.f32 %v1838, %v2052
        %2054 = vmatmul.bf16.gmra.mxu0 %v1916
        %v2055 = vpop.f32.mrf.mxu0
        %v2056 = vadd.f32 %v1843, %v2055
        %v2057 = vpop.f32.mrf.mxu0
        %v2058 = vadd.f32 %v1848, %v2057
        %2059 = vmatmul.bf16.gmra.mxu0 %v1917
        %v2060 = vpop.f32.mrf.mxu0
        %v2061 = vadd.f32 %v1853, %v2060
        %v2062 = vpop.f32.mrf.mxu0
        %v2063 = vadd.f32 %v1858, %v2062
        %2064 = vmatmul.bf16.gmra.mxu0 %v1918
        %v2065 = vpop.f32.mrf.mxu0
        %v2066 = vadd.f32 %v1863, %v2065
        %v2067 = vpop.f32.mrf.mxu0
        %v2068 = vadd.f32 %v1868, %v2067
        %2069 = vmatmul.bf16.gmra.mxu0 %v1919
        %v2070 = vpop.f32.mrf.mxu0
        %v2071 = vadd.f32 %v1873, %v2070
        %v2072 = vpop.f32.mrf.mxu0
        %v2073 = vadd.f32 %v1878, %v2072
        %2074 = vdwg.mxu0
        %2075 = vmatpush.bf16.msra.mxu0 %v1795
        %2076 = vmatpush.bf16.msra.mxu0 %v1787
        %2077 = vmatpush.bf16.msra.mxu0 %v1779
        %2078 = vmatpush.bf16.msra.mxu0 %v1771
        %2079 = vmatpush.bf16.msra.mxu0 %v1763
        %2080 = vmatpush.bf16.msra.mxu0 %v1755
        %2081 = vmatpush.bf16.msra.mxu0 %v1747
        %2082 = vmatpush.bf16.msra.mxu0 %v1739
        %2083 = vmatmul.bf16.gmra.mxu0 %v1912
        %v2084 = vpop.f32.mrf.mxu0
        %v2085 = vadd.f32 %v1803, %v2084
        %v2086 = vpop.f32.mrf.mxu0
        %v2087 = vadd.f32 %v1808, %v2086
        %2088 = vmatmul.bf16.gmra.mxu0 %v1913
        %v2089 = vpop.f32.mrf.mxu0
        %v2090 = vadd.f32 %v1813, %v2089
        %v2091 = vpop.f32.mrf.mxu0
        %v2092 = vadd.f32 %v1818, %v2091
        %2093 = vmatmul.bf16.gmra.mxu0 %v1914
        %v2094 = vpop.f32.mrf.mxu0
        %v2095 = vadd.f32 %v1823, %v2094
        %v2096 = vpop.f32.mrf.mxu0
        %v2097 = vadd.f32 %v1828, %v2096
        %2098 = vmatmul.bf16.gmra.mxu0 %v1915
        %v2099 = vpop.f32.mrf.mxu0
        %v2100 = vadd.f32 %v1833, %v2099
        %v2101 = vpop.f32.mrf.mxu0
        %v2102 = vadd.f32 %v1838, %v2101
        %2103 = vmatmul.bf16.gmra.mxu0 %v1916
        %v2104 = vpop.f32.mrf.mxu0
        %v2105 = vadd.f32 %v1843, %v2104
        %v2106 = vpop.f32.mrf.mxu0
        %v2107 = vadd.f32 %v1848, %v2106
        %2108 = vmatmul.bf16.gmra.mxu0 %v1917
        %v2109 = vpop.f32.mrf.mxu0
        %v2110 = vadd.f32 %v1853, %v2109
        %v2111 = vpop.f32.mrf.mxu0
        %v2112 = vadd.f32 %v1858, %v2111
        %2113 = vmatmul.bf16.gmra.mxu0 %v1918
        %v2114 = vpop.f32.mrf.mxu0
        %v2115 = vadd.f32 %v1863, %v2114
        %v2116 = vpop.f32.mrf.mxu0
        %v2117 = vadd.f32 %v1868, %v2116
        %2118 = vmatmul.bf16.gmra.mxu0 %v1919
        %v2119 = vpop.f32.mrf.mxu0
        %v2120 = vadd.f32 %v1873, %v2119
        %v2121 = vpop.f32.mrf.mxu0
        %v2122 = vadd.f32 %v1878, %v2121
        %2123 = vdwg.mxu0
        %2124 = vmatpush.bf16.msra.mxu0 %v1796
        %2125 = vmatpush.bf16.msra.mxu0 %v1788
        %2126 = vmatpush.bf16.msra.mxu0 %v1780
        %2127 = vmatpush.bf16.msra.mxu0 %v1772
        %2128 = vmatpush.bf16.msra.mxu0 %v1764
        %2129 = vmatpush.bf16.msra.mxu0 %v1756
        %2130 = vmatpush.bf16.msra.mxu0 %v1748
        %2131 = vmatpush.bf16.msra.mxu0 %v1740
        %2132 = vmatmul.bf16.gmra.mxu0 %v1912
        %v2133 = vpop.f32.mrf.mxu0
        %v2134 = vadd.f32 %v1803, %v2133
        %v2135 = vpop.f32.mrf.mxu0
        %v2136 = vadd.f32 %v1808, %v2135
        %2137 = vmatmul.bf16.gmra.mxu0 %v1913
        %v2138 = vpop.f32.mrf.mxu0
        %v2139 = vadd.f32 %v1813, %v2138
        %v2140 = vpop.f32.mrf.mxu0
        %v2141 = vadd.f32 %v1818, %v2140
        %2142 = vmatmul.bf16.gmra.mxu0 %v1914
        %v2143 = vpop.f32.mrf.mxu0
        %v2144 = vadd.f32 %v1823, %v2143
        %v2145 = vpop.f32.mrf.mxu0
        %v2146 = vadd.f32 %v1828, %v2145
        %2147 = vmatmul.bf16.gmra.mxu0 %v1915
        %v2148 = vpop.f32.mrf.mxu0
        %v2149 = vadd.f32 %v1833, %v2148
        %v2150 = vpop.f32.mrf.mxu0
        %v2151 = vadd.f32 %v1838, %v2150
        %2152 = vmatmul.bf16.gmra.mxu0 %v1916
        %v2153 = vpop.f32.mrf.mxu0
        %v2154 = vadd.f32 %v1843, %v2153
        %v2155 = vpop.f32.mrf.mxu0
        %v2156 = vadd.f32 %v1848, %v2155
        %2157 = vmatmul.bf16.gmra.mxu0 %v1917
        %v2158 = vpop.f32.mrf.mxu0
        %v2159 = vadd.f32 %v1853, %v2158
        %v2160 = vpop.f32.mrf.mxu0
        %v2161 = vadd.f32 %v1858, %v2160
        %2162 = vmatmul.bf16.gmra.mxu0 %v1918
        %v2163 = vpop.f32.mrf.mxu0
        %v2164 = vadd.f32 %v1863, %v2163
        %v2165 = vpop.f32.mrf.mxu0
        %v2166 = vadd.f32 %v1868, %v2165
        %2167 = vmatmul.bf16.gmra.mxu0 %v1919
        %v2168 = vpop.f32.mrf.mxu0
        %v2169 = vadd.f32 %v1873, %v2168
        %v2170 = vpop.f32.mrf.mxu0
        %v2171 = vadd.f32 %v1878, %v2170
        %2172 = vdwg.mxu0
        %2173 = vmatpush.bf16.msra.mxu0 %v1797
        %2174 = vmatpush.bf16.msra.mxu0 %v1789
        %2175 = vmatpush.bf16.msra.mxu0 %v1781
        %2176 = vmatpush.bf16.msra.mxu0 %v1773
        %2177 = vmatpush.bf16.msra.mxu0 %v1765
        %2178 = vmatpush.bf16.msra.mxu0 %v1757
        %2179 = vmatpush.bf16.msra.mxu0 %v1749
        %2180 = vmatpush.bf16.msra.mxu0 %v1741
        %2181 = vmatmul.bf16.gmra.mxu0 %v1912
        %v2182 = vpop.f32.mrf.mxu0
        %v2183 = vadd.f32 %v1803, %v2182
        %v2184 = vpop.f32.mrf.mxu0
        %v2185 = vadd.f32 %v1808, %v2184
        %2186 = vmatmul.bf16.gmra.mxu0 %v1913
        %v2187 = vpop.f32.mrf.mxu0
        %v2188 = vadd.f32 %v1813, %v2187
        %v2189 = vpop.f32.mrf.mxu0
        %v2190 = vadd.f32 %v1818, %v2189
        %2191 = vmatmul.bf16.gmra.mxu0 %v1914
        %v2192 = vpop.f32.mrf.mxu0
        %v2193 = vadd.f32 %v1823, %v2192
        %v2194 = vpop.f32.mrf.mxu0
        %v2195 = vadd.f32 %v1828, %v2194
        %2196 = vmatmul.bf16.gmra.mxu0 %v1915
        %v2197 = vpop.f32.mrf.mxu0
        %v2198 = vadd.f32 %v1833, %v2197
        %v2199 = vpop.f32.mrf.mxu0
        %v2200 = vadd.f32 %v1838, %v2199
        %2201 = vmatmul.bf16.gmra.mxu0 %v1916
        %v2202 = vpop.f32.mrf.mxu0
        %v2203 = vadd.f32 %v1843, %v2202
        %v2204 = vpop.f32.mrf.mxu0
        %v2205 = vadd.f32 %v1848, %v2204
        %2206 = vmatmul.bf16.gmra.mxu0 %v1917
        %v2207 = vpop.f32.mrf.mxu0
        %v2208 = vadd.f32 %v1853, %v2207
        %v2209 = vpop.f32.mrf.mxu0
        %v2210 = vadd.f32 %v1858, %v2209
        %2211 = vmatmul.bf16.gmra.mxu0 %v1918
        %v2212 = vpop.f32.mrf.mxu0
        %v2213 = vadd.f32 %v1863, %v2212
        %v2214 = vpop.f32.mrf.mxu0
        %v2215 = vadd.f32 %v1868, %v2214
        %2216 = vmatmul.bf16.gmra.mxu0 %v1919
        %v2217 = vpop.f32.mrf.mxu0
        %v2218 = vadd.f32 %v1873, %v2217
        %v2219 = vpop.f32.mrf.mxu0
        %v2220 = vadd.f32 %v1878, %v2219
        %2221 = vdwg.mxu0
        %2222 = vmatpush.bf16.msra.mxu0 %v1798
        %2223 = vmatpush.bf16.msra.mxu0 %v1790
        %2224 = vmatpush.bf16.msra.mxu0 %v1782
        %2225 = vmatpush.bf16.msra.mxu0 %v1774
        %2226 = vmatpush.bf16.msra.mxu0 %v1766
        %2227 = vmatpush.bf16.msra.mxu0 %v1758
        %2228 = vmatpush.bf16.msra.mxu0 %v1750
        %2229 = vmatpush.bf16.msra.mxu0 %v1742
        %2230 = vmatmul.bf16.gmra.mxu0 %v1912
        %v2231 = vpop.f32.mrf.mxu0
        %v2232 = vadd.f32 %v1803, %v2231
        %v2233 = vpop.f32.mrf.mxu0
        %v2234 = vadd.f32 %v1808, %v2233
        %2235 = vmatmul.bf16.gmra.mxu0 %v1913
        %v2236 = vpop.f32.mrf.mxu0
        %v2237 = vadd.f32 %v1813, %v2236
        %v2238 = vpop.f32.mrf.mxu0
        %v2239 = vadd.f32 %v1818, %v2238
        %2240 = vmatmul.bf16.gmra.mxu0 %v1914
        %v2241 = vpop.f32.mrf.mxu0
        %v2242 = vadd.f32 %v1823, %v2241
        %v2243 = vpop.f32.mrf.mxu0
        %v2244 = vadd.f32 %v1828, %v2243
        %2245 = vmatmul.bf16.gmra.mxu0 %v1915
        %v2246 = vpop.f32.mrf.mxu0
        %v2247 = vadd.f32 %v1833, %v2246
        %v2248 = vpop.f32.mrf.mxu0
        %v2249 = vadd.f32 %v1838, %v2248
        %2250 = vmatmul.bf16.gmra.mxu0 %v1916
        %v2251 = vpop.f32.mrf.mxu0
        %v2252 = vadd.f32 %v1843, %v2251
        %v2253 = vpop.f32.mrf.mxu0
        %v2254 = vadd.f32 %v1848, %v2253
        %2255 = vmatmul.bf16.gmra.mxu0 %v1917
        %v2256 = vpop.f32.mrf.mxu0
        %v2257 = vadd.f32 %v1853, %v2256
        %v2258 = vpop.f32.mrf.mxu0
        %v2259 = vadd.f32 %v1858, %v2258
        %2260 = vmatmul.bf16.gmra.mxu0 %v1918
        %v2261 = vpop.f32.mrf.mxu0
        %v2262 = vadd.f32 %v1863, %v2261
        %v2263 = vpop.f32.mrf.mxu0
        %v2264 = vadd.f32 %v1868, %v2263
        %2265 = vmatmul.bf16.gmra.mxu0 %v1919
        %v2266 = vpop.f32.mrf.mxu0
        %v2267 = vadd.f32 %v1873, %v2266
        %v2268 = vpop.f32.mrf.mxu0
        %v2269 = vadd.f32 %v1878, %v2268
        %2270 = vdwg.mxu0
        %2271 = vmatpush.bf16.msra.mxu0 %v1799
        %2272 = vmatpush.bf16.msra.mxu0 %v1791
        %2273 = vmatpush.bf16.msra.mxu0 %v1783
        %2274 = vmatpush.bf16.msra.mxu0 %v1775
        %2275 = vmatpush.bf16.msra.mxu0 %v1767
        %2276 = vmatpush.bf16.msra.mxu0 %v1759
        %2277 = vmatpush.bf16.msra.mxu0 %v1751
        %2278 = vmatpush.bf16.msra.mxu0 %v1743
        %2279 = vmatmul.bf16.gmra.mxu0 %v1912
        %v2280 = vpop.f32.mrf.mxu0
        %v2281 = vadd.f32 %v1803, %v2280
        %v2282 = vpop.f32.mrf.mxu0
        %v2283 = vadd.f32 %v1808, %v2282
        %2284 = vmatmul.bf16.gmra.mxu0 %v1913
        %v2285 = vpop.f32.mrf.mxu0
        %v2286 = vadd.f32 %v1813, %v2285
        %v2287 = vpop.f32.mrf.mxu0
        %v2288 = vadd.f32 %v1818, %v2287
        %2289 = vmatmul.bf16.gmra.mxu0 %v1914
        %v2290 = vpop.f32.mrf.mxu0
        %v2291 = vadd.f32 %v1823, %v2290
        %v2292 = vpop.f32.mrf.mxu0
        %v2293 = vadd.f32 %v1828, %v2292
        %2294 = vmatmul.bf16.gmra.mxu0 %v1915
        %v2295 = vpop.f32.mrf.mxu0
        %v2296 = vadd.f32 %v1833, %v2295
        %v2297 = vpop.f32.mrf.mxu0
        %v2298 = vadd.f32 %v1838, %v2297
        %2299 = vmatmul.bf16.gmra.mxu0 %v1916
        %v2300 = vpop.f32.mrf.mxu0
        %v2301 = vadd.f32 %v1843, %v2300
        %v2302 = vpop.f32.mrf.mxu0
        %v2303 = vadd.f32 %v1848, %v2302
        %2304 = vmatmul.bf16.gmra.mxu0 %v1917
        %v2305 = vpop.f32.mrf.mxu0
        %v2306 = vadd.f32 %v1853, %v2305
        %v2307 = vpop.f32.mrf.mxu0
        %v2308 = vadd.f32 %v1858, %v2307
        %2309 = vmatmul.bf16.gmra.mxu0 %v1918
        %v2310 = vpop.f32.mrf.mxu0
        %v2311 = vadd.f32 %v1863, %v2310
        %v2312 = vpop.f32.mrf.mxu0
        %v2313 = vadd.f32 %v1868, %v2312
        %2314 = vmatmul.bf16.gmra.mxu0 %v1919
        %v2315 = vpop.f32.mrf.mxu0
        %v2316 = vadd.f32 %v1873, %v2315
        %v2317 = vpop.f32.mrf.mxu0
        %v2318 = vadd.f32 %v1878, %v2317
        %2319 = vdwg.mxu0
        %v2320 = vmax.f32 %v1938, 0.0
        %v2321 = vmax.f32 %v1987, 0.0
        %v2322 = vmax.f32 %v2036, 0.0
        %v2323 = vmax.f32 %v2085, 0.0
        %v2324 = vmax.f32 %v2134, 0.0
        %v2325 = vmax.f32 %v2183, 0.0
        %v2326 = vmax.f32 %v2232, 0.0
        %v2327 = vmax.f32 %v2281, 0.0
        %v2328 = vmax.f32 %v1940, 0.0
        %v2329 = vmax.f32 %v1989, 0.0
        %v2330 = vmax.f32 %v2038, 0.0
        %v2331 = vmax.f32 %v2087, 0.0
        %v2332 = vmax.f32 %v2136, 0.0
        %v2333 = vmax.f32 %v2185, 0.0
        %v2334 = vmax.f32 %v2234, 0.0
        %v2335 = vmax.f32 %v2283, 0.0
        %v2336 = vmax.f32 %v1943, 0.0
        %v2337 = vmax.f32 %v1992, 0.0
        %v2338 = vmax.f32 %v2041, 0.0
        %v2339 = vmax.f32 %v2090, 0.0
        %v2340 = vmax.f32 %v2139, 0.0
        %v2341 = vmax.f32 %v2188, 0.0
        %v2342 = vmax.f32 %v2237, 0.0
        %v2343 = vmax.f32 %v2286, 0.0
        %v2344 = vmax.f32 %v1945, 0.0
        %v2345 = vmax.f32 %v1994, 0.0
        %v2346 = vmax.f32 %v2043, 0.0
        %v2347 = vmax.f32 %v2092, 0.0
        %v2348 = vmax.f32 %v2141, 0.0
        %v2349 = vmax.f32 %v2190, 0.0
        %v2350 = vmax.f32 %v2239, 0.0
        %v2351 = vmax.f32 %v2288, 0.0
        %v2352 = vmax.f32 %v1948, 0.0
        %v2353 = vmax.f32 %v1997, 0.0
        %v2354 = vmax.f32 %v2046, 0.0
        %v2355 = vmax.f32 %v2095, 0.0
        %v2356 = vmax.f32 %v2144, 0.0
        %v2357 = vmax.f32 %v2193, 0.0
        %v2358 = vmax.f32 %v2242, 0.0
        %v2359 = vmax.f32 %v2291, 0.0
        %v2360 = vmax.f32 %v1950, 0.0
        %v2361 = vmax.f32 %v1999, 0.0
        %v2362 = vmax.f32 %v2048, 0.0
        %v2363 = vmax.f32 %v2097, 0.0
        %v2364 = vmax.f32 %v2146, 0.0
        %v2365 = vmax.f32 %v2195, 0.0
        %v2366 = vmax.f32 %v2244, 0.0
        %v2367 = vmax.f32 %v2293, 0.0
        %v2368 = vmax.f32 %v1953, 0.0
        %v2369 = vmax.f32 %v2002, 0.0
        %v2370 = vmax.f32 %v2051, 0.0
        %v2371 = vmax.f32 %v2100, 0.0
        %v2372 = vmax.f32 %v2149, 0.0
        %v2373 = vmax.f32 %v2198, 0.0
        %v2374 = vmax.f32 %v2247, 0.0
        %v2375 = vmax.f32 %v2296, 0.0
        %v2376 = vmax.f32 %v1955, 0.0
        %v2377 = vmax.f32 %v2004, 0.0
        %v2378 = vmax.f32 %v2053, 0.0
        %v2379 = vmax.f32 %v2102, 0.0
        %v2380 = vmax.f32 %v2151, 0.0
        %v2381 = vmax.f32 %v2200, 0.0
        %v2382 = vmax.f32 %v2249, 0.0
        %v2383 = vmax.f32 %v2298, 0.0
        %v2384 = vmax.f32 %v1958, 0.0
        %v2385 = vmax.f32 %v2007, 0.0
        %v2386 = vmax.f32 %v2056, 0.0
        %v2387 = vmax.f32 %v2105, 0.0
        %v2388 = vmax.f32 %v2154, 0.0
        %v2389 = vmax.f32 %v2203, 0.0
        %v2390 = vmax.f32 %v2252, 0.0
        %v2391 = vmax.f32 %v2301, 0.0
        %v2392 = vmax.f32 %v1960, 0.0
        %v2393 = vmax.f32 %v2009, 0.0
        %v2394 = vmax.f32 %v2058, 0.0
        %v2395 = vmax.f32 %v2107, 0.0
        %v2396 = vmax.f32 %v2156, 0.0
        %v2397 = vmax.f32 %v2205, 0.0
        %v2398 = vmax.f32 %v2254, 0.0
        %v2399 = vmax.f32 %v2303, 0.0
        %v2400 = vmax.f32 %v1963, 0.0
        %v2401 = vmax.f32 %v2012, 0.0
        %v2402 = vmax.f32 %v2061, 0.0
        %v2403 = vmax.f32 %v2110, 0.0
        %v2404 = vmax.f32 %v2159, 0.0
        %v2405 = vmax.f32 %v2208, 0.0
        %v2406 = vmax.f32 %v2257, 0.0
        %v2407 = vmax.f32 %v2306, 0.0
        %v2408 = vmax.f32 %v1965, 0.0
        %v2409 = vmax.f32 %v2014, 0.0
        %v2410 = vmax.f32 %v2063, 0.0
        %v2411 = vmax.f32 %v2112, 0.0
        %v2412 = vmax.f32 %v2161, 0.0
        %v2413 = vmax.f32 %v2210, 0.0
        %v2414 = vmax.f32 %v2259, 0.0
        %v2415 = vmax.f32 %v2308, 0.0
        %v2416 = vmax.f32 %v1968, 0.0
        %v2417 = vmax.f32 %v2017, 0.0
        %v2418 = vmax.f32 %v2066, 0.0
        %v2419 = vmax.f32 %v2115, 0.0
        %v2420 = vmax.f32 %v2164, 0.0
        %v2421 = vmax.f32 %v2213, 0.0
        %v2422 = vmax.f32 %v2262, 0.0
        %v2423 = vmax.f32 %v2311, 0.0
        %v2424 = vmax.f32 %v1970, 0.0
        %v2425 = vmax.f32 %v2019, 0.0
        %v2426 = vmax.f32 %v2068, 0.0
        %v2427 = vmax.f32 %v2117, 0.0
        %v2428 = vmax.f32 %v2166, 0.0
        %v2429 = vmax.f32 %v2215, 0.0
        %v2430 = vmax.f32 %v2264, 0.0
        %v2431 = vmax.f32 %v2313, 0.0
        %v2432 = vmax.f32 %v1973, 0.0
        %v2433 = vmax.f32 %v2022, 0.0
        %v2434 = vmax.f32 %v2071, 0.0
        %v2435 = vmax.f32 %v2120, 0.0
        %v2436 = vmax.f32 %v2169, 0.0
        %v2437 = vmax.f32 %v2218, 0.0
        %v2438 = vmax.f32 %v2267, 0.0
        %v2439 = vmax.f32 %v2316, 0.0
        %v2440 = vmax.f32 %v1975, 0.0
        %v2441 = vmax.f32 %v2024, 0.0
        %v2442 = vmax.f32 %v2073, 0.0
        %v2443 = vmax.f32 %v2122, 0.0
        %v2444 = vmax.f32 %v2171, 0.0
        %v2445 = vmax.f32 %v2220, 0.0
        %v2446 = vmax.f32 %v2269, 0.0
        %v2447 = vmax.f32 %v2318, 0.0
        %2449 = vset.pattern.permute.xlu0 0
        %2450 = vperm.xlu0 %2449, %v439
        %v2451 = vpop.permute.xlu0 %2450
        %2454 = vset.pattern.permute.xlu0 0
        %2455 = vperm.xlu0 %2454, %v440
        %v2456 = vpop.permute.xlu0 %2455
        %2459 = vset.pattern.permute.xlu0 0
        %2460 = vperm.xlu0 %2459, %v441
        %v2461 = vpop.permute.xlu0 %2460
        %2464 = vset.pattern.permute.xlu0 0
        %2465 = vperm.xlu0 %2464, %v442
        %v2466 = vpop.permute.xlu0 %2465
        %2469 = vset.pattern.permute.xlu0 0
        %2470 = vperm.xlu0 %2469, %v443
        %v2471 = vpop.permute.xlu0 %2470
        %2474 = vset.pattern.permute.xlu0 0
        %2475 = vperm.xlu0 %2474, %v444
        %v2476 = vpop.permute.xlu0 %2475
        %2479 = vset.pattern.permute.xlu0 0
        %2480 = vperm.xlu0 %2479, %v445
        %v2481 = vpop.permute.xlu0 %2480
        %2484 = vset.pattern.permute.xlu0 0
        %2485 = vperm.xlu0 %2484, %v446
        %v2486 = vpop.permute.xlu0 %2485
        %2489 = vset.pattern.permute.xlu0 0
        %2490 = vperm.xlu0 %2489, %v447
        %v2491 = vpop.permute.xlu0 %2490
        %2494 = vset.pattern.permute.xlu0 0
        %2495 = vperm.xlu0 %2494, %v448
        %v2496 = vpop.permute.xlu0 %2495
        %2499 = vset.pattern.permute.xlu0 0
        %2500 = vperm.xlu0 %2499, %v449
        %v2501 = vpop.permute.xlu0 %2500
        %2504 = vset.pattern.permute.xlu0 0
        %2505 = vperm.xlu0 %2504, %v450
        %v2506 = vpop.permute.xlu0 %2505
        %2509 = vset.pattern.permute.xlu0 0
        %2510 = vperm.xlu0 %2509, %v451
        %v2511 = vpop.permute.xlu0 %2510
        %2514 = vset.pattern.permute.xlu0 0
        %2515 = vperm.xlu0 %2514, %v452
        %v2516 = vpop.permute.xlu0 %2515
        %2519 = vset.pattern.permute.xlu0 0
        %2520 = vperm.xlu0 %2519, %v453
        %v2521 = vpop.permute.xlu0 %2520
        %2524 = vset.pattern.permute.xlu0 0
        %2525 = vperm.xlu0 %2524, %v454
        %v2526 = vpop.permute.xlu0 %2525
        %v2528 = vmul.f32 %v2320, %v2451
        %v2529 = vmul.f32 %v2321, %v2451
        %v2530 = vmul.f32 %v2322, %v2451
        %v2531 = vmul.f32 %v2323, %v2451
        %v2532 = vmul.f32 %v2324, %v2451
        %v2533 = vmul.f32 %v2325, %v2451
        %v2534 = vmul.f32 %v2326, %v2451
        %v2535 = vmul.f32 %v2327, %v2451
        %v2536 = vmul.f32 %v2328, %v2456
        %v2537 = vmul.f32 %v2329, %v2456
        %v2538 = vmul.f32 %v2330, %v2456
        %v2539 = vmul.f32 %v2331, %v2456
        %v2540 = vmul.f32 %v2332, %v2456
        %v2541 = vmul.f32 %v2333, %v2456
        %v2542 = vmul.f32 %v2334, %v2456
        %v2543 = vmul.f32 %v2335, %v2456
        %v2544 = vmul.f32 %v2336, %v2461
        %v2545 = vmul.f32 %v2337, %v2461
        %v2546 = vmul.f32 %v2338, %v2461
        %v2547 = vmul.f32 %v2339, %v2461
        %v2548 = vmul.f32 %v2340, %v2461
        %v2549 = vmul.f32 %v2341, %v2461
        %v2550 = vmul.f32 %v2342, %v2461
        %v2551 = vmul.f32 %v2343, %v2461
        %v2552 = vmul.f32 %v2344, %v2466
        %v2553 = vmul.f32 %v2345, %v2466
        %v2554 = vmul.f32 %v2346, %v2466
        %v2555 = vmul.f32 %v2347, %v2466
        %v2556 = vmul.f32 %v2348, %v2466
        %v2557 = vmul.f32 %v2349, %v2466
        %v2558 = vmul.f32 %v2350, %v2466
        %v2559 = vmul.f32 %v2351, %v2466
        %v2560 = vmul.f32 %v2352, %v2471
        %v2561 = vmul.f32 %v2353, %v2471
        %v2562 = vmul.f32 %v2354, %v2471
        %v2563 = vmul.f32 %v2355, %v2471
        %v2564 = vmul.f32 %v2356, %v2471
        %v2565 = vmul.f32 %v2357, %v2471
        %v2566 = vmul.f32 %v2358, %v2471
        %v2567 = vmul.f32 %v2359, %v2471
        %v2568 = vmul.f32 %v2360, %v2476
        %v2569 = vmul.f32 %v2361, %v2476
        %v2570 = vmul.f32 %v2362, %v2476
        %v2571 = vmul.f32 %v2363, %v2476
        %v2572 = vmul.f32 %v2364, %v2476
        %v2573 = vmul.f32 %v2365, %v2476
        %v2574 = vmul.f32 %v2366, %v2476
        %v2575 = vmul.f32 %v2367, %v2476
        %v2576 = vmul.f32 %v2368, %v2481
        %v2577 = vmul.f32 %v2369, %v2481
        %v2578 = vmul.f32 %v2370, %v2481
        %v2579 = vmul.f32 %v2371, %v2481
        %v2580 = vmul.f32 %v2372, %v2481
        %v2581 = vmul.f32 %v2373, %v2481
        %v2582 = vmul.f32 %v2374, %v2481
        %v2583 = vmul.f32 %v2375, %v2481
        %v2584 = vmul.f32 %v2376, %v2486
        %v2585 = vmul.f32 %v2377, %v2486
        %v2586 = vmul.f32 %v2378, %v2486
        %v2587 = vmul.f32 %v2379, %v2486
        %v2588 = vmul.f32 %v2380, %v2486
        %v2589 = vmul.f32 %v2381, %v2486
        %v2590 = vmul.f32 %v2382, %v2486
        %v2591 = vmul.f32 %v2383, %v2486
        %v2592 = vmul.f32 %v2384, %v2491
        %v2593 = vmul.f32 %v2385, %v2491
        %v2594 = vmul.f32 %v2386, %v2491
        %v2595 = vmul.f32 %v2387, %v2491
        %v2596 = vmul.f32 %v2388, %v2491
        %v2597 = vmul.f32 %v2389, %v2491
        %v2598 = vmul.f32 %v2390, %v2491
        %v2599 = vmul.f32 %v2391, %v2491
        %v2600 = vmul.f32 %v2392, %v2496
        %v2601 = vmul.f32 %v2393, %v2496
        %v2602 = vmul.f32 %v2394, %v2496
        %v2603 = vmul.f32 %v2395, %v2496
        %v2604 = vmul.f32 %v2396, %v2496
        %v2605 = vmul.f32 %v2397, %v2496
        %v2606 = vmul.f32 %v2398, %v2496
        %v2607 = vmul.f32 %v2399, %v2496
        %v2608 = vmul.f32 %v2400, %v2501
        %v2609 = vmul.f32 %v2401, %v2501
        %v2610 = vmul.f32 %v2402, %v2501
        %v2611 = vmul.f32 %v2403, %v2501
        %v2612 = vmul.f32 %v2404, %v2501
        %v2613 = vmul.f32 %v2405, %v2501
        %v2614 = vmul.f32 %v2406, %v2501
        %v2615 = vmul.f32 %v2407, %v2501
        %v2616 = vmul.f32 %v2408, %v2506
        %v2617 = vmul.f32 %v2409, %v2506
        %v2618 = vmul.f32 %v2410, %v2506
        %v2619 = vmul.f32 %v2411, %v2506
        %v2620 = vmul.f32 %v2412, %v2506
        %v2621 = vmul.f32 %v2413, %v2506
        %v2622 = vmul.f32 %v2414, %v2506
        %v2623 = vmul.f32 %v2415, %v2506
        %v2624 = vmul.f32 %v2416, %v2511
        %v2625 = vmul.f32 %v2417, %v2511
        %v2626 = vmul.f32 %v2418, %v2511
        %v2627 = vmul.f32 %v2419, %v2511
        %v2628 = vmul.f32 %v2420, %v2511
        %v2629 = vmul.f32 %v2421, %v2511
        %v2630 = vmul.f32 %v2422, %v2511
        %v2631 = vmul.f32 %v2423, %v2511
        %v2632 = vmul.f32 %v2424, %v2516
        %v2633 = vmul.f32 %v2425, %v2516
        %v2634 = vmul.f32 %v2426, %v2516
        %v2635 = vmul.f32 %v2427, %v2516
        %v2636 = vmul.f32 %v2428, %v2516
        %v2637 = vmul.f32 %v2429, %v2516
        %v2638 = vmul.f32 %v2430, %v2516
        %v2639 = vmul.f32 %v2431, %v2516
        %v2640 = vmul.f32 %v2432, %v2521
        %v2641 = vmul.f32 %v2433, %v2521
        %v2642 = vmul.f32 %v2434, %v2521
        %v2643 = vmul.f32 %v2435, %v2521
        %v2644 = vmul.f32 %v2436, %v2521
        %v2645 = vmul.f32 %v2437, %v2521
        %v2646 = vmul.f32 %v2438, %v2521
        %v2647 = vmul.f32 %v2439, %v2521
        %v2648 = vmul.f32 %v2440, %v2526
        %v2649 = vmul.f32 %v2441, %v2526
        %v2650 = vmul.f32 %v2442, %v2526
        %v2651 = vmul.f32 %v2443, %v2526
        %v2652 = vmul.f32 %v2444, %v2526
        %v2653 = vmul.f32 %v2445, %v2526
        %v2654 = vmul.f32 %v2446, %v2526
        %v2655 = vmul.f32 %v2447, %v2526
        %v2656 = vadd.f32 %v2528, %v2536
        %v2657 = vadd.f32 %v2656, %v2544
        %v2658 = vadd.f32 %v2657, %v2552
        %v2659 = vadd.f32 %v2658, %v2560
        %v2660 = vadd.f32 %v2659, %v2568
        %v2661 = vadd.f32 %v2660, %v2576
        %v2662 = vadd.f32 %v2661, %v2584
        %v2663 = vadd.f32 %v2662, %v2592
        %v2664 = vadd.f32 %v2663, %v2600
        %v2665 = vadd.f32 %v2664, %v2608
        %v2666 = vadd.f32 %v2665, %v2616
        %v2667 = vadd.f32 %v2666, %v2624
        %v2668 = vadd.f32 %v2667, %v2632
        %v2669 = vadd.f32 %v2668, %v2640
        %v2670 = vadd.f32 %v2669, %v2648
        %v2671 = vrot.slane %v2670, 4
        %v2672 = vadd.f32 %v2670, %v2671
        %v2673 = vrot.slane %v2672, 2
        %v2674 = vadd.f32 %v2672, %v2673
        %v2675 = vrot.slane %v2674, 1
        %v2676 = vadd.f32 %v2674, %v2675
        %v2677 = vadd.f32 %v2529, %v2537
        %v2678 = vadd.f32 %v2677, %v2545
        %v2679 = vadd.f32 %v2678, %v2553
        %v2680 = vadd.f32 %v2679, %v2561
        %v2681 = vadd.f32 %v2680, %v2569
        %v2682 = vadd.f32 %v2681, %v2577
        %v2683 = vadd.f32 %v2682, %v2585
        %v2684 = vadd.f32 %v2683, %v2593
        %v2685 = vadd.f32 %v2684, %v2601
        %v2686 = vadd.f32 %v2685, %v2609
        %v2687 = vadd.f32 %v2686, %v2617
        %v2688 = vadd.f32 %v2687, %v2625
        %v2689 = vadd.f32 %v2688, %v2633
        %v2690 = vadd.f32 %v2689, %v2641
        %v2691 = vadd.f32 %v2690, %v2649
        %v2692 = vrot.slane %v2691, 4
        %v2693 = vadd.f32 %v2691, %v2692
        %v2694 = vrot.slane %v2693, 2
        %v2695 = vadd.f32 %v2693, %v2694
        %v2696 = vrot.slane %v2695, 1
        %v2697 = vadd.f32 %v2695, %v2696
        %v2698 = vadd.f32 %v2530, %v2538
        %v2699 = vadd.f32 %v2698, %v2546
        %v2700 = vadd.f32 %v2699, %v2554
        %v2701 = vadd.f32 %v2700, %v2562
        %v2702 = vadd.f32 %v2701, %v2570
        %v2703 = vadd.f32 %v2702, %v2578
        %v2704 = vadd.f32 %v2703, %v2586
        %v2705 = vadd.f32 %v2704, %v2594
        %v2706 = vadd.f32 %v2705, %v2602
        %v2707 = vadd.f32 %v2706, %v2610
        %v2708 = vadd.f32 %v2707, %v2618
        %v2709 = vadd.f32 %v2708, %v2626
        %v2710 = vadd.f32 %v2709, %v2634
        %v2711 = vadd.f32 %v2710, %v2642
        %v2712 = vadd.f32 %v2711, %v2650
        %v2713 = vrot.slane %v2712, 4
        %v2714 = vadd.f32 %v2712, %v2713
        %v2715 = vrot.slane %v2714, 2
        %v2716 = vadd.f32 %v2714, %v2715
        %v2717 = vrot.slane %v2716, 1
        %v2718 = vadd.f32 %v2716, %v2717
        %v2719 = vadd.f32 %v2531, %v2539
        %v2720 = vadd.f32 %v2719, %v2547
        %v2721 = vadd.f32 %v2720, %v2555
        %v2722 = vadd.f32 %v2721, %v2563
        %v2723 = vadd.f32 %v2722, %v2571
        %v2724 = vadd.f32 %v2723, %v2579
        %v2725 = vadd.f32 %v2724, %v2587
        %v2726 = vadd.f32 %v2725, %v2595
        %v2727 = vadd.f32 %v2726, %v2603
        %v2728 = vadd.f32 %v2727, %v2611
        %v2729 = vadd.f32 %v2728, %v2619
        %v2730 = vadd.f32 %v2729, %v2627
        %v2731 = vadd.f32 %v2730, %v2635
        %v2732 = vadd.f32 %v2731, %v2643
        %v2733 = vadd.f32 %v2732, %v2651
        %v2734 = vrot.slane %v2733, 4
        %v2735 = vadd.f32 %v2733, %v2734
        %v2736 = vrot.slane %v2735, 2
        %v2737 = vadd.f32 %v2735, %v2736
        %v2738 = vrot.slane %v2737, 1
        %v2739 = vadd.f32 %v2737, %v2738
        %v2740 = vadd.f32 %v2532, %v2540
        %v2741 = vadd.f32 %v2740, %v2548
        %v2742 = vadd.f32 %v2741, %v2556
        %v2743 = vadd.f32 %v2742, %v2564
        %v2744 = vadd.f32 %v2743, %v2572
        %v2745 = vadd.f32 %v2744, %v2580
        %v2746 = vadd.f32 %v2745, %v2588
        %v2747 = vadd.f32 %v2746, %v2596
        %v2748 = vadd.f32 %v2747, %v2604
        %v2749 = vadd.f32 %v2748, %v2612
        %v2750 = vadd.f32 %v2749, %v2620
        %v2751 = vadd.f32 %v2750, %v2628
        %v2752 = vadd.f32 %v2751, %v2636
        %v2753 = vadd.f32 %v2752, %v2644
        %v2754 = vadd.f32 %v2753, %v2652
        %v2755 = vrot.slane %v2754, 4
        %v2756 = vadd.f32 %v2754, %v2755
        %v2757 = vrot.slane %v2756, 2
        %v2758 = vadd.f32 %v2756, %v2757
        %v2759 = vrot.slane %v2758, 1
        %v2760 = vadd.f32 %v2758, %v2759
        %v2761 = vadd.f32 %v2533, %v2541
        %v2762 = vadd.f32 %v2761, %v2549
        %v2763 = vadd.f32 %v2762, %v2557
        %v2764 = vadd.f32 %v2763, %v2565
        %v2765 = vadd.f32 %v2764, %v2573
        %v2766 = vadd.f32 %v2765, %v2581
        %v2767 = vadd.f32 %v2766, %v2589
        %v2768 = vadd.f32 %v2767, %v2597
        %v2769 = vadd.f32 %v2768, %v2605
        %v2770 = vadd.f32 %v2769, %v2613
        %v2771 = vadd.f32 %v2770, %v2621
        %v2772 = vadd.f32 %v2771, %v2629
        %v2773 = vadd.f32 %v2772, %v2637
        %v2774 = vadd.f32 %v2773, %v2645
        %v2775 = vadd.f32 %v2774, %v2653
        %v2776 = vrot.slane %v2775, 4
        %v2777 = vadd.f32 %v2775, %v2776
        %v2778 = vrot.slane %v2777, 2
        %v2779 = vadd.f32 %v2777, %v2778
        %v2780 = vrot.slane %v2779, 1
        %v2781 = vadd.f32 %v2779, %v2780
        %v2782 = vadd.f32 %v2534, %v2542
        %v2783 = vadd.f32 %v2782, %v2550
        %v2784 = vadd.f32 %v2783, %v2558
        %v2785 = vadd.f32 %v2784, %v2566
        %v2786 = vadd.f32 %v2785, %v2574
        %v2787 = vadd.f32 %v2786, %v2582
        %v2788 = vadd.f32 %v2787, %v2590
        %v2789 = vadd.f32 %v2788, %v2598
        %v2790 = vadd.f32 %v2789, %v2606
        %v2791 = vadd.f32 %v2790, %v2614
        %v2792 = vadd.f32 %v2791, %v2622
        %v2793 = vadd.f32 %v2792, %v2630
        %v2794 = vadd.f32 %v2793, %v2638
        %v2795 = vadd.f32 %v2794, %v2646
        %v2796 = vadd.f32 %v2795, %v2654
        %v2797 = vrot.slane %v2796, 4
        %v2798 = vadd.f32 %v2796, %v2797
        %v2799 = vrot.slane %v2798, 2
        %v2800 = vadd.f32 %v2798, %v2799
        %v2801 = vrot.slane %v2800, 1
        %v2802 = vadd.f32 %v2800, %v2801
        %v2803 = vadd.f32 %v2535, %v2543
        %v2804 = vadd.f32 %v2803, %v2551
        %v2805 = vadd.f32 %v2804, %v2559
        %v2806 = vadd.f32 %v2805, %v2567
        %v2807 = vadd.f32 %v2806, %v2575
        %v2808 = vadd.f32 %v2807, %v2583
        %v2809 = vadd.f32 %v2808, %v2591
        %v2810 = vadd.f32 %v2809, %v2599
        %v2811 = vadd.f32 %v2810, %v2607
        %v2812 = vadd.f32 %v2811, %v2615
        %v2813 = vadd.f32 %v2812, %v2623
        %v2814 = vadd.f32 %v2813, %v2631
        %v2815 = vadd.f32 %v2814, %v2639
        %v2816 = vadd.f32 %v2815, %v2647
        %v2817 = vadd.f32 %v2816, %v2655
        %v2818 = vrot.slane %v2817, 4
        %v2819 = vadd.f32 %v2817, %v2818
        %v2820 = vrot.slane %v2819, 2
        %v2821 = vadd.f32 %v2819, %v2820
        %v2822 = vrot.slane %v2821, 1
        %v2823 = vadd.f32 %v2821, %v2822
        %2825 = vset.pattern.permute.xlu0 0
        %2826 = vperm.xlu0 %2825, %v455
        %v2827 = vpop.permute.xlu0 %2826
        %v2829 = vperm.slane %v2827, 0
        %v2830 = vadd.f32 %v2676, %v2829
        %v2831 = vadd.f32 %v2697, %v2829
        %v2832 = vadd.f32 %v2718, %v2829
        %v2833 = vadd.f32 %v2739, %v2829
        %v2834 = vadd.f32 %v2760, %v2829
        %v2835 = vadd.f32 %v2781, %v2829
        %v2836 = vadd.f32 %v2802, %v2829
        %v2837 = vadd.f32 %v2823, %v2829
        %v2846 = vrot.slane %v2831, 7
        %v2847 = vrot.slane %v2832, 6
        %v2848 = vrot.slane %v2833, 5
        %v2849 = vrot.slane %v2834, 4
        %v2850 = vrot.slane %v2835, 3
        %v2851 = vrot.slane %v2836, 2
        %v2852 = vrot.slane %v2837, 1
        %vm2853 = vcmask 1040384
        %v2854 = vsel %vm2853, %v2830, %v2846
        %vm2855 = vcmask 1042434
        %v2856 = vsel %vm2855, %v2847, %v2848
        %vm2857 = vcmask 1041408
        %v2858 = vsel %vm2857, %v2854, %v2856
        %vm2859 = vcmask 1044484
        %v2860 = vsel %vm2859, %v2849, %v2850
        %vm2861 = vcmask 1046534
        %v2862 = vsel %vm2861, %v2851, %v2852
        %vm2863 = vcmask 1045508
        %v2864 = vsel %vm2863, %v2860, %v2862
        %vm2865 = vcmask 1043456
        %v2866 = vsel %vm2865, %v2858, %v2864
        %2868 = vst [vmem:[%s357] sm:$0xff] %v2866
        %s2869 = scalar_lea.vmem %s362, 32
        %v2870 = vld [vmem:[%s2869] sm:$0x77]
        %v2871 = vld [vmem:[%s2869 + $0x8] sm:$0x77]
        %v2872 = vld [vmem:[%s2869 + $0x10] sm:$0x77]
        %v2873 = vld [vmem:[%s2869 + $0x18] sm:$0x77]
        %v2878 = vperm.slane %v2870, 0
        %v2879 = vperm.slane %v2870, 4
        %v2880 = vperm.slane %v2871, 0
        %v2881 = vperm.slane %v2871, 4
        %v2882 = vperm.slane %v2872, 0
        %v2883 = vperm.slane %v2872, 4
        %v2884 = vperm.slane %v2873, 0
        %v2885 = vperm.slane %v2873, 4
        %v2894 = vperm.slane %v2878, 0
        %v2895 = vperm.slane %v2879, 0
        %v2896 = vperm.slane %v2880, 0
        %v2897 = vperm.slane %v2881, 0
        %v2898 = vperm.slane %v2882, 0
        %v2899 = vperm.slane %v2883, 0
        %v2900 = vperm.slane %v2884, 0
        %v2901 = vperm.slane %v2885, 0
        %v2902 = vmul.f32 %v463, %v2894
        %v2903 = vmul.f32 %v463, %v2895
        %v2904 = vmul.f32 %v463, %v2896
        %v2905 = vmul.f32 %v463, %v2897
        %v2906 = vmul.f32 %v463, %v2898
        %v2907 = vmul.f32 %v463, %v2899
        %v2908 = vmul.f32 %v463, %v2900
        %v2909 = vmul.f32 %v463, %v2901
        %v2910 = vmul.f32 %v468, %v2894
        %v2911 = vmul.f32 %v468, %v2895
        %v2912 = vmul.f32 %v468, %v2896
        %v2913 = vmul.f32 %v468, %v2897
        %v2914 = vmul.f32 %v468, %v2898
        %v2915 = vmul.f32 %v468, %v2899
        %v2916 = vmul.f32 %v468, %v2900
        %v2917 = vmul.f32 %v468, %v2901
        %v2918 = vmul.f32 %v473, %v2894
        %v2919 = vmul.f32 %v473, %v2895
        %v2920 = vmul.f32 %v473, %v2896
        %v2921 = vmul.f32 %v473, %v2897
        %v2922 = vmul.f32 %v473, %v2898
        %v2923 = vmul.f32 %v473, %v2899
        %v2924 = vmul.f32 %v473, %v2900
        %v2925 = vmul.f32 %v473, %v2901
        %v2926 = vmul.f32 %v478, %v2894
        %v2927 = vmul.f32 %v478, %v2895
        %v2928 = vmul.f32 %v478, %v2896
        %v2929 = vmul.f32 %v478, %v2897
        %v2930 = vmul.f32 %v478, %v2898
        %v2931 = vmul.f32 %v478, %v2899
        %v2932 = vmul.f32 %v478, %v2900
        %v2933 = vmul.f32 %v478, %v2901
        %v2934 = vmul.f32 %v483, %v2894
        %v2935 = vmul.f32 %v483, %v2895
        %v2936 = vmul.f32 %v483, %v2896
        %v2937 = vmul.f32 %v483, %v2897
        %v2938 = vmul.f32 %v483, %v2898
        %v2939 = vmul.f32 %v483, %v2899
        %v2940 = vmul.f32 %v483, %v2900
        %v2941 = vmul.f32 %v483, %v2901
        %v2942 = vmul.f32 %v488, %v2894
        %v2943 = vmul.f32 %v488, %v2895
        %v2944 = vmul.f32 %v488, %v2896
        %v2945 = vmul.f32 %v488, %v2897
        %v2946 = vmul.f32 %v488, %v2898
        %v2947 = vmul.f32 %v488, %v2899
        %v2948 = vmul.f32 %v488, %v2900
        %v2949 = vmul.f32 %v488, %v2901
        %v2950 = vmul.f32 %v493, %v2894
        %v2951 = vmul.f32 %v493, %v2895
        %v2952 = vmul.f32 %v493, %v2896
        %v2953 = vmul.f32 %v493, %v2897
        %v2954 = vmul.f32 %v493, %v2898
        %v2955 = vmul.f32 %v493, %v2899
        %v2956 = vmul.f32 %v493, %v2900
        %v2957 = vmul.f32 %v493, %v2901
        %v2958 = vmul.f32 %v498, %v2894
        %v2959 = vmul.f32 %v498, %v2895
        %v2960 = vmul.f32 %v498, %v2896
        %v2961 = vmul.f32 %v498, %v2897
        %v2962 = vmul.f32 %v498, %v2898
        %v2963 = vmul.f32 %v498, %v2899
        %v2964 = vmul.f32 %v498, %v2900
        %v2965 = vmul.f32 %v498, %v2901
        %v2966 = vmul.f32 %v503, %v2894
        %v2967 = vmul.f32 %v503, %v2895
        %v2968 = vmul.f32 %v503, %v2896
        %v2969 = vmul.f32 %v503, %v2897
        %v2970 = vmul.f32 %v503, %v2898
        %v2971 = vmul.f32 %v503, %v2899
        %v2972 = vmul.f32 %v503, %v2900
        %v2973 = vmul.f32 %v503, %v2901
        %v2974 = vmul.f32 %v508, %v2894
        %v2975 = vmul.f32 %v508, %v2895
        %v2976 = vmul.f32 %v508, %v2896
        %v2977 = vmul.f32 %v508, %v2897
        %v2978 = vmul.f32 %v508, %v2898
        %v2979 = vmul.f32 %v508, %v2899
        %v2980 = vmul.f32 %v508, %v2900
        %v2981 = vmul.f32 %v508, %v2901
        %v2982 = vmul.f32 %v513, %v2894
        %v2983 = vmul.f32 %v513, %v2895
        %v2984 = vmul.f32 %v513, %v2896
        %v2985 = vmul.f32 %v513, %v2897
        %v2986 = vmul.f32 %v513, %v2898
        %v2987 = vmul.f32 %v513, %v2899
        %v2988 = vmul.f32 %v513, %v2900
        %v2989 = vmul.f32 %v513, %v2901
        %v2990 = vmul.f32 %v518, %v2894
        %v2991 = vmul.f32 %v518, %v2895
        %v2992 = vmul.f32 %v518, %v2896
        %v2993 = vmul.f32 %v518, %v2897
        %v2994 = vmul.f32 %v518, %v2898
        %v2995 = vmul.f32 %v518, %v2899
        %v2996 = vmul.f32 %v518, %v2900
        %v2997 = vmul.f32 %v518, %v2901
        %v2998 = vmul.f32 %v523, %v2894
        %v2999 = vmul.f32 %v523, %v2895
        %v3000 = vmul.f32 %v523, %v2896
        %v3001 = vmul.f32 %v523, %v2897
        %v3002 = vmul.f32 %v523, %v2898
        %v3003 = vmul.f32 %v523, %v2899
        %v3004 = vmul.f32 %v523, %v2900
        %v3005 = vmul.f32 %v523, %v2901
        %v3006 = vmul.f32 %v528, %v2894
        %v3007 = vmul.f32 %v528, %v2895
        %v3008 = vmul.f32 %v528, %v2896
        %v3009 = vmul.f32 %v528, %v2897
        %v3010 = vmul.f32 %v528, %v2898
        %v3011 = vmul.f32 %v528, %v2899
        %v3012 = vmul.f32 %v528, %v2900
        %v3013 = vmul.f32 %v528, %v2901
        %v3014 = vmul.f32 %v533, %v2894
        %v3015 = vmul.f32 %v533, %v2895
        %v3016 = vmul.f32 %v533, %v2896
        %v3017 = vmul.f32 %v533, %v2897
        %v3018 = vmul.f32 %v533, %v2898
        %v3019 = vmul.f32 %v533, %v2899
        %v3020 = vmul.f32 %v533, %v2900
        %v3021 = vmul.f32 %v533, %v2901
        %v3022 = vmul.f32 %v538, %v2894
        %v3023 = vmul.f32 %v538, %v2895
        %v3024 = vmul.f32 %v538, %v2896
        %v3025 = vmul.f32 %v538, %v2897
        %v3026 = vmul.f32 %v538, %v2898
        %v3027 = vmul.f32 %v538, %v2899
        %v3028 = vmul.f32 %v538, %v2900
        %v3029 = vmul.f32 %v538, %v2901
        %v3030 = vperm.slane %v2870, 1
        %v3031 = vperm.slane %v2870, 5
        %v3032 = vperm.slane %v2871, 1
        %v3033 = vperm.slane %v2871, 5
        %v3034 = vperm.slane %v2872, 1
        %v3035 = vperm.slane %v2872, 5
        %v3036 = vperm.slane %v2873, 1
        %v3037 = vperm.slane %v2873, 5
        %v3046 = vperm.slane %v3030, 1
        %v3047 = vperm.slane %v3031, 1
        %v3048 = vperm.slane %v3032, 1
        %v3049 = vperm.slane %v3033, 1
        %v3050 = vperm.slane %v3034, 1
        %v3051 = vperm.slane %v3035, 1
        %v3052 = vperm.slane %v3036, 1
        %v3053 = vperm.slane %v3037, 1
        %v3054 = vmul.f32 %v698, %v3046
        %v3055 = vmul.f32 %v698, %v3047
        %v3056 = vmul.f32 %v698, %v3048
        %v3057 = vmul.f32 %v698, %v3049
        %v3058 = vmul.f32 %v698, %v3050
        %v3059 = vmul.f32 %v698, %v3051
        %v3060 = vmul.f32 %v698, %v3052
        %v3061 = vmul.f32 %v698, %v3053
        %v3062 = vmul.f32 %v702, %v3046
        %v3063 = vmul.f32 %v702, %v3047
        %v3064 = vmul.f32 %v702, %v3048
        %v3065 = vmul.f32 %v702, %v3049
        %v3066 = vmul.f32 %v702, %v3050
        %v3067 = vmul.f32 %v702, %v3051
        %v3068 = vmul.f32 %v702, %v3052
        %v3069 = vmul.f32 %v702, %v3053
        %v3070 = vmul.f32 %v706, %v3046
        %v3071 = vmul.f32 %v706, %v3047
        %v3072 = vmul.f32 %v706, %v3048
        %v3073 = vmul.f32 %v706, %v3049
        %v3074 = vmul.f32 %v706, %v3050
        %v3075 = vmul.f32 %v706, %v3051
        %v3076 = vmul.f32 %v706, %v3052
        %v3077 = vmul.f32 %v706, %v3053
        %v3078 = vmul.f32 %v710, %v3046
        %v3079 = vmul.f32 %v710, %v3047
        %v3080 = vmul.f32 %v710, %v3048
        %v3081 = vmul.f32 %v710, %v3049
        %v3082 = vmul.f32 %v710, %v3050
        %v3083 = vmul.f32 %v710, %v3051
        %v3084 = vmul.f32 %v710, %v3052
        %v3085 = vmul.f32 %v710, %v3053
        %v3086 = vmul.f32 %v714, %v3046
        %v3087 = vmul.f32 %v714, %v3047
        %v3088 = vmul.f32 %v714, %v3048
        %v3089 = vmul.f32 %v714, %v3049
        %v3090 = vmul.f32 %v714, %v3050
        %v3091 = vmul.f32 %v714, %v3051
        %v3092 = vmul.f32 %v714, %v3052
        %v3093 = vmul.f32 %v714, %v3053
        %v3094 = vmul.f32 %v718, %v3046
        %v3095 = vmul.f32 %v718, %v3047
        %v3096 = vmul.f32 %v718, %v3048
        %v3097 = vmul.f32 %v718, %v3049
        %v3098 = vmul.f32 %v718, %v3050
        %v3099 = vmul.f32 %v718, %v3051
        %v3100 = vmul.f32 %v718, %v3052
        %v3101 = vmul.f32 %v718, %v3053
        %v3102 = vmul.f32 %v722, %v3046
        %v3103 = vmul.f32 %v722, %v3047
        %v3104 = vmul.f32 %v722, %v3048
        %v3105 = vmul.f32 %v722, %v3049
        %v3106 = vmul.f32 %v722, %v3050
        %v3107 = vmul.f32 %v722, %v3051
        %v3108 = vmul.f32 %v722, %v3052
        %v3109 = vmul.f32 %v722, %v3053
        %v3110 = vmul.f32 %v726, %v3046
        %v3111 = vmul.f32 %v726, %v3047
        %v3112 = vmul.f32 %v726, %v3048
        %v3113 = vmul.f32 %v726, %v3049
        %v3114 = vmul.f32 %v726, %v3050
        %v3115 = vmul.f32 %v726, %v3051
        %v3116 = vmul.f32 %v726, %v3052
        %v3117 = vmul.f32 %v726, %v3053
        %v3118 = vmul.f32 %v730, %v3046
        %v3119 = vmul.f32 %v730, %v3047
        %v3120 = vmul.f32 %v730, %v3048
        %v3121 = vmul.f32 %v730, %v3049
        %v3122 = vmul.f32 %v730, %v3050
        %v3123 = vmul.f32 %v730, %v3051
        %v3124 = vmul.f32 %v730, %v3052
        %v3125 = vmul.f32 %v730, %v3053
        %v3126 = vmul.f32 %v734, %v3046
        %v3127 = vmul.f32 %v734, %v3047
        %v3128 = vmul.f32 %v734, %v3048
        %v3129 = vmul.f32 %v734, %v3049
        %v3130 = vmul.f32 %v734, %v3050
        %v3131 = vmul.f32 %v734, %v3051
        %v3132 = vmul.f32 %v734, %v3052
        %v3133 = vmul.f32 %v734, %v3053
        %v3134 = vmul.f32 %v738, %v3046
        %v3135 = vmul.f32 %v738, %v3047
        %v3136 = vmul.f32 %v738, %v3048
        %v3137 = vmul.f32 %v738, %v3049
        %v3138 = vmul.f32 %v738, %v3050
        %v3139 = vmul.f32 %v738, %v3051
        %v3140 = vmul.f32 %v738, %v3052
        %v3141 = vmul.f32 %v738, %v3053
        %v3142 = vmul.f32 %v742, %v3046
        %v3143 = vmul.f32 %v742, %v3047
        %v3144 = vmul.f32 %v742, %v3048
        %v3145 = vmul.f32 %v742, %v3049
        %v3146 = vmul.f32 %v742, %v3050
        %v3147 = vmul.f32 %v742, %v3051
        %v3148 = vmul.f32 %v742, %v3052
        %v3149 = vmul.f32 %v742, %v3053
        %v3150 = vmul.f32 %v746, %v3046
        %v3151 = vmul.f32 %v746, %v3047
        %v3152 = vmul.f32 %v746, %v3048
        %v3153 = vmul.f32 %v746, %v3049
        %v3154 = vmul.f32 %v746, %v3050
        %v3155 = vmul.f32 %v746, %v3051
        %v3156 = vmul.f32 %v746, %v3052
        %v3157 = vmul.f32 %v746, %v3053
        %v3158 = vmul.f32 %v750, %v3046
        %v3159 = vmul.f32 %v750, %v3047
        %v3160 = vmul.f32 %v750, %v3048
        %v3161 = vmul.f32 %v750, %v3049
        %v3162 = vmul.f32 %v750, %v3050
        %v3163 = vmul.f32 %v750, %v3051
        %v3164 = vmul.f32 %v750, %v3052
        %v3165 = vmul.f32 %v750, %v3053
        %v3166 = vmul.f32 %v754, %v3046
        %v3167 = vmul.f32 %v754, %v3047
        %v3168 = vmul.f32 %v754, %v3048
        %v3169 = vmul.f32 %v754, %v3049
        %v3170 = vmul.f32 %v754, %v3050
        %v3171 = vmul.f32 %v754, %v3051
        %v3172 = vmul.f32 %v754, %v3052
        %v3173 = vmul.f32 %v754, %v3053
        %v3174 = vmul.f32 %v758, %v3046
        %v3175 = vmul.f32 %v758, %v3047
        %v3176 = vmul.f32 %v758, %v3048
        %v3177 = vmul.f32 %v758, %v3049
        %v3178 = vmul.f32 %v758, %v3050
        %v3179 = vmul.f32 %v758, %v3051
        %v3180 = vmul.f32 %v758, %v3052
        %v3181 = vmul.f32 %v758, %v3053
        %v3182 = vadd.f32 %v2902, %v3054
        %v3183 = vadd.f32 %v2903, %v3055
        %v3184 = vadd.f32 %v2904, %v3056
        %v3185 = vadd.f32 %v2905, %v3057
        %v3186 = vadd.f32 %v2906, %v3058
        %v3187 = vadd.f32 %v2907, %v3059
        %v3188 = vadd.f32 %v2908, %v3060
        %v3189 = vadd.f32 %v2909, %v3061
        %v3190 = vadd.f32 %v2910, %v3062
        %v3191 = vadd.f32 %v2911, %v3063
        %v3192 = vadd.f32 %v2912, %v3064
        %v3193 = vadd.f32 %v2913, %v3065
        %v3194 = vadd.f32 %v2914, %v3066
        %v3195 = vadd.f32 %v2915, %v3067
        %v3196 = vadd.f32 %v2916, %v3068
        %v3197 = vadd.f32 %v2917, %v3069
        %v3198 = vadd.f32 %v2918, %v3070
        %v3199 = vadd.f32 %v2919, %v3071
        %v3200 = vadd.f32 %v2920, %v3072
        %v3201 = vadd.f32 %v2921, %v3073
        %v3202 = vadd.f32 %v2922, %v3074
        %v3203 = vadd.f32 %v2923, %v3075
        %v3204 = vadd.f32 %v2924, %v3076
        %v3205 = vadd.f32 %v2925, %v3077
        %v3206 = vadd.f32 %v2926, %v3078
        %v3207 = vadd.f32 %v2927, %v3079
        %v3208 = vadd.f32 %v2928, %v3080
        %v3209 = vadd.f32 %v2929, %v3081
        %v3210 = vadd.f32 %v2930, %v3082
        %v3211 = vadd.f32 %v2931, %v3083
        %v3212 = vadd.f32 %v2932, %v3084
        %v3213 = vadd.f32 %v2933, %v3085
        %v3214 = vadd.f32 %v2934, %v3086
        %v3215 = vadd.f32 %v2935, %v3087
        %v3216 = vadd.f32 %v2936, %v3088
        %v3217 = vadd.f32 %v2937, %v3089
        %v3218 = vadd.f32 %v2938, %v3090
        %v3219 = vadd.f32 %v2939, %v3091
        %v3220 = vadd.f32 %v2940, %v3092
        %v3221 = vadd.f32 %v2941, %v3093
        %v3222 = vadd.f32 %v2942, %v3094
        %v3223 = vadd.f32 %v2943, %v3095
        %v3224 = vadd.f32 %v2944, %v3096
        %v3225 = vadd.f32 %v2945, %v3097
        %v3226 = vadd.f32 %v2946, %v3098
        %v3227 = vadd.f32 %v2947, %v3099
        %v3228 = vadd.f32 %v2948, %v3100
        %v3229 = vadd.f32 %v2949, %v3101
        %v3230 = vadd.f32 %v2950, %v3102
        %v3231 = vadd.f32 %v2951, %v3103
        %v3232 = vadd.f32 %v2952, %v3104
        %v3233 = vadd.f32 %v2953, %v3105
        %v3234 = vadd.f32 %v2954, %v3106
        %v3235 = vadd.f32 %v2955, %v3107
        %v3236 = vadd.f32 %v2956, %v3108
        %v3237 = vadd.f32 %v2957, %v3109
        %v3238 = vadd.f32 %v2958, %v3110
        %v3239 = vadd.f32 %v2959, %v3111
        %v3240 = vadd.f32 %v2960, %v3112
        %v3241 = vadd.f32 %v2961, %v3113
        %v3242 = vadd.f32 %v2962, %v3114
        %v3243 = vadd.f32 %v2963, %v3115
        %v3244 = vadd.f32 %v2964, %v3116
        %v3245 = vadd.f32 %v2965, %v3117
        %v3246 = vadd.f32 %v2966, %v3118
        %v3247 = vadd.f32 %v2967, %v3119
        %v3248 = vadd.f32 %v2968, %v3120
        %v3249 = vadd.f32 %v2969, %v3121
        %v3250 = vadd.f32 %v2970, %v3122
        %v3251 = vadd.f32 %v2971, %v3123
        %v3252 = vadd.f32 %v2972, %v3124
        %v3253 = vadd.f32 %v2973, %v3125
        %v3254 = vadd.f32 %v2974, %v3126
        %v3255 = vadd.f32 %v2975, %v3127
        %v3256 = vadd.f32 %v2976, %v3128
        %v3257 = vadd.f32 %v2977, %v3129
        %v3258 = vadd.f32 %v2978, %v3130
        %v3259 = vadd.f32 %v2979, %v3131
        %v3260 = vadd.f32 %v2980, %v3132
        %v3261 = vadd.f32 %v2981, %v3133
        %v3262 = vadd.f32 %v2982, %v3134
        %v3263 = vadd.f32 %v2983, %v3135
        %v3264 = vadd.f32 %v2984, %v3136
        %v3265 = vadd.f32 %v2985, %v3137
        %v3266 = vadd.f32 %v2986, %v3138
        %v3267 = vadd.f32 %v2987, %v3139
        %v3268 = vadd.f32 %v2988, %v3140
        %v3269 = vadd.f32 %v2989, %v3141
        %v3270 = vadd.f32 %v2990, %v3142
        %v3271 = vadd.f32 %v2991, %v3143
        %v3272 = vadd.f32 %v2992, %v3144
        %v3273 = vadd.f32 %v2993, %v3145
        %v3274 = vadd.f32 %v2994, %v3146
        %v3275 = vadd.f32 %v2995, %v3147
        %v3276 = vadd.f32 %v2996, %v3148
        %v3277 = vadd.f32 %v2997, %v3149
        %v3278 = vadd.f32 %v2998, %v3150
        %v3279 = vadd.f32 %v2999, %v3151
        %v3280 = vadd.f32 %v3000, %v3152
        %v3281 = vadd.f32 %v3001, %v3153
        %v3282 = vadd.f32 %v3002, %v3154
        %v3283 = vadd.f32 %v3003, %v3155
        %v3284 = vadd.f32 %v3004, %v3156
        %v3285 = vadd.f32 %v3005, %v3157
        %v3286 = vadd.f32 %v3006, %v3158
        %v3287 = vadd.f32 %v3007, %v3159
        %v3288 = vadd.f32 %v3008, %v3160
        %v3289 = vadd.f32 %v3009, %v3161
        %v3290 = vadd.f32 %v3010, %v3162
        %v3291 = vadd.f32 %v3011, %v3163
        %v3292 = vadd.f32 %v3012, %v3164
        %v3293 = vadd.f32 %v3013, %v3165
        %v3294 = vadd.f32 %v3014, %v3166
        %v3295 = vadd.f32 %v3015, %v3167
        %v3296 = vadd.f32 %v3016, %v3168
        %v3297 = vadd.f32 %v3017, %v3169
        %v3298 = vadd.f32 %v3018, %v3170
        %v3299 = vadd.f32 %v3019, %v3171
        %v3300 = vadd.f32 %v3020, %v3172
        %v3301 = vadd.f32 %v3021, %v3173
        %v3302 = vadd.f32 %v3022, %v3174
        %v3303 = vadd.f32 %v3023, %v3175
        %v3304 = vadd.f32 %v3024, %v3176
        %v3305 = vadd.f32 %v3025, %v3177
        %v3306 = vadd.f32 %v3026, %v3178
        %v3307 = vadd.f32 %v3027, %v3179
        %v3308 = vadd.f32 %v3028, %v3180
        %v3309 = vadd.f32 %v3029, %v3181
        %v3310 = vperm.slane %v2870, 2
        %v3311 = vperm.slane %v2870, 6
        %v3312 = vperm.slane %v2871, 2
        %v3313 = vperm.slane %v2871, 6
        %v3314 = vperm.slane %v2872, 2
        %v3315 = vperm.slane %v2872, 6
        %v3316 = vperm.slane %v2873, 2
        %v3317 = vperm.slane %v2873, 6
        %v3326 = vperm.slane %v3310, 2
        %v3327 = vperm.slane %v3311, 2
        %v3328 = vperm.slane %v3312, 2
        %v3329 = vperm.slane %v3313, 2
        %v3330 = vperm.slane %v3314, 2
        %v3331 = vperm.slane %v3315, 2
        %v3332 = vperm.slane %v3316, 2
        %v3333 = vperm.slane %v3317, 2
        %v3334 = vmul.f32 %v1042, %v3326
        %v3335 = vmul.f32 %v1042, %v3327
        %v3336 = vmul.f32 %v1042, %v3328
        %v3337 = vmul.f32 %v1042, %v3329
        %v3338 = vmul.f32 %v1042, %v3330
        %v3339 = vmul.f32 %v1042, %v3331
        %v3340 = vmul.f32 %v1042, %v3332
        %v3341 = vmul.f32 %v1042, %v3333
        %v3342 = vmul.f32 %v1046, %v3326
        %v3343 = vmul.f32 %v1046, %v3327
        %v3344 = vmul.f32 %v1046, %v3328
        %v3345 = vmul.f32 %v1046, %v3329
        %v3346 = vmul.f32 %v1046, %v3330
        %v3347 = vmul.f32 %v1046, %v3331
        %v3348 = vmul.f32 %v1046, %v3332
        %v3349 = vmul.f32 %v1046, %v3333
        %v3350 = vmul.f32 %v1050, %v3326
        %v3351 = vmul.f32 %v1050, %v3327
        %v3352 = vmul.f32 %v1050, %v3328
        %v3353 = vmul.f32 %v1050, %v3329
        %v3354 = vmul.f32 %v1050, %v3330
        %v3355 = vmul.f32 %v1050, %v3331
        %v3356 = vmul.f32 %v1050, %v3332
        %v3357 = vmul.f32 %v1050, %v3333
        %v3358 = vmul.f32 %v1054, %v3326
        %v3359 = vmul.f32 %v1054, %v3327
        %v3360 = vmul.f32 %v1054, %v3328
        %v3361 = vmul.f32 %v1054, %v3329
        %v3362 = vmul.f32 %v1054, %v3330
        %v3363 = vmul.f32 %v1054, %v3331
        %v3364 = vmul.f32 %v1054, %v3332
        %v3365 = vmul.f32 %v1054, %v3333
        %v3366 = vmul.f32 %v1058, %v3326
        %v3367 = vmul.f32 %v1058, %v3327
        %v3368 = vmul.f32 %v1058, %v3328
        %v3369 = vmul.f32 %v1058, %v3329
        %v3370 = vmul.f32 %v1058, %v3330
        %v3371 = vmul.f32 %v1058, %v3331
        %v3372 = vmul.f32 %v1058, %v3332
        %v3373 = vmul.f32 %v1058, %v3333
        %v3374 = vmul.f32 %v1062, %v3326
        %v3375 = vmul.f32 %v1062, %v3327
        %v3376 = vmul.f32 %v1062, %v3328
        %v3377 = vmul.f32 %v1062, %v3329
        %v3378 = vmul.f32 %v1062, %v3330
        %v3379 = vmul.f32 %v1062, %v3331
        %v3380 = vmul.f32 %v1062, %v3332
        %v3381 = vmul.f32 %v1062, %v3333
        %v3382 = vmul.f32 %v1066, %v3326
        %v3383 = vmul.f32 %v1066, %v3327
        %v3384 = vmul.f32 %v1066, %v3328
        %v3385 = vmul.f32 %v1066, %v3329
        %v3386 = vmul.f32 %v1066, %v3330
        %v3387 = vmul.f32 %v1066, %v3331
        %v3388 = vmul.f32 %v1066, %v3332
        %v3389 = vmul.f32 %v1066, %v3333
        %v3390 = vmul.f32 %v1070, %v3326
        %v3391 = vmul.f32 %v1070, %v3327
        %v3392 = vmul.f32 %v1070, %v3328
        %v3393 = vmul.f32 %v1070, %v3329
        %v3394 = vmul.f32 %v1070, %v3330
        %v3395 = vmul.f32 %v1070, %v3331
        %v3396 = vmul.f32 %v1070, %v3332
        %v3397 = vmul.f32 %v1070, %v3333
        %v3398 = vmul.f32 %v1074, %v3326
        %v3399 = vmul.f32 %v1074, %v3327
        %v3400 = vmul.f32 %v1074, %v3328
        %v3401 = vmul.f32 %v1074, %v3329
        %v3402 = vmul.f32 %v1074, %v3330
        %v3403 = vmul.f32 %v1074, %v3331
        %v3404 = vmul.f32 %v1074, %v3332
        %v3405 = vmul.f32 %v1074, %v3333
        %v3406 = vmul.f32 %v1078, %v3326
        %v3407 = vmul.f32 %v1078, %v3327
        %v3408 = vmul.f32 %v1078, %v3328
        %v3409 = vmul.f32 %v1078, %v3329
        %v3410 = vmul.f32 %v1078, %v3330
        %v3411 = vmul.f32 %v1078, %v3331
        %v3412 = vmul.f32 %v1078, %v3332
        %v3413 = vmul.f32 %v1078, %v3333
        %v3414 = vmul.f32 %v1082, %v3326
        %v3415 = vmul.f32 %v1082, %v3327
        %v3416 = vmul.f32 %v1082, %v3328
        %v3417 = vmul.f32 %v1082, %v3329
        %v3418 = vmul.f32 %v1082, %v3330
        %v3419 = vmul.f32 %v1082, %v3331
        %v3420 = vmul.f32 %v1082, %v3332
        %v3421 = vmul.f32 %v1082, %v3333
        %v3422 = vmul.f32 %v1086, %v3326
        %v3423 = vmul.f32 %v1086, %v3327
        %v3424 = vmul.f32 %v1086, %v3328
        %v3425 = vmul.f32 %v1086, %v3329
        %v3426 = vmul.f32 %v1086, %v3330
        %v3427 = vmul.f32 %v1086, %v3331
        %v3428 = vmul.f32 %v1086, %v3332
        %v3429 = vmul.f32 %v1086, %v3333
        %v3430 = vmul.f32 %v1090, %v3326
        %v3431 = vmul.f32 %v1090, %v3327
        %v3432 = vmul.f32 %v1090, %v3328
        %v3433 = vmul.f32 %v1090, %v3329
        %v3434 = vmul.f32 %v1090, %v3330
        %v3435 = vmul.f32 %v1090, %v3331
        %v3436 = vmul.f32 %v1090, %v3332
        %v3437 = vmul.f32 %v1090, %v3333
        %v3438 = vmul.f32 %v1094, %v3326
        %v3439 = vmul.f32 %v1094, %v3327
        %v3440 = vmul.f32 %v1094, %v3328
        %v3441 = vmul.f32 %v1094, %v3329
        %v3442 = vmul.f32 %v1094, %v3330
        %v3443 = vmul.f32 %v1094, %v3331
        %v3444 = vmul.f32 %v1094, %v3332
        %v3445 = vmul.f32 %v1094, %v3333
        %v3446 = vmul.f32 %v1098, %v3326
        %v3447 = vmul.f32 %v1098, %v3327
        %v3448 = vmul.f32 %v1098, %v3328
        %v3449 = vmul.f32 %v1098, %v3329
        %v3450 = vmul.f32 %v1098, %v3330
        %v3451 = vmul.f32 %v1098, %v3331
        %v3452 = vmul.f32 %v1098, %v3332
        %v3453 = vmul.f32 %v1098, %v3333
        %v3454 = vmul.f32 %v1102, %v3326
        %v3455 = vmul.f32 %v1102, %v3327
        %v3456 = vmul.f32 %v1102, %v3328
        %v3457 = vmul.f32 %v1102, %v3329
        %v3458 = vmul.f32 %v1102, %v3330
        %v3459 = vmul.f32 %v1102, %v3331
        %v3460 = vmul.f32 %v1102, %v3332
        %v3461 = vmul.f32 %v1102, %v3333
        %v3462 = vadd.f32 %v3182, %v3334
        %v3463 = vadd.f32 %v3183, %v3335
        %v3464 = vadd.f32 %v3184, %v3336
        %v3465 = vadd.f32 %v3185, %v3337
        %v3466 = vadd.f32 %v3186, %v3338
        %v3467 = vadd.f32 %v3187, %v3339
        %v3468 = vadd.f32 %v3188, %v3340
        %v3469 = vadd.f32 %v3189, %v3341
        %v3470 = vadd.f32 %v3190, %v3342
        %v3471 = vadd.f32 %v3191, %v3343
        %v3472 = vadd.f32 %v3192, %v3344
        %v3473 = vadd.f32 %v3193, %v3345
        %v3474 = vadd.f32 %v3194, %v3346
        %v3475 = vadd.f32 %v3195, %v3347
        %v3476 = vadd.f32 %v3196, %v3348
        %v3477 = vadd.f32 %v3197, %v3349
        %v3478 = vadd.f32 %v3198, %v3350
        %v3479 = vadd.f32 %v3199, %v3351
        %v3480 = vadd.f32 %v3200, %v3352
        %v3481 = vadd.f32 %v3201, %v3353
        %v3482 = vadd.f32 %v3202, %v3354
        %v3483 = vadd.f32 %v3203, %v3355
        %v3484 = vadd.f32 %v3204, %v3356
        %v3485 = vadd.f32 %v3205, %v3357
        %v3486 = vadd.f32 %v3206, %v3358
        %v3487 = vadd.f32 %v3207, %v3359
        %v3488 = vadd.f32 %v3208, %v3360
        %v3489 = vadd.f32 %v3209, %v3361
        %v3490 = vadd.f32 %v3210, %v3362
        %v3491 = vadd.f32 %v3211, %v3363
        %v3492 = vadd.f32 %v3212, %v3364
        %v3493 = vadd.f32 %v3213, %v3365
        %v3494 = vadd.f32 %v3214, %v3366
        %v3495 = vadd.f32 %v3215, %v3367
        %v3496 = vadd.f32 %v3216, %v3368
        %v3497 = vadd.f32 %v3217, %v3369
        %v3498 = vadd.f32 %v3218, %v3370
        %v3499 = vadd.f32 %v3219, %v3371
        %v3500 = vadd.f32 %v3220, %v3372
        %v3501 = vadd.f32 %v3221, %v3373
        %v3502 = vadd.f32 %v3222, %v3374
        %v3503 = vadd.f32 %v3223, %v3375
        %v3504 = vadd.f32 %v3224, %v3376
        %v3505 = vadd.f32 %v3225, %v3377
        %v3506 = vadd.f32 %v3226, %v3378
        %v3507 = vadd.f32 %v3227, %v3379
        %v3508 = vadd.f32 %v3228, %v3380
        %v3509 = vadd.f32 %v3229, %v3381
        %v3510 = vadd.f32 %v3230, %v3382
        %v3511 = vadd.f32 %v3231, %v3383
        %v3512 = vadd.f32 %v3232, %v3384
        %v3513 = vadd.f32 %v3233, %v3385
        %v3514 = vadd.f32 %v3234, %v3386
        %v3515 = vadd.f32 %v3235, %v3387
        %v3516 = vadd.f32 %v3236, %v3388
        %v3517 = vadd.f32 %v3237, %v3389
        %v3518 = vadd.f32 %v3238, %v3390
        %v3519 = vadd.f32 %v3239, %v3391
        %v3520 = vadd.f32 %v3240, %v3392
        %v3521 = vadd.f32 %v3241, %v3393
        %v3522 = vadd.f32 %v3242, %v3394
        %v3523 = vadd.f32 %v3243, %v3395
        %v3524 = vadd.f32 %v3244, %v3396
        %v3525 = vadd.f32 %v3245, %v3397
        %v3526 = vadd.f32 %v3246, %v3398
        %v3527 = vadd.f32 %v3247, %v3399
        %v3528 = vadd.f32 %v3248, %v3400
        %v3529 = vadd.f32 %v3249, %v3401
        %v3530 = vadd.f32 %v3250, %v3402
        %v3531 = vadd.f32 %v3251, %v3403
        %v3532 = vadd.f32 %v3252, %v3404
        %v3533 = vadd.f32 %v3253, %v3405
        %v3534 = vadd.f32 %v3254, %v3406
        %v3535 = vadd.f32 %v3255, %v3407
        %v3536 = vadd.f32 %v3256, %v3408
        %v3537 = vadd.f32 %v3257, %v3409
        %v3538 = vadd.f32 %v3258, %v3410
        %v3539 = vadd.f32 %v3259, %v3411
        %v3540 = vadd.f32 %v3260, %v3412
        %v3541 = vadd.f32 %v3261, %v3413
        %v3542 = vadd.f32 %v3262, %v3414
        %v3543 = vadd.f32 %v3263, %v3415
        %v3544 = vadd.f32 %v3264, %v3416
        %v3545 = vadd.f32 %v3265, %v3417
        %v3546 = vadd.f32 %v3266, %v3418
        %v3547 = vadd.f32 %v3267, %v3419
        %v3548 = vadd.f32 %v3268, %v3420
        %v3549 = vadd.f32 %v3269, %v3421
        %v3550 = vadd.f32 %v3270, %v3422
        %v3551 = vadd.f32 %v3271, %v3423
        %v3552 = vadd.f32 %v3272, %v3424
        %v3553 = vadd.f32 %v3273, %v3425
        %v3554 = vadd.f32 %v3274, %v3426
        %v3555 = vadd.f32 %v3275, %v3427
        %v3556 = vadd.f32 %v3276, %v3428
        %v3557 = vadd.f32 %v3277, %v3429
        %v3558 = vadd.f32 %v3278, %v3430
        %v3559 = vadd.f32 %v3279, %v3431
        %v3560 = vadd.f32 %v3280, %v3432
        %v3561 = vadd.f32 %v3281, %v3433
        %v3562 = vadd.f32 %v3282, %v3434
        %v3563 = vadd.f32 %v3283, %v3435
        %v3564 = vadd.f32 %v3284, %v3436
        %v3565 = vadd.f32 %v3285, %v3437
        %v3566 = vadd.f32 %v3286, %v3438
        %v3567 = vadd.f32 %v3287, %v3439
        %v3568 = vadd.f32 %v3288, %v3440
        %v3569 = vadd.f32 %v3289, %v3441
        %v3570 = vadd.f32 %v3290, %v3442
        %v3571 = vadd.f32 %v3291, %v3443
        %v3572 = vadd.f32 %v3292, %v3444
        %v3573 = vadd.f32 %v3293, %v3445
        %v3574 = vadd.f32 %v3294, %v3446
        %v3575 = vadd.f32 %v3295, %v3447
        %v3576 = vadd.f32 %v3296, %v3448
        %v3577 = vadd.f32 %v3297, %v3449
        %v3578 = vadd.f32 %v3298, %v3450
        %v3579 = vadd.f32 %v3299, %v3451
        %v3580 = vadd.f32 %v3300, %v3452
        %v3581 = vadd.f32 %v3301, %v3453
        %v3582 = vadd.f32 %v3302, %v3454
        %v3583 = vadd.f32 %v3303, %v3455
        %v3584 = vadd.f32 %v3304, %v3456
        %v3585 = vadd.f32 %v3305, %v3457
        %v3586 = vadd.f32 %v3306, %v3458
        %v3587 = vadd.f32 %v3307, %v3459
        %v3588 = vadd.f32 %v3308, %v3460
        %v3589 = vadd.f32 %v3309, %v3461
        %s3590 = scalar_lea.vmem %s367, 128
        %v3591 = vld [vmem:[%s3590] sm:$0xff]
        %v3592 = vld [vmem:[%s3590 + $0x8] sm:$0xff]
        %v3593 = vld [vmem:[%s3590 + $0x10] sm:$0xff]
        %v3594 = vld [vmem:[%s3590 + $0x18] sm:$0xff]
        %v3595 = vld [vmem:[%s3590 + $0x20] sm:$0xff]
        %v3596 = vld [vmem:[%s3590 + $0x28] sm:$0xff]
        %v3597 = vld [vmem:[%s3590 + $0x30] sm:$0xff]
        %v3598 = vld [vmem:[%s3590 + $0x38] sm:$0xff]
        %v3599 = vld [vmem:[%s3590 + $0x40] sm:$0xff]
        %v3600 = vld [vmem:[%s3590 + $0x48] sm:$0xff]
        %v3601 = vld [vmem:[%s3590 + $0x50] sm:$0xff]
        %v3602 = vld [vmem:[%s3590 + $0x58] sm:$0xff]
        %v3603 = vld [vmem:[%s3590 + $0x60] sm:$0xff]
        %v3604 = vld [vmem:[%s3590 + $0x68] sm:$0xff]
        %v3605 = vld [vmem:[%s3590 + $0x70] sm:$0xff]
        %v3606 = vld [vmem:[%s3590 + $0x78] sm:$0xff]
        %3608 = vset.pattern.permute.xlu0 0
        %3609 = vperm.xlu0 %3608, %v3591
        %v3610 = vpop.permute.xlu0 %3609
        %3613 = vset.pattern.permute.xlu0 0
        %3614 = vperm.xlu0 %3613, %v3592
        %v3615 = vpop.permute.xlu0 %3614
        %3618 = vset.pattern.permute.xlu0 0
        %3619 = vperm.xlu0 %3618, %v3593
        %v3620 = vpop.permute.xlu0 %3619
        %3623 = vset.pattern.permute.xlu0 0
        %3624 = vperm.xlu0 %3623, %v3594
        %v3625 = vpop.permute.xlu0 %3624
        %3628 = vset.pattern.permute.xlu0 0
        %3629 = vperm.xlu0 %3628, %v3595
        %v3630 = vpop.permute.xlu0 %3629
        %3633 = vset.pattern.permute.xlu0 0
        %3634 = vperm.xlu0 %3633, %v3596
        %v3635 = vpop.permute.xlu0 %3634
        %3638 = vset.pattern.permute.xlu0 0
        %3639 = vperm.xlu0 %3638, %v3597
        %v3640 = vpop.permute.xlu0 %3639
        %3643 = vset.pattern.permute.xlu0 0
        %3644 = vperm.xlu0 %3643, %v3598
        %v3645 = vpop.permute.xlu0 %3644
        %3648 = vset.pattern.permute.xlu0 0
        %3649 = vperm.xlu0 %3648, %v3599
        %v3650 = vpop.permute.xlu0 %3649
        %3653 = vset.pattern.permute.xlu0 0
        %3654 = vperm.xlu0 %3653, %v3600
        %v3655 = vpop.permute.xlu0 %3654
        %3658 = vset.pattern.permute.xlu0 0
        %3659 = vperm.xlu0 %3658, %v3601
        %v3660 = vpop.permute.xlu0 %3659
        %3663 = vset.pattern.permute.xlu0 0
        %3664 = vperm.xlu0 %3663, %v3602
        %v3665 = vpop.permute.xlu0 %3664
        %3668 = vset.pattern.permute.xlu0 0
        %3669 = vperm.xlu0 %3668, %v3603
        %v3670 = vpop.permute.xlu0 %3669
        %3673 = vset.pattern.permute.xlu0 0
        %3674 = vperm.xlu0 %3673, %v3604
        %v3675 = vpop.permute.xlu0 %3674
        %3678 = vset.pattern.permute.xlu0 0
        %3679 = vperm.xlu0 %3678, %v3605
        %v3680 = vpop.permute.xlu0 %3679
        %3683 = vset.pattern.permute.xlu0 0
        %3684 = vperm.xlu0 %3683, %v3606
        %v3685 = vpop.permute.xlu0 %3684
        %v3687 = vadd.f32 %v3462, %v3610
        %v3688 = vadd.f32 %v3463, %v3610
        %v3689 = vadd.f32 %v3464, %v3610
        %v3690 = vadd.f32 %v3465, %v3610
        %v3691 = vadd.f32 %v3466, %v3610
        %v3692 = vadd.f32 %v3467, %v3610
        %v3693 = vadd.f32 %v3468, %v3610
        %v3694 = vadd.f32 %v3469, %v3610
        %v3695 = vadd.f32 %v3470, %v3615
        %v3696 = vadd.f32 %v3471, %v3615
        %v3697 = vadd.f32 %v3472, %v3615
        %v3698 = vadd.f32 %v3473, %v3615
        %v3699 = vadd.f32 %v3474, %v3615
        %v3700 = vadd.f32 %v3475, %v3615
        %v3701 = vadd.f32 %v3476, %v3615
        %v3702 = vadd.f32 %v3477, %v3615
        %v3703 = vadd.f32 %v3478, %v3620
        %v3704 = vadd.f32 %v3479, %v3620
        %v3705 = vadd.f32 %v3480, %v3620
        %v3706 = vadd.f32 %v3481, %v3620
        %v3707 = vadd.f32 %v3482, %v3620
        %v3708 = vadd.f32 %v3483, %v3620
        %v3709 = vadd.f32 %v3484, %v3620
        %v3710 = vadd.f32 %v3485, %v3620
        %v3711 = vadd.f32 %v3486, %v3625
        %v3712 = vadd.f32 %v3487, %v3625
        %v3713 = vadd.f32 %v3488, %v3625
        %v3714 = vadd.f32 %v3489, %v3625
        %v3715 = vadd.f32 %v3490, %v3625
        %v3716 = vadd.f32 %v3491, %v3625
        %v3717 = vadd.f32 %v3492, %v3625
        %v3718 = vadd.f32 %v3493, %v3625
        %v3719 = vadd.f32 %v3494, %v3630
        %v3720 = vadd.f32 %v3495, %v3630
        %v3721 = vadd.f32 %v3496, %v3630
        %v3722 = vadd.f32 %v3497, %v3630
        %v3723 = vadd.f32 %v3498, %v3630
        %v3724 = vadd.f32 %v3499, %v3630
        %v3725 = vadd.f32 %v3500, %v3630
        %v3726 = vadd.f32 %v3501, %v3630
        %v3727 = vadd.f32 %v3502, %v3635
        %v3728 = vadd.f32 %v3503, %v3635
        %v3729 = vadd.f32 %v3504, %v3635
        %v3730 = vadd.f32 %v3505, %v3635
        %v3731 = vadd.f32 %v3506, %v3635
        %v3732 = vadd.f32 %v3507, %v3635
        %v3733 = vadd.f32 %v3508, %v3635
        %v3734 = vadd.f32 %v3509, %v3635
        %v3735 = vadd.f32 %v3510, %v3640
        %v3736 = vadd.f32 %v3511, %v3640
        %v3737 = vadd.f32 %v3512, %v3640
        %v3738 = vadd.f32 %v3513, %v3640
        %v3739 = vadd.f32 %v3514, %v3640
        %v3740 = vadd.f32 %v3515, %v3640
        %v3741 = vadd.f32 %v3516, %v3640
        %v3742 = vadd.f32 %v3517, %v3640
        %v3743 = vadd.f32 %v3518, %v3645
        %v3744 = vadd.f32 %v3519, %v3645
        %v3745 = vadd.f32 %v3520, %v3645
        %v3746 = vadd.f32 %v3521, %v3645
        %v3747 = vadd.f32 %v3522, %v3645
        %v3748 = vadd.f32 %v3523, %v3645
        %v3749 = vadd.f32 %v3524, %v3645
        %v3750 = vadd.f32 %v3525, %v3645
        %v3751 = vadd.f32 %v3526, %v3650
        %v3752 = vadd.f32 %v3527, %v3650
        %v3753 = vadd.f32 %v3528, %v3650
        %v3754 = vadd.f32 %v3529, %v3650
        %v3755 = vadd.f32 %v3530, %v3650
        %v3756 = vadd.f32 %v3531, %v3650
        %v3757 = vadd.f32 %v3532, %v3650
        %v3758 = vadd.f32 %v3533, %v3650
        %v3759 = vadd.f32 %v3534, %v3655
        %v3760 = vadd.f32 %v3535, %v3655
        %v3761 = vadd.f32 %v3536, %v3655
        %v3762 = vadd.f32 %v3537, %v3655
        %v3763 = vadd.f32 %v3538, %v3655
        %v3764 = vadd.f32 %v3539, %v3655
        %v3765 = vadd.f32 %v3540, %v3655
        %v3766 = vadd.f32 %v3541, %v3655
        %v3767 = vadd.f32 %v3542, %v3660
        %v3768 = vadd.f32 %v3543, %v3660
        %v3769 = vadd.f32 %v3544, %v3660
        %v3770 = vadd.f32 %v3545, %v3660
        %v3771 = vadd.f32 %v3546, %v3660
        %v3772 = vadd.f32 %v3547, %v3660
        %v3773 = vadd.f32 %v3548, %v3660
        %v3774 = vadd.f32 %v3549, %v3660
        %v3775 = vadd.f32 %v3550, %v3665
        %v3776 = vadd.f32 %v3551, %v3665
        %v3777 = vadd.f32 %v3552, %v3665
        %v3778 = vadd.f32 %v3553, %v3665
        %v3779 = vadd.f32 %v3554, %v3665
        %v3780 = vadd.f32 %v3555, %v3665
        %v3781 = vadd.f32 %v3556, %v3665
        %v3782 = vadd.f32 %v3557, %v3665
        %v3783 = vadd.f32 %v3558, %v3670
        %v3784 = vadd.f32 %v3559, %v3670
        %v3785 = vadd.f32 %v3560, %v3670
        %v3786 = vadd.f32 %v3561, %v3670
        %v3787 = vadd.f32 %v3562, %v3670
        %v3788 = vadd.f32 %v3563, %v3670
        %v3789 = vadd.f32 %v3564, %v3670
        %v3790 = vadd.f32 %v3565, %v3670
        %v3791 = vadd.f32 %v3566, %v3675
        %v3792 = vadd.f32 %v3567, %v3675
        %v3793 = vadd.f32 %v3568, %v3675
        %v3794 = vadd.f32 %v3569, %v3675
        %v3795 = vadd.f32 %v3570, %v3675
        %v3796 = vadd.f32 %v3571, %v3675
        %v3797 = vadd.f32 %v3572, %v3675
        %v3798 = vadd.f32 %v3573, %v3675
        %v3799 = vadd.f32 %v3574, %v3680
        %v3800 = vadd.f32 %v3575, %v3680
        %v3801 = vadd.f32 %v3576, %v3680
        %v3802 = vadd.f32 %v3577, %v3680
        %v3803 = vadd.f32 %v3578, %v3680
        %v3804 = vadd.f32 %v3579, %v3680
        %v3805 = vadd.f32 %v3580, %v3680
        %v3806 = vadd.f32 %v3581, %v3680
        %v3807 = vadd.f32 %v3582, %v3685
        %v3808 = vadd.f32 %v3583, %v3685
        %v3809 = vadd.f32 %v3584, %v3685
        %v3810 = vadd.f32 %v3585, %v3685
        %v3811 = vadd.f32 %v3586, %v3685
        %v3812 = vadd.f32 %v3587, %v3685
        %v3813 = vadd.f32 %v3588, %v3685
        %v3814 = vadd.f32 %v3589, %v3685
        %v3815 = vmax.f32 %v3687, 0.0
        %v3816 = vmax.f32 %v3688, 0.0
        %v3817 = vmax.f32 %v3689, 0.0
        %v3818 = vmax.f32 %v3690, 0.0
        %v3819 = vmax.f32 %v3691, 0.0
        %v3820 = vmax.f32 %v3692, 0.0
        %v3821 = vmax.f32 %v3693, 0.0
        %v3822 = vmax.f32 %v3694, 0.0
        %v3823 = vmax.f32 %v3695, 0.0
        %v3824 = vmax.f32 %v3696, 0.0
        %v3825 = vmax.f32 %v3697, 0.0
        %v3826 = vmax.f32 %v3698, 0.0
        %v3827 = vmax.f32 %v3699, 0.0
        %v3828 = vmax.f32 %v3700, 0.0
        %v3829 = vmax.f32 %v3701, 0.0
        %v3830 = vmax.f32 %v3702, 0.0
        %v3831 = vmax.f32 %v3703, 0.0
        %v3832 = vmax.f32 %v3704, 0.0
        %v3833 = vmax.f32 %v3705, 0.0
        %v3834 = vmax.f32 %v3706, 0.0
        %v3835 = vmax.f32 %v3707, 0.0
        %v3836 = vmax.f32 %v3708, 0.0
        %v3837 = vmax.f32 %v3709, 0.0
        %v3838 = vmax.f32 %v3710, 0.0
        %v3839 = vmax.f32 %v3711, 0.0
        %v3840 = vmax.f32 %v3712, 0.0
        %v3841 = vmax.f32 %v3713, 0.0
        %v3842 = vmax.f32 %v3714, 0.0
        %v3843 = vmax.f32 %v3715, 0.0
        %v3844 = vmax.f32 %v3716, 0.0
        %v3845 = vmax.f32 %v3717, 0.0
        %v3846 = vmax.f32 %v3718, 0.0
        %v3847 = vmax.f32 %v3719, 0.0
        %v3848 = vmax.f32 %v3720, 0.0
        %v3849 = vmax.f32 %v3721, 0.0
        %v3850 = vmax.f32 %v3722, 0.0
        %v3851 = vmax.f32 %v3723, 0.0
        %v3852 = vmax.f32 %v3724, 0.0
        %v3853 = vmax.f32 %v3725, 0.0
        %v3854 = vmax.f32 %v3726, 0.0
        %v3855 = vmax.f32 %v3727, 0.0
        %v3856 = vmax.f32 %v3728, 0.0
        %v3857 = vmax.f32 %v3729, 0.0
        %v3858 = vmax.f32 %v3730, 0.0
        %v3859 = vmax.f32 %v3731, 0.0
        %v3860 = vmax.f32 %v3732, 0.0
        %v3861 = vmax.f32 %v3733, 0.0
        %v3862 = vmax.f32 %v3734, 0.0
        %v3863 = vmax.f32 %v3735, 0.0
        %v3864 = vmax.f32 %v3736, 0.0
        %v3865 = vmax.f32 %v3737, 0.0
        %v3866 = vmax.f32 %v3738, 0.0
        %v3867 = vmax.f32 %v3739, 0.0
        %v3868 = vmax.f32 %v3740, 0.0
        %v3869 = vmax.f32 %v3741, 0.0
        %v3870 = vmax.f32 %v3742, 0.0
        %v3871 = vmax.f32 %v3743, 0.0
        %v3872 = vmax.f32 %v3744, 0.0
        %v3873 = vmax.f32 %v3745, 0.0
        %v3874 = vmax.f32 %v3746, 0.0
        %v3875 = vmax.f32 %v3747, 0.0
        %v3876 = vmax.f32 %v3748, 0.0
        %v3877 = vmax.f32 %v3749, 0.0
        %v3878 = vmax.f32 %v3750, 0.0
        %v3879 = vmax.f32 %v3751, 0.0
        %v3880 = vmax.f32 %v3752, 0.0
        %v3881 = vmax.f32 %v3753, 0.0
        %v3882 = vmax.f32 %v3754, 0.0
        %v3883 = vmax.f32 %v3755, 0.0
        %v3884 = vmax.f32 %v3756, 0.0
        %v3885 = vmax.f32 %v3757, 0.0
        %v3886 = vmax.f32 %v3758, 0.0
        %v3887 = vmax.f32 %v3759, 0.0
        %v3888 = vmax.f32 %v3760, 0.0
        %v3889 = vmax.f32 %v3761, 0.0
        %v3890 = vmax.f32 %v3762, 0.0
        %v3891 = vmax.f32 %v3763, 0.0
        %v3892 = vmax.f32 %v3764, 0.0
        %v3893 = vmax.f32 %v3765, 0.0
        %v3894 = vmax.f32 %v3766, 0.0
        %v3895 = vmax.f32 %v3767, 0.0
        %v3896 = vmax.f32 %v3768, 0.0
        %v3897 = vmax.f32 %v3769, 0.0
        %v3898 = vmax.f32 %v3770, 0.0
        %v3899 = vmax.f32 %v3771, 0.0
        %v3900 = vmax.f32 %v3772, 0.0
        %v3901 = vmax.f32 %v3773, 0.0
        %v3902 = vmax.f32 %v3774, 0.0
        %v3903 = vmax.f32 %v3775, 0.0
        %v3904 = vmax.f32 %v3776, 0.0
        %v3905 = vmax.f32 %v3777, 0.0
        %v3906 = vmax.f32 %v3778, 0.0
        %v3907 = vmax.f32 %v3779, 0.0
        %v3908 = vmax.f32 %v3780, 0.0
        %v3909 = vmax.f32 %v3781, 0.0
        %v3910 = vmax.f32 %v3782, 0.0
        %v3911 = vmax.f32 %v3783, 0.0
        %v3912 = vmax.f32 %v3784, 0.0
        %v3913 = vmax.f32 %v3785, 0.0
        %v3914 = vmax.f32 %v3786, 0.0
        %v3915 = vmax.f32 %v3787, 0.0
        %v3916 = vmax.f32 %v3788, 0.0
        %v3917 = vmax.f32 %v3789, 0.0
        %v3918 = vmax.f32 %v3790, 0.0
        %v3919 = vmax.f32 %v3791, 0.0
        %v3920 = vmax.f32 %v3792, 0.0
        %v3921 = vmax.f32 %v3793, 0.0
        %v3922 = vmax.f32 %v3794, 0.0
        %v3923 = vmax.f32 %v3795, 0.0
        %v3924 = vmax.f32 %v3796, 0.0
        %v3925 = vmax.f32 %v3797, 0.0
        %v3926 = vmax.f32 %v3798, 0.0
        %v3927 = vmax.f32 %v3799, 0.0
        %v3928 = vmax.f32 %v3800, 0.0
        %v3929 = vmax.f32 %v3801, 0.0
        %v3930 = vmax.f32 %v3802, 0.0
        %v3931 = vmax.f32 %v3803, 0.0
        %v3932 = vmax.f32 %v3804, 0.0
        %v3933 = vmax.f32 %v3805, 0.0
        %v3934 = vmax.f32 %v3806, 0.0
        %v3935 = vmax.f32 %v3807, 0.0
        %v3936 = vmax.f32 %v3808, 0.0
        %v3937 = vmax.f32 %v3809, 0.0
        %v3938 = vmax.f32 %v3810, 0.0
        %v3939 = vmax.f32 %v3811, 0.0
        %v3940 = vmax.f32 %v3812, 0.0
        %v3941 = vmax.f32 %v3813, 0.0
        %v3942 = vmax.f32 %v3814, 0.0
        %v3943 = vpack.c.bf16 %v3823, %v3815
        %v3944 = vpack.c.bf16 %v3824, %v3816
        %v3945 = vpack.c.bf16 %v3825, %v3817
        %v3946 = vpack.c.bf16 %v3826, %v3818
        %v3947 = vpack.c.bf16 %v3827, %v3819
        %v3948 = vpack.c.bf16 %v3828, %v3820
        %v3949 = vpack.c.bf16 %v3829, %v3821
        %v3950 = vpack.c.bf16 %v3830, %v3822
        %v3951 = vpack.c.bf16 %v3839, %v3831
        %v3952 = vpack.c.bf16 %v3840, %v3832
        %v3953 = vpack.c.bf16 %v3841, %v3833
        %v3954 = vpack.c.bf16 %v3842, %v3834
        %v3955 = vpack.c.bf16 %v3843, %v3835
        %v3956 = vpack.c.bf16 %v3844, %v3836
        %v3957 = vpack.c.bf16 %v3845, %v3837
        %v3958 = vpack.c.bf16 %v3846, %v3838
        %v3959 = vpack.c.bf16 %v3855, %v3847
        %v3960 = vpack.c.bf16 %v3856, %v3848
        %v3961 = vpack.c.bf16 %v3857, %v3849
        %v3962 = vpack.c.bf16 %v3858, %v3850
        %v3963 = vpack.c.bf16 %v3859, %v3851
        %v3964 = vpack.c.bf16 %v3860, %v3852
        %v3965 = vpack.c.bf16 %v3861, %v3853
        %v3966 = vpack.c.bf16 %v3862, %v3854
        %v3967 = vpack.c.bf16 %v3871, %v3863
        %v3968 = vpack.c.bf16 %v3872, %v3864
        %v3969 = vpack.c.bf16 %v3873, %v3865
        %v3970 = vpack.c.bf16 %v3874, %v3866
        %v3971 = vpack.c.bf16 %v3875, %v3867
        %v3972 = vpack.c.bf16 %v3876, %v3868
        %v3973 = vpack.c.bf16 %v3877, %v3869
        %v3974 = vpack.c.bf16 %v3878, %v3870
        %v3975 = vpack.c.bf16 %v3887, %v3879
        %v3976 = vpack.c.bf16 %v3888, %v3880
        %v3977 = vpack.c.bf16 %v3889, %v3881
        %v3978 = vpack.c.bf16 %v3890, %v3882
        %v3979 = vpack.c.bf16 %v3891, %v3883
        %v3980 = vpack.c.bf16 %v3892, %v3884
        %v3981 = vpack.c.bf16 %v3893, %v3885
        %v3982 = vpack.c.bf16 %v3894, %v3886
        %v3983 = vpack.c.bf16 %v3903, %v3895
        %v3984 = vpack.c.bf16 %v3904, %v3896
        %v3985 = vpack.c.bf16 %v3905, %v3897
        %v3986 = vpack.c.bf16 %v3906, %v3898
        %v3987 = vpack.c.bf16 %v3907, %v3899
        %v3988 = vpack.c.bf16 %v3908, %v3900
        %v3989 = vpack.c.bf16 %v3909, %v3901
        %v3990 = vpack.c.bf16 %v3910, %v3902
        %v3991 = vpack.c.bf16 %v3919, %v3911
        %v3992 = vpack.c.bf16 %v3920, %v3912
        %v3993 = vpack.c.bf16 %v3921, %v3913
        %v3994 = vpack.c.bf16 %v3922, %v3914
        %v3995 = vpack.c.bf16 %v3923, %v3915
        %v3996 = vpack.c.bf16 %v3924, %v3916
        %v3997 = vpack.c.bf16 %v3925, %v3917
        %v3998 = vpack.c.bf16 %v3926, %v3918
        %v3999 = vpack.c.bf16 %v3935, %v3927
        %v4000 = vpack.c.bf16 %v3936, %v3928
        %v4001 = vpack.c.bf16 %v3937, %v3929
        %v4002 = vpack.c.bf16 %v3938, %v3930
        %v4003 = vpack.c.bf16 %v3939, %v3931
        %v4004 = vpack.c.bf16 %v3940, %v3932
        %v4005 = vpack.c.bf16 %v3941, %v3933
        %v4006 = vpack.c.bf16 %v3942, %v3934
        %4007 = vmatpush.bf16.msra.mxu0 %v3999
        %4008 = vmatpush.bf16.msra.mxu0 %v3991
        %4009 = vmatpush.bf16.msra.mxu0 %v3983
        %4010 = vmatpush.bf16.msra.mxu0 %v3975
        %4011 = vmatpush.bf16.msra.mxu0 %v3967
        %4012 = vmatpush.bf16.msra.mxu0 %v3959
        %4013 = vmatpush.bf16.msra.mxu0 %v3951
        %4014 = vmatpush.bf16.msra.mxu0 %v3943
        %4015 = vmatmul.bf16.gmra.mxu0 %v1912
        %v4016 = vpop.f32.mrf.mxu0
        %v4017 = vadd.f32 %v1803, %v4016
        %v4018 = vpop.f32.mrf.mxu0
        %v4019 = vadd.f32 %v1808, %v4018
        %4020 = vmatmul.bf16.gmra.mxu0 %v1913
        %v4021 = vpop.f32.mrf.mxu0
        %v4022 = vadd.f32 %v1813, %v4021
        %v4023 = vpop.f32.mrf.mxu0
        %v4024 = vadd.f32 %v1818, %v4023
        %4025 = vmatmul.bf16.gmra.mxu0 %v1914
        %v4026 = vpop.f32.mrf.mxu0
        %v4027 = vadd.f32 %v1823, %v4026
        %v4028 = vpop.f32.mrf.mxu0
        %v4029 = vadd.f32 %v1828, %v4028
        %4030 = vmatmul.bf16.gmra.mxu0 %v1915
        %v4031 = vpop.f32.mrf.mxu0
        %v4032 = vadd.f32 %v1833, %v4031
        %v4033 = vpop.f32.mrf.mxu0
        %v4034 = vadd.f32 %v1838, %v4033
        %4035 = vmatmul.bf16.gmra.mxu0 %v1916
        %v4036 = vpop.f32.mrf.mxu0
        %v4037 = vadd.f32 %v1843, %v4036
        %v4038 = vpop.f32.mrf.mxu0
        %v4039 = vadd.f32 %v1848, %v4038
        %4040 = vmatmul.bf16.gmra.mxu0 %v1917
        %v4041 = vpop.f32.mrf.mxu0
        %v4042 = vadd.f32 %v1853, %v4041
        %v4043 = vpop.f32.mrf.mxu0
        %v4044 = vadd.f32 %v1858, %v4043
        %4045 = vmatmul.bf16.gmra.mxu0 %v1918
        %v4046 = vpop.f32.mrf.mxu0
        %v4047 = vadd.f32 %v1863, %v4046
        %v4048 = vpop.f32.mrf.mxu0
        %v4049 = vadd.f32 %v1868, %v4048
        %4050 = vmatmul.bf16.gmra.mxu0 %v1919
        %v4051 = vpop.f32.mrf.mxu0
        %v4052 = vadd.f32 %v1873, %v4051
        %v4053 = vpop.f32.mrf.mxu0
        %v4054 = vadd.f32 %v1878, %v4053
        %4055 = vdwg.mxu0
        %4056 = vmatpush.bf16.msra.mxu0 %v4000
        %4057 = vmatpush.bf16.msra.mxu0 %v3992
        %4058 = vmatpush.bf16.msra.mxu0 %v3984
        %4059 = vmatpush.bf16.msra.mxu0 %v3976
        %4060 = vmatpush.bf16.msra.mxu0 %v3968
        %4061 = vmatpush.bf16.msra.mxu0 %v3960
        %4062 = vmatpush.bf16.msra.mxu0 %v3952
        %4063 = vmatpush.bf16.msra.mxu0 %v3944
        %4064 = vmatmul.bf16.gmra.mxu0 %v1912
        %v4065 = vpop.f32.mrf.mxu0
        %v4066 = vadd.f32 %v1803, %v4065
        %v4067 = vpop.f32.mrf.mxu0
        %v4068 = vadd.f32 %v1808, %v4067
        %4069 = vmatmul.bf16.gmra.mxu0 %v1913
        %v4070 = vpop.f32.mrf.mxu0
        %v4071 = vadd.f32 %v1813, %v4070
        %v4072 = vpop.f32.mrf.mxu0
        %v4073 = vadd.f32 %v1818, %v4072
        %4074 = vmatmul.bf16.gmra.mxu0 %v1914
        %v4075 = vpop.f32.mrf.mxu0
        %v4076 = vadd.f32 %v1823, %v4075
        %v4077 = vpop.f32.mrf.mxu0
        %v4078 = vadd.f32 %v1828, %v4077
        %4079 = vmatmul.bf16.gmra.mxu0 %v1915
        %v4080 = vpop.f32.mrf.mxu0
        %v4081 = vadd.f32 %v1833, %v4080
        %v4082 = vpop.f32.mrf.mxu0
        %v4083 = vadd.f32 %v1838, %v4082
        %4084 = vmatmul.bf16.gmra.mxu0 %v1916
        %v4085 = vpop.f32.mrf.mxu0
        %v4086 = vadd.f32 %v1843, %v4085
        %v4087 = vpop.f32.mrf.mxu0
        %v4088 = vadd.f32 %v1848, %v4087
        %4089 = vmatmul.bf16.gmra.mxu0 %v1917
        %v4090 = vpop.f32.mrf.mxu0
        %v4091 = vadd.f32 %v1853, %v4090
        %v4092 = vpop.f32.mrf.mxu0
        %v4093 = vadd.f32 %v1858, %v4092
        %4094 = vmatmul.bf16.gmra.mxu0 %v1918
        %v4095 = vpop.f32.mrf.mxu0
        %v4096 = vadd.f32 %v1863, %v4095
        %v4097 = vpop.f32.mrf.mxu0
        %v4098 = vadd.f32 %v1868, %v4097
        %4099 = vmatmul.bf16.gmra.mxu0 %v1919
        %v4100 = vpop.f32.mrf.mxu0
        %v4101 = vadd.f32 %v1873, %v4100
        %v4102 = vpop.f32.mrf.mxu0
        %v4103 = vadd.f32 %v1878, %v4102
        %4104 = vdwg.mxu0
        %4105 = vmatpush.bf16.msra.mxu0 %v4001
        %4106 = vmatpush.bf16.msra.mxu0 %v3993
        %4107 = vmatpush.bf16.msra.mxu0 %v3985
        %4108 = vmatpush.bf16.msra.mxu0 %v3977
        %4109 = vmatpush.bf16.msra.mxu0 %v3969
        %4110 = vmatpush.bf16.msra.mxu0 %v3961
        %4111 = vmatpush.bf16.msra.mxu0 %v3953
        %4112 = vmatpush.bf16.msra.mxu0 %v3945
        %4113 = vmatmul.bf16.gmra.mxu0 %v1912
        %v4114 = vpop.f32.mrf.mxu0
        %v4115 = vadd.f32 %v1803, %v4114
        %v4116 = vpop.f32.mrf.mxu0
        %v4117 = vadd.f32 %v1808, %v4116
        %4118 = vmatmul.bf16.gmra.mxu0 %v1913
        %v4119 = vpop.f32.mrf.mxu0
        %v4120 = vadd.f32 %v1813, %v4119
        %v4121 = vpop.f32.mrf.mxu0
        %v4122 = vadd.f32 %v1818, %v4121
        %4123 = vmatmul.bf16.gmra.mxu0 %v1914
        %v4124 = vpop.f32.mrf.mxu0
        %v4125 = vadd.f32 %v1823, %v4124
        %v4126 = vpop.f32.mrf.mxu0
        %v4127 = vadd.f32 %v1828, %v4126
        %4128 = vmatmul.bf16.gmra.mxu0 %v1915
        %v4129 = vpop.f32.mrf.mxu0
        %v4130 = vadd.f32 %v1833, %v4129
        %v4131 = vpop.f32.mrf.mxu0
        %v4132 = vadd.f32 %v1838, %v4131
        %4133 = vmatmul.bf16.gmra.mxu0 %v1916
        %v4134 = vpop.f32.mrf.mxu0
        %v4135 = vadd.f32 %v1843, %v4134
        %v4136 = vpop.f32.mrf.mxu0
        %v4137 = vadd.f32 %v1848, %v4136
        %4138 = vmatmul.bf16.gmra.mxu0 %v1917
        %v4139 = vpop.f32.mrf.mxu0
        %v4140 = vadd.f32 %v1853, %v4139
        %v4141 = vpop.f32.mrf.mxu0
        %v4142 = vadd.f32 %v1858, %v4141
        %4143 = vmatmul.bf16.gmra.mxu0 %v1918
        %v4144 = vpop.f32.mrf.mxu0
        %v4145 = vadd.f32 %v1863, %v4144
        %v4146 = vpop.f32.mrf.mxu0
        %v4147 = vadd.f32 %v1868, %v4146
        %4148 = vmatmul.bf16.gmra.mxu0 %v1919
        %v4149 = vpop.f32.mrf.mxu0
        %v4150 = vadd.f32 %v1873, %v4149
        %v4151 = vpop.f32.mrf.mxu0
        %v4152 = vadd.f32 %v1878, %v4151
        %4153 = vdwg.mxu0
        %4154 = vmatpush.bf16.msra.mxu0 %v4002
        %4155 = vmatpush.bf16.msra.mxu0 %v3994
        %4156 = vmatpush.bf16.msra.mxu0 %v3986
        %4157 = vmatpush.bf16.msra.mxu0 %v3978
        %4158 = vmatpush.bf16.msra.mxu0 %v3970
        %4159 = vmatpush.bf16.msra.mxu0 %v3962
        %4160 = vmatpush.bf16.msra.mxu0 %v3954
        %4161 = vmatpush.bf16.msra.mxu0 %v3946
        %4162 = vmatmul.bf16.gmra.mxu0 %v1912
        %v4163 = vpop.f32.mrf.mxu0
        %v4164 = vadd.f32 %v1803, %v4163
        %v4165 = vpop.f32.mrf.mxu0
        %v4166 = vadd.f32 %v1808, %v4165
        %4167 = vmatmul.bf16.gmra.mxu0 %v1913
        %v4168 = vpop.f32.mrf.mxu0
        %v4169 = vadd.f32 %v1813, %v4168
        %v4170 = vpop.f32.mrf.mxu0
        %v4171 = vadd.f32 %v1818, %v4170
        %4172 = vmatmul.bf16.gmra.mxu0 %v1914
        %v4173 = vpop.f32.mrf.mxu0
        %v4174 = vadd.f32 %v1823, %v4173
        %v4175 = vpop.f32.mrf.mxu0
        %v4176 = vadd.f32 %v1828, %v4175
        %4177 = vmatmul.bf16.gmra.mxu0 %v1915
        %v4178 = vpop.f32.mrf.mxu0
        %v4179 = vadd.f32 %v1833, %v4178
        %v4180 = vpop.f32.mrf.mxu0
        %v4181 = vadd.f32 %v1838, %v4180
        %4182 = vmatmul.bf16.gmra.mxu0 %v1916
        %v4183 = vpop.f32.mrf.mxu0
        %v4184 = vadd.f32 %v1843, %v4183
        %v4185 = vpop.f32.mrf.mxu0
        %v4186 = vadd.f32 %v1848, %v4185
        %4187 = vmatmul.bf16.gmra.mxu0 %v1917
        %v4188 = vpop.f32.mrf.mxu0
        %v4189 = vadd.f32 %v1853, %v4188
        %v4190 = vpop.f32.mrf.mxu0
        %v4191 = vadd.f32 %v1858, %v4190
        %4192 = vmatmul.bf16.gmra.mxu0 %v1918
        %v4193 = vpop.f32.mrf.mxu0
        %v4194 = vadd.f32 %v1863, %v4193
        %v4195 = vpop.f32.mrf.mxu0
        %v4196 = vadd.f32 %v1868, %v4195
        %4197 = vmatmul.bf16.gmra.mxu0 %v1919
        %v4198 = vpop.f32.mrf.mxu0
        %v4199 = vadd.f32 %v1873, %v4198
        %v4200 = vpop.f32.mrf.mxu0
        %v4201 = vadd.f32 %v1878, %v4200
        %4202 = vdwg.mxu0
        %4203 = vmatpush.bf16.msra.mxu0 %v4003
        %4204 = vmatpush.bf16.msra.mxu0 %v3995
        %4205 = vmatpush.bf16.msra.mxu0 %v3987
        %4206 = vmatpush.bf16.msra.mxu0 %v3979
        %4207 = vmatpush.bf16.msra.mxu0 %v3971
        %4208 = vmatpush.bf16.msra.mxu0 %v3963
        %4209 = vmatpush.bf16.msra.mxu0 %v3955
        %4210 = vmatpush.bf16.msra.mxu0 %v3947
        %4211 = vmatmul.bf16.gmra.mxu0 %v1912
        %v4212 = vpop.f32.mrf.mxu0
        %v4213 = vadd.f32 %v1803, %v4212
        %v4214 = vpop.f32.mrf.mxu0
        %v4215 = vadd.f32 %v1808, %v4214
        %4216 = vmatmul.bf16.gmra.mxu0 %v1913
        %v4217 = vpop.f32.mrf.mxu0
        %v4218 = vadd.f32 %v1813, %v4217
        %v4219 = vpop.f32.mrf.mxu0
        %v4220 = vadd.f32 %v1818, %v4219
        %4221 = vmatmul.bf16.gmra.mxu0 %v1914
        %v4222 = vpop.f32.mrf.mxu0
        %v4223 = vadd.f32 %v1823, %v4222
        %v4224 = vpop.f32.mrf.mxu0
        %v4225 = vadd.f32 %v1828, %v4224
        %4226 = vmatmul.bf16.gmra.mxu0 %v1915
        %v4227 = vpop.f32.mrf.mxu0
        %v4228 = vadd.f32 %v1833, %v4227
        %v4229 = vpop.f32.mrf.mxu0
        %v4230 = vadd.f32 %v1838, %v4229
        %4231 = vmatmul.bf16.gmra.mxu0 %v1916
        %v4232 = vpop.f32.mrf.mxu0
        %v4233 = vadd.f32 %v1843, %v4232
        %v4234 = vpop.f32.mrf.mxu0
        %v4235 = vadd.f32 %v1848, %v4234
        %4236 = vmatmul.bf16.gmra.mxu0 %v1917
        %v4237 = vpop.f32.mrf.mxu0
        %v4238 = vadd.f32 %v1853, %v4237
        %v4239 = vpop.f32.mrf.mxu0
        %v4240 = vadd.f32 %v1858, %v4239
        %4241 = vmatmul.bf16.gmra.mxu0 %v1918
        %v4242 = vpop.f32.mrf.mxu0
        %v4243 = vadd.f32 %v1863, %v4242
        %v4244 = vpop.f32.mrf.mxu0
        %v4245 = vadd.f32 %v1868, %v4244
        %4246 = vmatmul.bf16.gmra.mxu0 %v1919
        %v4247 = vpop.f32.mrf.mxu0
        %v4248 = vadd.f32 %v1873, %v4247
        %v4249 = vpop.f32.mrf.mxu0
        %v4250 = vadd.f32 %v1878, %v4249
        %4251 = vdwg.mxu0
        %4252 = vmatpush.bf16.msra.mxu0 %v4004
        %4253 = vmatpush.bf16.msra.mxu0 %v3996
        %4254 = vmatpush.bf16.msra.mxu0 %v3988
        %4255 = vmatpush.bf16.msra.mxu0 %v3980
        %4256 = vmatpush.bf16.msra.mxu0 %v3972
        %4257 = vmatpush.bf16.msra.mxu0 %v3964
        %4258 = vmatpush.bf16.msra.mxu0 %v3956
        %4259 = vmatpush.bf16.msra.mxu0 %v3948
        %4260 = vmatmul.bf16.gmra.mxu0 %v1912
        %v4261 = vpop.f32.mrf.mxu0
        %v4262 = vadd.f32 %v1803, %v4261
        %v4263 = vpop.f32.mrf.mxu0
        %v4264 = vadd.f32 %v1808, %v4263
        %4265 = vmatmul.bf16.gmra.mxu0 %v1913
        %v4266 = vpop.f32.mrf.mxu0
        %v4267 = vadd.f32 %v1813, %v4266
        %v4268 = vpop.f32.mrf.mxu0
        %v4269 = vadd.f32 %v1818, %v4268
        %4270 = vmatmul.bf16.gmra.mxu0 %v1914
        %v4271 = vpop.f32.mrf.mxu0
        %v4272 = vadd.f32 %v1823, %v4271
        %v4273 = vpop.f32.mrf.mxu0
        %v4274 = vadd.f32 %v1828, %v4273
        %4275 = vmatmul.bf16.gmra.mxu0 %v1915
        %v4276 = vpop.f32.mrf.mxu0
        %v4277 = vadd.f32 %v1833, %v4276
        %v4278 = vpop.f32.mrf.mxu0
        %v4279 = vadd.f32 %v1838, %v4278
        %4280 = vmatmul.bf16.gmra.mxu0 %v1916
        %v4281 = vpop.f32.mrf.mxu0
        %v4282 = vadd.f32 %v1843, %v4281
        %v4283 = vpop.f32.mrf.mxu0
        %v4284 = vadd.f32 %v1848, %v4283
        %4285 = vmatmul.bf16.gmra.mxu0 %v1917
        %v4286 = vpop.f32.mrf.mxu0
        %v4287 = vadd.f32 %v1853, %v4286
        %v4288 = vpop.f32.mrf.mxu0
        %v4289 = vadd.f32 %v1858, %v4288
        %4290 = vmatmul.bf16.gmra.mxu0 %v1918
        %v4291 = vpop.f32.mrf.mxu0
        %v4292 = vadd.f32 %v1863, %v4291
        %v4293 = vpop.f32.mrf.mxu0
        %v4294 = vadd.f32 %v1868, %v4293
        %4295 = vmatmul.bf16.gmra.mxu0 %v1919
        %v4296 = vpop.f32.mrf.mxu0
        %v4297 = vadd.f32 %v1873, %v4296
        %v4298 = vpop.f32.mrf.mxu0
        %v4299 = vadd.f32 %v1878, %v4298
        %4300 = vdwg.mxu0
        %4301 = vmatpush.bf16.msra.mxu0 %v4005
        %4302 = vmatpush.bf16.msra.mxu0 %v3997
        %4303 = vmatpush.bf16.msra.mxu0 %v3989
        %4304 = vmatpush.bf16.msra.mxu0 %v3981
        %4305 = vmatpush.bf16.msra.mxu0 %v3973
        %4306 = vmatpush.bf16.msra.mxu0 %v3965
        %4307 = vmatpush.bf16.msra.mxu0 %v3957
        %4308 = vmatpush.bf16.msra.mxu0 %v3949
        %4309 = vmatmul.bf16.gmra.mxu0 %v1912
        %v4310 = vpop.f32.mrf.mxu0
        %v4311 = vadd.f32 %v1803, %v4310
        %v4312 = vpop.f32.mrf.mxu0
        %v4313 = vadd.f32 %v1808, %v4312
        %4314 = vmatmul.bf16.gmra.mxu0 %v1913
        %v4315 = vpop.f32.mrf.mxu0
        %v4316 = vadd.f32 %v1813, %v4315
        %v4317 = vpop.f32.mrf.mxu0
        %v4318 = vadd.f32 %v1818, %v4317
        %4319 = vmatmul.bf16.gmra.mxu0 %v1914
        %v4320 = vpop.f32.mrf.mxu0
        %v4321 = vadd.f32 %v1823, %v4320
        %v4322 = vpop.f32.mrf.mxu0
        %v4323 = vadd.f32 %v1828, %v4322
        %4324 = vmatmul.bf16.gmra.mxu0 %v1915
        %v4325 = vpop.f32.mrf.mxu0
        %v4326 = vadd.f32 %v1833, %v4325
        %v4327 = vpop.f32.mrf.mxu0
        %v4328 = vadd.f32 %v1838, %v4327
        %4329 = vmatmul.bf16.gmra.mxu0 %v1916
        %v4330 = vpop.f32.mrf.mxu0
        %v4331 = vadd.f32 %v1843, %v4330
        %v4332 = vpop.f32.mrf.mxu0
        %v4333 = vadd.f32 %v1848, %v4332
        %4334 = vmatmul.bf16.gmra.mxu0 %v1917
        %v4335 = vpop.f32.mrf.mxu0
        %v4336 = vadd.f32 %v1853, %v4335
        %v4337 = vpop.f32.mrf.mxu0
        %v4338 = vadd.f32 %v1858, %v4337
        %4339 = vmatmul.bf16.gmra.mxu0 %v1918
        %v4340 = vpop.f32.mrf.mxu0
        %v4341 = vadd.f32 %v1863, %v4340
        %v4342 = vpop.f32.mrf.mxu0
        %v4343 = vadd.f32 %v1868, %v4342
        %4344 = vmatmul.bf16.gmra.mxu0 %v1919
        %v4345 = vpop.f32.mrf.mxu0
        %v4346 = vadd.f32 %v1873, %v4345
        %v4347 = vpop.f32.mrf.mxu0
        %v4348 = vadd.f32 %v1878, %v4347
        %4349 = vdwg.mxu0
        %4350 = vmatpush.bf16.msra.mxu0 %v4006
        %4351 = vmatpush.bf16.msra.mxu0 %v3998
        %4352 = vmatpush.bf16.msra.mxu0 %v3990
        %4353 = vmatpush.bf16.msra.mxu0 %v3982
        %4354 = vmatpush.bf16.msra.mxu0 %v3974
        %4355 = vmatpush.bf16.msra.mxu0 %v3966
        %4356 = vmatpush.bf16.msra.mxu0 %v3958
        %4357 = vmatpush.bf16.msra.mxu0 %v3950
        %4358 = vmatmul.bf16.gmra.mxu0 %v1912
        %v4359 = vpop.f32.mrf.mxu0
        %v4360 = vadd.f32 %v1803, %v4359
        %v4361 = vpop.f32.mrf.mxu0
        %v4362 = vadd.f32 %v1808, %v4361
        %4363 = vmatmul.bf16.gmra.mxu0 %v1913
        %v4364 = vpop.f32.mrf.mxu0
        %v4365 = vadd.f32 %v1813, %v4364
        %v4366 = vpop.f32.mrf.mxu0
        %v4367 = vadd.f32 %v1818, %v4366
        %4368 = vmatmul.bf16.gmra.mxu0 %v1914
        %v4369 = vpop.f32.mrf.mxu0
        %v4370 = vadd.f32 %v1823, %v4369
        %v4371 = vpop.f32.mrf.mxu0
        %v4372 = vadd.f32 %v1828, %v4371
        %4373 = vmatmul.bf16.gmra.mxu0 %v1915
        %v4374 = vpop.f32.mrf.mxu0
        %v4375 = vadd.f32 %v1833, %v4374
        %v4376 = vpop.f32.mrf.mxu0
        %v4377 = vadd.f32 %v1838, %v4376
        %4378 = vmatmul.bf16.gmra.mxu0 %v1916
        %v4379 = vpop.f32.mrf.mxu0
        %v4380 = vadd.f32 %v1843, %v4379
        %v4381 = vpop.f32.mrf.mxu0
        %v4382 = vadd.f32 %v1848, %v4381
        %4383 = vmatmul.bf16.gmra.mxu0 %v1917
        %v4384 = vpop.f32.mrf.mxu0
        %v4385 = vadd.f32 %v1853, %v4384
        %v4386 = vpop.f32.mrf.mxu0
        %v4387 = vadd.f32 %v1858, %v4386
        %4388 = vmatmul.bf16.gmra.mxu0 %v1918
        %v4389 = vpop.f32.mrf.mxu0
        %v4390 = vadd.f32 %v1863, %v4389
        %v4391 = vpop.f32.mrf.mxu0
        %v4392 = vadd.f32 %v1868, %v4391
        %4393 = vmatmul.bf16.gmra.mxu0 %v1919
        %v4394 = vpop.f32.mrf.mxu0
        %v4395 = vadd.f32 %v1873, %v4394
        %v4396 = vpop.f32.mrf.mxu0
        %v4397 = vadd.f32 %v1878, %v4396
        %4398 = vdwg.mxu0
        %v4399 = vmax.f32 %v4017, 0.0
        %v4400 = vmax.f32 %v4066, 0.0
        %v4401 = vmax.f32 %v4115, 0.0
        %v4402 = vmax.f32 %v4164, 0.0
        %v4403 = vmax.f32 %v4213, 0.0
        %v4404 = vmax.f32 %v4262, 0.0
        %v4405 = vmax.f32 %v4311, 0.0
        %v4406 = vmax.f32 %v4360, 0.0
        %v4407 = vmax.f32 %v4019, 0.0
        %v4408 = vmax.f32 %v4068, 0.0
        %v4409 = vmax.f32 %v4117, 0.0
        %v4410 = vmax.f32 %v4166, 0.0
        %v4411 = vmax.f32 %v4215, 0.0
        %v4412 = vmax.f32 %v4264, 0.0
        %v4413 = vmax.f32 %v4313, 0.0
        %v4414 = vmax.f32 %v4362, 0.0
        %v4415 = vmax.f32 %v4022, 0.0
        %v4416 = vmax.f32 %v4071, 0.0
        %v4417 = vmax.f32 %v4120, 0.0
        %v4418 = vmax.f32 %v4169, 0.0
        %v4419 = vmax.f32 %v4218, 0.0
        %v4420 = vmax.f32 %v4267, 0.0
        %v4421 = vmax.f32 %v4316, 0.0
        %v4422 = vmax.f32 %v4365, 0.0
        %v4423 = vmax.f32 %v4024, 0.0
        %v4424 = vmax.f32 %v4073, 0.0
        %v4425 = vmax.f32 %v4122, 0.0
        %v4426 = vmax.f32 %v4171, 0.0
        %v4427 = vmax.f32 %v4220, 0.0
        %v4428 = vmax.f32 %v4269, 0.0
        %v4429 = vmax.f32 %v4318, 0.0
        %v4430 = vmax.f32 %v4367, 0.0
        %v4431 = vmax.f32 %v4027, 0.0
        %v4432 = vmax.f32 %v4076, 0.0
        %v4433 = vmax.f32 %v4125, 0.0
        %v4434 = vmax.f32 %v4174, 0.0
        %v4435 = vmax.f32 %v4223, 0.0
        %v4436 = vmax.f32 %v4272, 0.0
        %v4437 = vmax.f32 %v4321, 0.0
        %v4438 = vmax.f32 %v4370, 0.0
        %v4439 = vmax.f32 %v4029, 0.0
        %v4440 = vmax.f32 %v4078, 0.0
        %v4441 = vmax.f32 %v4127, 0.0
        %v4442 = vmax.f32 %v4176, 0.0
        %v4443 = vmax.f32 %v4225, 0.0
        %v4444 = vmax.f32 %v4274, 0.0
        %v4445 = vmax.f32 %v4323, 0.0
        %v4446 = vmax.f32 %v4372, 0.0
        %v4447 = vmax.f32 %v4032, 0.0
        %v4448 = vmax.f32 %v4081, 0.0
        %v4449 = vmax.f32 %v4130, 0.0
        %v4450 = vmax.f32 %v4179, 0.0
        %v4451 = vmax.f32 %v4228, 0.0
        %v4452 = vmax.f32 %v4277, 0.0
        %v4453 = vmax.f32 %v4326, 0.0
        %v4454 = vmax.f32 %v4375, 0.0
        %v4455 = vmax.f32 %v4034, 0.0
        %v4456 = vmax.f32 %v4083, 0.0
        %v4457 = vmax.f32 %v4132, 0.0
        %v4458 = vmax.f32 %v4181, 0.0
        %v4459 = vmax.f32 %v4230, 0.0
        %v4460 = vmax.f32 %v4279, 0.0
        %v4461 = vmax.f32 %v4328, 0.0
        %v4462 = vmax.f32 %v4377, 0.0
        %v4463 = vmax.f32 %v4037, 0.0
        %v4464 = vmax.f32 %v4086, 0.0
        %v4465 = vmax.f32 %v4135, 0.0
        %v4466 = vmax.f32 %v4184, 0.0
        %v4467 = vmax.f32 %v4233, 0.0
        %v4468 = vmax.f32 %v4282, 0.0
        %v4469 = vmax.f32 %v4331, 0.0
        %v4470 = vmax.f32 %v4380, 0.0
        %v4471 = vmax.f32 %v4039, 0.0
        %v4472 = vmax.f32 %v4088, 0.0
        %v4473 = vmax.f32 %v4137, 0.0
        %v4474 = vmax.f32 %v4186, 0.0
        %v4475 = vmax.f32 %v4235, 0.0
        %v4476 = vmax.f32 %v4284, 0.0
        %v4477 = vmax.f32 %v4333, 0.0
        %v4478 = vmax.f32 %v4382, 0.0
        %v4479 = vmax.f32 %v4042, 0.0
        %v4480 = vmax.f32 %v4091, 0.0
        %v4481 = vmax.f32 %v4140, 0.0
        %v4482 = vmax.f32 %v4189, 0.0
        %v4483 = vmax.f32 %v4238, 0.0
        %v4484 = vmax.f32 %v4287, 0.0
        %v4485 = vmax.f32 %v4336, 0.0
        %v4486 = vmax.f32 %v4385, 0.0
        %v4487 = vmax.f32 %v4044, 0.0
        %v4488 = vmax.f32 %v4093, 0.0
        %v4489 = vmax.f32 %v4142, 0.0
        %v4490 = vmax.f32 %v4191, 0.0
        %v4491 = vmax.f32 %v4240, 0.0
        %v4492 = vmax.f32 %v4289, 0.0
        %v4493 = vmax.f32 %v4338, 0.0
        %v4494 = vmax.f32 %v4387, 0.0
        %v4495 = vmax.f32 %v4047, 0.0
        %v4496 = vmax.f32 %v4096, 0.0
        %v4497 = vmax.f32 %v4145, 0.0
        %v4498 = vmax.f32 %v4194, 0.0
        %v4499 = vmax.f32 %v4243, 0.0
        %v4500 = vmax.f32 %v4292, 0.0
        %v4501 = vmax.f32 %v4341, 0.0
        %v4502 = vmax.f32 %v4390, 0.0
        %v4503 = vmax.f32 %v4049, 0.0
        %v4504 = vmax.f32 %v4098, 0.0
        %v4505 = vmax.f32 %v4147, 0.0
        %v4506 = vmax.f32 %v4196, 0.0
        %v4507 = vmax.f32 %v4245, 0.0
        %v4508 = vmax.f32 %v4294, 0.0
        %v4509 = vmax.f32 %v4343, 0.0
        %v4510 = vmax.f32 %v4392, 0.0
        %v4511 = vmax.f32 %v4052, 0.0
        %v4512 = vmax.f32 %v4101, 0.0
        %v4513 = vmax.f32 %v4150, 0.0
        %v4514 = vmax.f32 %v4199, 0.0
        %v4515 = vmax.f32 %v4248, 0.0
        %v4516 = vmax.f32 %v4297, 0.0
        %v4517 = vmax.f32 %v4346, 0.0
        %v4518 = vmax.f32 %v4395, 0.0
        %v4519 = vmax.f32 %v4054, 0.0
        %v4520 = vmax.f32 %v4103, 0.0
        %v4521 = vmax.f32 %v4152, 0.0
        %v4522 = vmax.f32 %v4201, 0.0
        %v4523 = vmax.f32 %v4250, 0.0
        %v4524 = vmax.f32 %v4299, 0.0
        %v4525 = vmax.f32 %v4348, 0.0
        %v4526 = vmax.f32 %v4397, 0.0
        %v4527 = vmul.f32 %v4399, %v2451
        %v4528 = vmul.f32 %v4400, %v2451
        %v4529 = vmul.f32 %v4401, %v2451
        %v4530 = vmul.f32 %v4402, %v2451
        %v4531 = vmul.f32 %v4403, %v2451
        %v4532 = vmul.f32 %v4404, %v2451
        %v4533 = vmul.f32 %v4405, %v2451
        %v4534 = vmul.f32 %v4406, %v2451
        %v4535 = vmul.f32 %v4407, %v2456
        %v4536 = vmul.f32 %v4408, %v2456
        %v4537 = vmul.f32 %v4409, %v2456
        %v4538 = vmul.f32 %v4410, %v2456
        %v4539 = vmul.f32 %v4411, %v2456
        %v4540 = vmul.f32 %v4412, %v2456
        %v4541 = vmul.f32 %v4413, %v2456
        %v4542 = vmul.f32 %v4414, %v2456
        %v4543 = vmul.f32 %v4415, %v2461
        %v4544 = vmul.f32 %v4416, %v2461
        %v4545 = vmul.f32 %v4417, %v2461
        %v4546 = vmul.f32 %v4418, %v2461
        %v4547 = vmul.f32 %v4419, %v2461
        %v4548 = vmul.f32 %v4420, %v2461
        %v4549 = vmul.f32 %v4421, %v2461
        %v4550 = vmul.f32 %v4422, %v2461
        %v4551 = vmul.f32 %v4423, %v2466
        %v4552 = vmul.f32 %v4424, %v2466
        %v4553 = vmul.f32 %v4425, %v2466
        %v4554 = vmul.f32 %v4426, %v2466
        %v4555 = vmul.f32 %v4427, %v2466
        %v4556 = vmul.f32 %v4428, %v2466
        %v4557 = vmul.f32 %v4429, %v2466
        %v4558 = vmul.f32 %v4430, %v2466
        %v4559 = vmul.f32 %v4431, %v2471
        %v4560 = vmul.f32 %v4432, %v2471
        %v4561 = vmul.f32 %v4433, %v2471
        %v4562 = vmul.f32 %v4434, %v2471
        %v4563 = vmul.f32 %v4435, %v2471
        %v4564 = vmul.f32 %v4436, %v2471
        %v4565 = vmul.f32 %v4437, %v2471
        %v4566 = vmul.f32 %v4438, %v2471
        %v4567 = vmul.f32 %v4439, %v2476
        %v4568 = vmul.f32 %v4440, %v2476
        %v4569 = vmul.f32 %v4441, %v2476
        %v4570 = vmul.f32 %v4442, %v2476
        %v4571 = vmul.f32 %v4443, %v2476
        %v4572 = vmul.f32 %v4444, %v2476
        %v4573 = vmul.f32 %v4445, %v2476
        %v4574 = vmul.f32 %v4446, %v2476
        %v4575 = vmul.f32 %v4447, %v2481
        %v4576 = vmul.f32 %v4448, %v2481
        %v4577 = vmul.f32 %v4449, %v2481
        %v4578 = vmul.f32 %v4450, %v2481
        %v4579 = vmul.f32 %v4451, %v2481
        %v4580 = vmul.f32 %v4452, %v2481
        %v4581 = vmul.f32 %v4453, %v2481
        %v4582 = vmul.f32 %v4454, %v2481
        %v4583 = vmul.f32 %v4455, %v2486
        %v4584 = vmul.f32 %v4456, %v2486
        %v4585 = vmul.f32 %v4457, %v2486
        %v4586 = vmul.f32 %v4458, %v2486
        %v4587 = vmul.f32 %v4459, %v2486
        %v4588 = vmul.f32 %v4460, %v2486
        %v4589 = vmul.f32 %v4461, %v2486
        %v4590 = vmul.f32 %v4462, %v2486
        %v4591 = vmul.f32 %v4463, %v2491
        %v4592 = vmul.f32 %v4464, %v2491
        %v4593 = vmul.f32 %v4465, %v2491
        %v4594 = vmul.f32 %v4466, %v2491
        %v4595 = vmul.f32 %v4467, %v2491
        %v4596 = vmul.f32 %v4468, %v2491
        %v4597 = vmul.f32 %v4469, %v2491
        %v4598 = vmul.f32 %v4470, %v2491
        %v4599 = vmul.f32 %v4471, %v2496
        %v4600 = vmul.f32 %v4472, %v2496
        %v4601 = vmul.f32 %v4473, %v2496
        %v4602 = vmul.f32 %v4474, %v2496
        %v4603 = vmul.f32 %v4475, %v2496
        %v4604 = vmul.f32 %v4476, %v2496
        %v4605 = vmul.f32 %v4477, %v2496
        %v4606 = vmul.f32 %v4478, %v2496
        %v4607 = vmul.f32 %v4479, %v2501
        %v4608 = vmul.f32 %v4480, %v2501
        %v4609 = vmul.f32 %v4481, %v2501
        %v4610 = vmul.f32 %v4482, %v2501
        %v4611 = vmul.f32 %v4483, %v2501
        %v4612 = vmul.f32 %v4484, %v2501
        %v4613 = vmul.f32 %v4485, %v2501
        %v4614 = vmul.f32 %v4486, %v2501
        %v4615 = vmul.f32 %v4487, %v2506
        %v4616 = vmul.f32 %v4488, %v2506
        %v4617 = vmul.f32 %v4489, %v2506
        %v4618 = vmul.f32 %v4490, %v2506
        %v4619 = vmul.f32 %v4491, %v2506
        %v4620 = vmul.f32 %v4492, %v2506
        %v4621 = vmul.f32 %v4493, %v2506
        %v4622 = vmul.f32 %v4494, %v2506
        %v4623 = vmul.f32 %v4495, %v2511
        %v4624 = vmul.f32 %v4496, %v2511
        %v4625 = vmul.f32 %v4497, %v2511
        %v4626 = vmul.f32 %v4498, %v2511
        %v4627 = vmul.f32 %v4499, %v2511
        %v4628 = vmul.f32 %v4500, %v2511
        %v4629 = vmul.f32 %v4501, %v2511
        %v4630 = vmul.f32 %v4502, %v2511
        %v4631 = vmul.f32 %v4503, %v2516
        %v4632 = vmul.f32 %v4504, %v2516
        %v4633 = vmul.f32 %v4505, %v2516
        %v4634 = vmul.f32 %v4506, %v2516
        %v4635 = vmul.f32 %v4507, %v2516
        %v4636 = vmul.f32 %v4508, %v2516
        %v4637 = vmul.f32 %v4509, %v2516
        %v4638 = vmul.f32 %v4510, %v2516
        %v4639 = vmul.f32 %v4511, %v2521
        %v4640 = vmul.f32 %v4512, %v2521
        %v4641 = vmul.f32 %v4513, %v2521
        %v4642 = vmul.f32 %v4514, %v2521
        %v4643 = vmul.f32 %v4515, %v2521
        %v4644 = vmul.f32 %v4516, %v2521
        %v4645 = vmul.f32 %v4517, %v2521
        %v4646 = vmul.f32 %v4518, %v2521
        %v4647 = vmul.f32 %v4519, %v2526
        %v4648 = vmul.f32 %v4520, %v2526
        %v4649 = vmul.f32 %v4521, %v2526
        %v4650 = vmul.f32 %v4522, %v2526
        %v4651 = vmul.f32 %v4523, %v2526
        %v4652 = vmul.f32 %v4524, %v2526
        %v4653 = vmul.f32 %v4525, %v2526
        %v4654 = vmul.f32 %v4526, %v2526
        %v4655 = vadd.f32 %v4527, %v4535
        %v4656 = vadd.f32 %v4655, %v4543
        %v4657 = vadd.f32 %v4656, %v4551
        %v4658 = vadd.f32 %v4657, %v4559
        %v4659 = vadd.f32 %v4658, %v4567
        %v4660 = vadd.f32 %v4659, %v4575
        %v4661 = vadd.f32 %v4660, %v4583
        %v4662 = vadd.f32 %v4661, %v4591
        %v4663 = vadd.f32 %v4662, %v4599
        %v4664 = vadd.f32 %v4663, %v4607
        %v4665 = vadd.f32 %v4664, %v4615
        %v4666 = vadd.f32 %v4665, %v4623
        %v4667 = vadd.f32 %v4666, %v4631
        %v4668 = vadd.f32 %v4667, %v4639
        %v4669 = vadd.f32 %v4668, %v4647
        %v4670 = vrot.slane %v4669, 4
        %v4671 = vadd.f32 %v4669, %v4670
        %v4672 = vrot.slane %v4671, 2
        %v4673 = vadd.f32 %v4671, %v4672
        %v4674 = vrot.slane %v4673, 1
        %v4675 = vadd.f32 %v4673, %v4674
        %v4676 = vadd.f32 %v4528, %v4536
        %v4677 = vadd.f32 %v4676, %v4544
        %v4678 = vadd.f32 %v4677, %v4552
        %v4679 = vadd.f32 %v4678, %v4560
        %v4680 = vadd.f32 %v4679, %v4568
        %v4681 = vadd.f32 %v4680, %v4576
        %v4682 = vadd.f32 %v4681, %v4584
        %v4683 = vadd.f32 %v4682, %v4592
        %v4684 = vadd.f32 %v4683, %v4600
        %v4685 = vadd.f32 %v4684, %v4608
        %v4686 = vadd.f32 %v4685, %v4616
        %v4687 = vadd.f32 %v4686, %v4624
        %v4688 = vadd.f32 %v4687, %v4632
        %v4689 = vadd.f32 %v4688, %v4640
        %v4690 = vadd.f32 %v4689, %v4648
        %v4691 = vrot.slane %v4690, 4
        %v4692 = vadd.f32 %v4690, %v4691
        %v4693 = vrot.slane %v4692, 2
        %v4694 = vadd.f32 %v4692, %v4693
        %v4695 = vrot.slane %v4694, 1
        %v4696 = vadd.f32 %v4694, %v4695
        %v4697 = vadd.f32 %v4529, %v4537
        %v4698 = vadd.f32 %v4697, %v4545
        %v4699 = vadd.f32 %v4698, %v4553
        %v4700 = vadd.f32 %v4699, %v4561
        %v4701 = vadd.f32 %v4700, %v4569
        %v4702 = vadd.f32 %v4701, %v4577
        %v4703 = vadd.f32 %v4702, %v4585
        %v4704 = vadd.f32 %v4703, %v4593
        %v4705 = vadd.f32 %v4704, %v4601
        %v4706 = vadd.f32 %v4705, %v4609
        %v4707 = vadd.f32 %v4706, %v4617
        %v4708 = vadd.f32 %v4707, %v4625
        %v4709 = vadd.f32 %v4708, %v4633
        %v4710 = vadd.f32 %v4709, %v4641
        %v4711 = vadd.f32 %v4710, %v4649
        %v4712 = vrot.slane %v4711, 4
        %v4713 = vadd.f32 %v4711, %v4712
        %v4714 = vrot.slane %v4713, 2
        %v4715 = vadd.f32 %v4713, %v4714
        %v4716 = vrot.slane %v4715, 1
        %v4717 = vadd.f32 %v4715, %v4716
        %v4718 = vadd.f32 %v4530, %v4538
        %v4719 = vadd.f32 %v4718, %v4546
        %v4720 = vadd.f32 %v4719, %v4554
        %v4721 = vadd.f32 %v4720, %v4562
        %v4722 = vadd.f32 %v4721, %v4570
        %v4723 = vadd.f32 %v4722, %v4578
        %v4724 = vadd.f32 %v4723, %v4586
        %v4725 = vadd.f32 %v4724, %v4594
        %v4726 = vadd.f32 %v4725, %v4602
        %v4727 = vadd.f32 %v4726, %v4610
        %v4728 = vadd.f32 %v4727, %v4618
        %v4729 = vadd.f32 %v4728, %v4626
        %v4730 = vadd.f32 %v4729, %v4634
        %v4731 = vadd.f32 %v4730, %v4642
        %v4732 = vadd.f32 %v4731, %v4650
        %v4733 = vrot.slane %v4732, 4
        %v4734 = vadd.f32 %v4732, %v4733
        %v4735 = vrot.slane %v4734, 2
        %v4736 = vadd.f32 %v4734, %v4735
        %v4737 = vrot.slane %v4736, 1
        %v4738 = vadd.f32 %v4736, %v4737
        %v4739 = vadd.f32 %v4531, %v4539
        %v4740 = vadd.f32 %v4739, %v4547
        %v4741 = vadd.f32 %v4740, %v4555
        %v4742 = vadd.f32 %v4741, %v4563
        %v4743 = vadd.f32 %v4742, %v4571
        %v4744 = vadd.f32 %v4743, %v4579
        %v4745 = vadd.f32 %v4744, %v4587
        %v4746 = vadd.f32 %v4745, %v4595
        %v4747 = vadd.f32 %v4746, %v4603
        %v4748 = vadd.f32 %v4747, %v4611
        %v4749 = vadd.f32 %v4748, %v4619
        %v4750 = vadd.f32 %v4749, %v4627
        %v4751 = vadd.f32 %v4750, %v4635
        %v4752 = vadd.f32 %v4751, %v4643
        %v4753 = vadd.f32 %v4752, %v4651
        %v4754 = vrot.slane %v4753, 4
        %v4755 = vadd.f32 %v4753, %v4754
        %v4756 = vrot.slane %v4755, 2
        %v4757 = vadd.f32 %v4755, %v4756
        %v4758 = vrot.slane %v4757, 1
        %v4759 = vadd.f32 %v4757, %v4758
        %v4760 = vadd.f32 %v4532, %v4540
        %v4761 = vadd.f32 %v4760, %v4548
        %v4762 = vadd.f32 %v4761, %v4556
        %v4763 = vadd.f32 %v4762, %v4564
        %v4764 = vadd.f32 %v4763, %v4572
        %v4765 = vadd.f32 %v4764, %v4580
        %v4766 = vadd.f32 %v4765, %v4588
        %v4767 = vadd.f32 %v4766, %v4596
        %v4768 = vadd.f32 %v4767, %v4604
        %v4769 = vadd.f32 %v4768, %v4612
        %v4770 = vadd.f32 %v4769, %v4620
        %v4771 = vadd.f32 %v4770, %v4628
        %v4772 = vadd.f32 %v4771, %v4636
        %v4773 = vadd.f32 %v4772, %v4644
        %v4774 = vadd.f32 %v4773, %v4652
        %v4775 = vrot.slane %v4774, 4
        %v4776 = vadd.f32 %v4774, %v4775
        %v4777 = vrot.slane %v4776, 2
        %v4778 = vadd.f32 %v4776, %v4777
        %v4779 = vrot.slane %v4778, 1
        %v4780 = vadd.f32 %v4778, %v4779
        %v4781 = vadd.f32 %v4533, %v4541
        %v4782 = vadd.f32 %v4781, %v4549
        %v4783 = vadd.f32 %v4782, %v4557
        %v4784 = vadd.f32 %v4783, %v4565
        %v4785 = vadd.f32 %v4784, %v4573
        %v4786 = vadd.f32 %v4785, %v4581
        %v4787 = vadd.f32 %v4786, %v4589
        %v4788 = vadd.f32 %v4787, %v4597
        %v4789 = vadd.f32 %v4788, %v4605
        %v4790 = vadd.f32 %v4789, %v4613
        %v4791 = vadd.f32 %v4790, %v4621
        %v4792 = vadd.f32 %v4791, %v4629
        %v4793 = vadd.f32 %v4792, %v4637
        %v4794 = vadd.f32 %v4793, %v4645
        %v4795 = vadd.f32 %v4794, %v4653
        %v4796 = vrot.slane %v4795, 4
        %v4797 = vadd.f32 %v4795, %v4796
        %v4798 = vrot.slane %v4797, 2
        %v4799 = vadd.f32 %v4797, %v4798
        %v4800 = vrot.slane %v4799, 1
        %v4801 = vadd.f32 %v4799, %v4800
        %v4802 = vadd.f32 %v4534, %v4542
        %v4803 = vadd.f32 %v4802, %v4550
        %v4804 = vadd.f32 %v4803, %v4558
        %v4805 = vadd.f32 %v4804, %v4566
        %v4806 = vadd.f32 %v4805, %v4574
        %v4807 = vadd.f32 %v4806, %v4582
        %v4808 = vadd.f32 %v4807, %v4590
        %v4809 = vadd.f32 %v4808, %v4598
        %v4810 = vadd.f32 %v4809, %v4606
        %v4811 = vadd.f32 %v4810, %v4614
        %v4812 = vadd.f32 %v4811, %v4622
        %v4813 = vadd.f32 %v4812, %v4630
        %v4814 = vadd.f32 %v4813, %v4638
        %v4815 = vadd.f32 %v4814, %v4646
        %v4816 = vadd.f32 %v4815, %v4654
        %v4817 = vrot.slane %v4816, 4
        %v4818 = vadd.f32 %v4816, %v4817
        %v4819 = vrot.slane %v4818, 2
        %v4820 = vadd.f32 %v4818, %v4819
        %v4821 = vrot.slane %v4820, 1
        %v4822 = vadd.f32 %v4820, %v4821
        %v4823 = vadd.f32 %v4675, %v2829
        %v4824 = vadd.f32 %v4696, %v2829
        %v4825 = vadd.f32 %v4717, %v2829
        %v4826 = vadd.f32 %v4738, %v2829
        %v4827 = vadd.f32 %v4759, %v2829
        %v4828 = vadd.f32 %v4780, %v2829
        %v4829 = vadd.f32 %v4801, %v2829
        %v4830 = vadd.f32 %v4822, %v2829
        %v4839 = vrot.slane %v4824, 7
        %v4840 = vrot.slane %v4825, 6
        %v4841 = vrot.slane %v4826, 5
        %v4842 = vrot.slane %v4827, 4
        %v4843 = vrot.slane %v4828, 3
        %v4844 = vrot.slane %v4829, 2
        %v4845 = vrot.slane %v4830, 1
        %v4846 = vsel %vm2853, %v4823, %v4839
        %v4847 = vsel %vm2855, %v4840, %v4841
        %v4848 = vsel %vm2857, %v4846, %v4847
        %v4849 = vsel %vm2859, %v4842, %v4843
        %v4850 = vsel %vm2861, %v4844, %v4845
        %v4851 = vsel %vm2863, %v4849, %v4850
        %v4852 = vsel %vm2865, %v4848, %v4851
        %s4854 = scalar_lea.vmem %s357, 8 [#allocation2]
        %4855 = vst [vmem:[%s4854] sm:$0xff] %v4852
        %s4856 = sand.u32 %s211, 1
        %s4857 = scalar_lea.sflag [#allocation3], %s4856
        %s4858 = sand.u32 %s211, 1
        %s4859 = smul.addr %s4858, 16
        %s4860 = scalar_lea.vmem [#allocation2], %s4859
        // Predicated region
        $region49: #{tpu_custom_call.1} parent=47 // pred_check
          %p4861 = pneg %p221
        $region50: #{tpu_custom_call.1} parent=47 // pred_check_branch
          %4863 = sbr.rel (%p4861) target = $region52
        $region51: #{tpu_custom_call.1} parent=47 // pred_region
          %4865 = vsyncadd %s4857, 0
          %s4866 = smul.addr %s21, 16
          %s4867 = scalar_lea.hbm %s7, %s4866
          %s4868 = sshll.u32 %s4860, 4
          %s4869 = int_to_ptr.vmem [resolvable:$true] %s4868
          %s4870 = sshll.u32 %s4867, 4
          %s4871 = int_to_ptr.hbm [resolvable:$true] %s4870
          %4876 = dma.vmem_to_hbm [thread:$0]  %s4869, 256, %s4871, %s4857, 128, 128, 8
        $region52: #{tpu_custom_call.1} parent=47 // pred_fallthru
          _
      $region48: #{tpu_custom_call.1} parent=5 // pred_fallthru
        _
      %p4877 = scmp.le.s32.totalorder 2, %s16
      // Predicated region
      $region53: #{tpu_custom_call.1} parent=5 // pred_check
        %p4878 = pneg %p4877
      $region54: #{tpu_custom_call.1} parent=5 // pred_check_branch
        %4880 = sbr.rel (%p4878) target = $region56
      $region55: #{tpu_custom_call.1} parent=5 // pred_region
        %s4881 = ssub.s32 %s16, 2
        // Predicated region
        $region57: #{tpu_custom_call.1} parent=55 // pred_check
          %p4882 = pneg %p227
        $region58: #{tpu_custom_call.1} parent=55 // pred_check_branch
          %4884 = sbr.rel (%p4882) target = $region60
        $region59: #{tpu_custom_call.1} parent=55 // pred_region
          %s4885 = sand.u32 %s212, 1
          %s4886 = scalar_lea.sflag [#allocation3], %s4885
          %s4887 = sand.u32 %s212, 1
          %s4888 = smul.addr %s4887, 16
          %s4889 = scalar_lea.vmem [#allocation2], %s4888
          %4891 = dma.done %s4886, 256
        $region60: #{tpu_custom_call.1} parent=55 // pred_fallthru
          _
      $region56: #{tpu_custom_call.1} parent=5 // pred_fallthru
        _
    $region6: #{tpu_custom_call.1} parent=1 // loop_footer
      %s20 = sadd.s32 1, %s16
    $region7: #{tpu_custom_call.1} parent=1 // loop_footer_branch
      %15 = sbr.rel target = $region3
    $region8: #{tpu_custom_call.1} parent=1 // loop_exit
      _
    %4892 = vsyncpa [#allocation3], 1
    %s4893 = scalar_lea.sflag [#allocation3], 1
    %4894 = vsyncpa %s4893, 1

</llo_original>
